<compile_context>
chip_gen: v6e
topology: v6e:2x2x1
jax: 0.10.0
libtpu: 0.0.40
codegen_flags: <defaults>
</compile_context>

<pallas_src>
import math

import jax
import jax.numpy as jnp
import numpy as np
from jax.experimental import pallas as pl
from jax.experimental.pallas import tpu as pltpu

# ----------------------------- configuration --------------------------------
HIDDEN = 32
HEADS = 4
HEAD_DIM = HIDDEN // HEADS
FF_DIM = 64
SEQ = 8       # decoder (target) sequence length
SEQ_ENC = 8   # encoder sequence length
BATCH = 2
EPS = 1e-5

# Row indices inside the packed (9, HIDDEN) bias / LayerNorm slab.
_BO1, _BO2, _BF2 = 0, 1, 2
_G1, _BE1, _G2, _BE2, _G3, _BE3 = 3, 4, 5, 6, 7, 8


# ------------------------------- kernel -------------------------------------
def decoder_layer_kernel(
    x_ref,       # (BB, L, H)
    enc_ref,     # (BB, Le, H)
    w_qkv1_ref,  # (H, 3H)  self-attn Q|K|V (Q part pre-scaled by 1/sqrt(hd))
    b_qkv1_ref,  # (1, 3H)
    wo1_ref,     # (H, H)
    wq2_ref,     # (H, H)   cross-attn Q (pre-scaled)
    bq2_ref,     # (1, H)
    w_kv2_ref,   # (H, 2H)  cross-attn K|V
    b_kv2_ref,   # (1, 2H)
    wo2_ref,     # (H, H)
    wf1_ref,     # (H, FF)
    bf1_ref,     # (1, FF)
    wf2_ref,     # (FF, H)
    vec_ref,     # (9, H): bo1, bo2, bf2, g1, be1, g2, be2, g3, be3
    out_ref,     # (BB, L, H)
):
    BB, L, H = x_ref.shape
    Le = enc_ref.shape[1]

    # Fold batch into sublanes for every dense matmul.
    x = x_ref[...].astype(jnp.float32).reshape(BB * L, H)
    enc = enc_ref[...].astype(jnp.float32).reshape(BB * Le, H)

    vecs = vec_ref[...]

    def row(i):                                   # (1, H) static sublane slice
        return vecs[i:i + 1, :]

    def layernorm(a, gi, bi):
        mu = jnp.mean(a, axis=-1, keepdims=True)
        d = a - mu
        var = jnp.mean(d * d, axis=-1, keepdims=True)
        return d * jax.lax.rsqrt(var + EPS) * row(gi) + row(bi)

    def dense(a, w, b):
        return jnp.dot(a, w, preferred_element_type=jnp.float32) + b

    def mha(q2d, k2d, v2d, Lq, Lk, wo, bo_i):
        # q2d: (BB*Lq, H); k2d/v2d: (BB*Lk, H).  Heads are split only here.
        outs = []
        for b in range(BB):                       # static unroll (BB <= 2)
            qh = q2d[b * Lq:(b + 1) * Lq, :].reshape(Lq, HEADS, HEAD_DIM)
            kh = k2d[b * Lk:(b + 1) * Lk, :].reshape(Lk, HEADS, HEAD_DIM)
            vh = v2d[b * Lk:(b + 1) * Lk, :].reshape(Lk, HEADS, HEAD_DIM)
            # scores (scale already folded into the Q projection)
            s = jnp.einsum("qhd,khd->hqk", qh, kh,
                           preferred_element_type=jnp.float32)
            s = s - jnp.max(s, axis=-1, keepdims=True)
            p = jnp.exp(s)
            p = p / jnp.sum(p, axis=-1, keepdims=True)   # exact reciprocal
            o = jnp.einsum("hqk,khd->qhd", p, vh,
                           preferred_element_type=jnp.float32)
            outs.append(o.reshape(Lq, H))         # concat heads -> lane-dense
        o2d = outs[0] if BB == 1 else jnp.concatenate(outs, axis=0)
        # single (BB*Lq, H) @ (H, H) output projection
        return dense(o2d, wo, row(bo_i))

    # --- self attention block (one fused Q|K|V projection) ---
    qkv = dense(x, w_qkv1_ref[...], b_qkv1_ref[...])            # (BB*L, 3H)
    attn = mha(qkv[:, :H], qkv[:, H:2 * H], qkv[:, 2 * H:],
               L, L, wo1_ref[...], _BO1)
    x = layernorm(x + attn, _G1, _BE1)

    # --- cross attention block (Q from x, fused K|V from encoder output) ---
    q2 = dense(x, wq2_ref[...], bq2_ref[...])                   # (BB*L, H)
    kv2 = dense(enc, w_kv2_ref[...], b_kv2_ref[...])            # (BB*Le, 2H)
    cross = mha(q2, kv2[:, :H], kv2[:, H:], L, Le, wo2_ref[...], _BO2)
    x = layernorm(x + cross, _G2, _BE2)

    # --- feed-forward block ---
    h = jnp.maximum(dense(x, wf1_ref[...], bf1_ref[...]), 0.0)
    ffn = dense(h, wf2_ref[...], row(_BF2))
    x = layernorm(x + ffn, _G3, _BE3)

    out_ref[...] = x.reshape(BB, L, H).astype(out_ref.dtype)


# ------------------------------ wrapper --------------------------------------
def _const_spec(shape):
    # full-array block, constant across the batch grid (fetched once)
    n = len(shape)
    return pl.BlockSpec(shape, lambda i, n=n: (0,) * n)


def _default_batch_block(batch):
    # v7x has 2 TensorCores/chip: keep one batch element per grid step so the
    # "parallel" batch axis splits across cores.  Single-TC chips (v5e/v6e)
    # and CPU/interpret: fold the whole batch into a single invocation.
    try:
        kind = jax.devices()[0].device_kind.lower()
    except Exception:
        kind = ""
    if "v7" in kind:
        return 1
    return batch


def pack_params(p):
    scale = 1.0 / math.sqrt(HEAD_DIM)
    w_qkv1 = jnp.concatenate([p["wq1"] * scale, p["wk1"], p["wv1"]], axis=1)  # (H, 3H)
    b_qkv1 = jnp.concatenate([p["bq1"] * scale, p["bk1"], p["bv1"]], axis=1)  # (1, 3H)
    w_kv2 = jnp.concatenate([p["wk2"], p["wv2"]], axis=1)                     # (H, 2H)
    b_kv2 = jnp.concatenate([p["bk2"], p["bv2"]], axis=1)                     # (1, 2H)
    vecs = jnp.concatenate([
        p["bo1"], p["bo2"], p["bf2"],
        p["g1"], p["be1"], p["g2"], p["be2"], p["g3"], p["be3"],
    ], axis=0)                                                                # (9, H)
    return [w_qkv1, b_qkv1, p["wo1"],
            p["wq2"] * scale, p["bq2"] * scale, w_kv2, b_kv2, p["wo2"],
            p["wf1"], p["bf1"], p["wf2"], vecs]


def decoder_layer(x, enc, params, batch_block=None):
    B, L, H = x.shape
    _, Le, _ = enc.shape
    BB = _default_batch_block(B) if batch_block is None else batch_block
    assert B % BB == 0

    packed = pack_params(params)

    in_specs = [
        pl.BlockSpec((BB, L, H), lambda i: (i, 0, 0)),
        pl.BlockSpec((BB, Le, H), lambda i: (i, 0, 0)),
    ] + [_const_spec(tuple(w.shape)) for w in packed]
    out_spec = pl.BlockSpec((BB, L, H), lambda i: (i, 0, 0))

    fn = pl.pallas_call(
        decoder_layer_kernel,
        out_shape=jax.ShapeDtypeStruct((B, L, H), x.dtype),
        grid_spec=pltpu.PrefetchScalarGridSpec(
            num_scalar_prefetch=0,
            grid=(B // BB,),
            in_specs=in_specs,
            out_specs=out_spec,
        ),
        compiler_params=pltpu.CompilerParams(
            dimension_semantics=("parallel",),
        ),
    )
    return fn(x, enc, *packed)


# ------------------------- deterministic param init --------------------------
def init_params(key):
    keys = jax.random.split(key, 32)
    ki = iter(keys)

    def lin(kin, d_in, d_out):
        w = jax.random.normal(kin, (d_in, d_out), jnp.float32) * (1.0 / math.sqrt(d_in))
        b = jax.random.normal(next(ki), (1, d_out), jnp.float32) * 0.02
        return w, b

    p = {}
    for prefix in ("1", "2"):
        for name in ("q", "k", "v", "o"):
            w, b = lin(next(ki), HIDDEN, HIDDEN)
            p[f"w{name}{prefix}"] = w
            p[f"b{name}{prefix}"] = b
    p["wf1"], p["bf1"] = lin(next(ki), HIDDEN, FF_DIM)
    p["wf2"], p["bf2"] = lin(next(ki), FF_DIM, HIDDEN)
    for i in (1, 2, 3):
        p[f"g{i}"] = jnp.ones((1, HIDDEN), jnp.float32)
        p[f"be{i}"] = jnp.zeros((1, HIDDEN), jnp.float32)
    return p


# ---------------------------- pure-JAX reference -----------------------------
_PREC = jax.lax.Precision.HIGHEST


def reference(x, enc, p):
    def linear(a, w, b):
        return jnp.dot(a, w, precision=_PREC) + b

    def layernorm(a, g, b):
        mu = a.mean(-1, keepdims=True)
        var = ((a - mu) ** 2).mean(-1, keepdims=True)
        return (a - mu) / jnp.sqrt(var + EPS) * g + b

    def mha(q_in, kv_in, wq, bq, wk, bk, wv, bv, wo, bo):
        B, Lq, H = q_in.shape
        Lk = kv_in.shape[1]

        def split(t, L):
            return t.reshape(B, L, HEADS, HEAD_DIM).transpose(0, 2, 1, 3)

        Q = split(linear(q_in, wq, bq), Lq)
        K = split(linear(kv_in, wk, bk), Lk)
        V = split(linear(kv_in, wv, bv), Lk)
        s = jnp.einsum("bhqd,bhkd->bhqk", Q, K, precision=_PREC) / math.sqrt(HEAD_DIM)
        w = jax.nn.softmax(s, axis=-1)
        o = jnp.einsum("bhqk,bhkd->bhqd", w, V, precision=_PREC)
        o = o.transpose(0, 2, 1, 3).reshape(B, Lq, H)
        return linear(o, wo, bo)

    x1 = layernorm(x + mha(x, x, p["wq1"], p["bq1"], p["wk1"], p["bk1"],
                           p["wv1"], p["bv1"], p["wo1"], p["bo1"]),
                   p["g1"], p["be1"])
    x2 = layernorm(x1 + mha(x1, enc, p["wq2"], p["bq2"], p["wk2"], p["bk2"],
                            p["wv2"], p["bv2"], p["wo2"], p["bo2"]),
                   p["g2"], p["be2"])
    ffn = linear(jax.nn.relu(linear(x2, p["wf1"], p["bf1"])), p["wf2"], p["bf2"])
    return layernorm(x2 + ffn, p["g3"], p["be3"])


if __name__ == "__main__":
    key = jax.random.PRNGKey(0)
    k_x, k_enc, k_p = jax.random.split(key, 3)

    x = jax.random.normal(k_x, (BATCH, SEQ, HIDDEN), jnp.float32)
    enc = jax.random.normal(k_enc, (BATCH, SEQ_ENC, HIDDEN), jnp.float32)
    params = init_params(k_p)

    out = jax.block_until_ready(decoder_layer(x, enc, params))
    ref = jax.block_until_ready(reference(x, enc, params))

    np.testing.assert_allclose(np.asarray(out), np.asarray(ref), rtol=2e-3, atol=2e-3)
    print("KERNEL_OK")
</pallas_src>

<mosaic_0001>
module attributes {stable_mosaic.version = 11 : i64} {
  func.func @decoder_layer_kernel(%arg0: i32, %arg1: memref<2x8x32xf32, #tpu.memory_space<vmem>>, %arg2: memref<2x8x32xf32, #tpu.memory_space<vmem>>, %arg3: memref<32x96xf32, #tpu.memory_space<vmem>>, %arg4: memref<1x96xf32, #tpu.memory_space<vmem>>, %arg5: memref<32x32xf32, #tpu.memory_space<vmem>>, %arg6: memref<32x32xf32, #tpu.memory_space<vmem>>, %arg7: memref<1x32xf32, #tpu.memory_space<vmem>>, %arg8: memref<32x64xf32, #tpu.memory_space<vmem>>, %arg9: memref<1x64xf32, #tpu.memory_space<vmem>>, %arg10: memref<32x32xf32, #tpu.memory_space<vmem>>, %arg11: memref<32x64xf32, #tpu.memory_space<vmem>>, %arg12: memref<1x64xf32, #tpu.memory_space<vmem>>, %arg13: memref<64x32xf32, #tpu.memory_space<vmem>>, %arg14: memref<9x32xf32, #tpu.memory_space<vmem>>, %arg15: memref<2x8x32xf32, #tpu.memory_space<vmem>>) attributes {dimension_semantics = [#tpu.dimension_semantics<parallel>], iteration_bounds = array<i64: 1>, scalar_prefetch = 0 : i64, scratch_operands = 0 : i64, tpu.core_type = #tpu.core_type<tc>, window_params = [{transform_indices = @transform_0, window_bounds = array<i64: 2, 8, 32>}, {transform_indices = @transform_1, window_bounds = array<i64: 2, 8, 32>}, {pipeline_mode = #tpu.pipeline_mode<synchronous>, transform_indices = @transform_2, window_bounds = array<i64: 32, 96>}, {pipeline_mode = #tpu.pipeline_mode<synchronous>, transform_indices = @transform_3, window_bounds = array<i64: 1, 96>}, {pipeline_mode = #tpu.pipeline_mode<synchronous>, transform_indices = @transform_4, window_bounds = array<i64: 32, 32>}, {pipeline_mode = #tpu.pipeline_mode<synchronous>, transform_indices = @transform_5, window_bounds = array<i64: 32, 32>}, {pipeline_mode = #tpu.pipeline_mode<synchronous>, transform_indices = @transform_6, window_bounds = array<i64: 1, 32>}, {pipeline_mode = #tpu.pipeline_mode<synchronous>, transform_indices = @transform_7, window_bounds = array<i64: 32, 64>}, {pipeline_mode = #tpu.pipeline_mode<synchronous>, transform_indices = @transform_8, window_bounds = array<i64: 1, 64>}, {pipeline_mode = #tpu.pipeline_mode<synchronous>, transform_indices = @transform_9, window_bounds = array<i64: 32, 32>}, {pipeline_mode = #tpu.pipeline_mode<synchronous>, transform_indices = @transform_10, window_bounds = array<i64: 32, 64>}, {pipeline_mode = #tpu.pipeline_mode<synchronous>, transform_indices = @transform_11, window_bounds = array<i64: 1, 64>}, {pipeline_mode = #tpu.pipeline_mode<synchronous>, transform_indices = @transform_12, window_bounds = array<i64: 64, 32>}, {pipeline_mode = #tpu.pipeline_mode<synchronous>, transform_indices = @transform_13, window_bounds = array<i64: 9, 32>}, {transform_indices = @transform_14, window_bounds = array<i64: 2, 8, 32>}]} {
    %c0 = arith.constant 0 : index
    %c0_0 = arith.constant 0 : index
    %c0_1 = arith.constant 0 : index
    %0 = vector.load %arg1[%c0, %c0_0, %c0_1] : memref<2x8x32xf32, #tpu.memory_space<vmem>>, vector<2x8x32xf32>
    %1 = vector.shape_cast %0 : vector<2x8x32xf32> to vector<16x32xf32>
    %c0_2 = arith.constant 0 : index
    %c0_3 = arith.constant 0 : index
    %c0_4 = arith.constant 0 : index
    %2 = vector.load %arg2[%c0_2, %c0_3, %c0_4] : memref<2x8x32xf32, #tpu.memory_space<vmem>>, vector<2x8x32xf32>
    %3 = vector.shape_cast %2 : vector<2x8x32xf32> to vector<16x32xf32>
    %c0_5 = arith.constant 0 : index
    %c0_6 = arith.constant 0 : index
    %4 = vector.load %arg14[%c0_5, %c0_6] : memref<9x32xf32, #tpu.memory_space<vmem>>, vector<9x32xf32>
    %c0_7 = arith.constant 0 : index
    %c0_8 = arith.constant 0 : index
    %5 = vector.load %arg3[%c0_7, %c0_8] : memref<32x96xf32, #tpu.memory_space<vmem>>, vector<32x96xf32>
    %c0_9 = arith.constant 0 : index
    %c0_10 = arith.constant 0 : index
    %6 = vector.load %arg4[%c0_9, %c0_10] : memref<1x96xf32, #tpu.memory_space<vmem>>, vector<1x96xf32>
    %cst = arith.constant dense<0.000000e+00> : vector<16x96xf32>
    %7 = tpu.matmul %1, %5, %cst {dimension_numbers = #tpu.dot_dimension_numbers<[1], [0], [0], [1], [0, 0, 1, 1], [], []>} : vector<16x32xf32>, vector<32x96xf32>, vector<16x96xf32> -> vector<16x96xf32>
    %8 = vector.broadcast %6 : vector<1x96xf32> to vector<16x96xf32>
    %9 = arith.addf %7, %8 : vector<16x96xf32>
    %10 = vector.extract_strided_slice %9 {offsets = [0, 0], sizes = [16, 32], strides = [1, 1]} : vector<16x96xf32> to vector<16x32xf32>
    %11 = vector.extract_strided_slice %9 {offsets = [0, 32], sizes = [16, 32], strides = [1, 1]} : vector<16x96xf32> to vector<16x32xf32>
    %12 = vector.extract_strided_slice %9 {offsets = [0, 64], sizes = [16, 32], strides = [1, 1]} : vector<16x96xf32> to vector<16x32xf32>
    %c0_11 = arith.constant 0 : index
    %c0_12 = arith.constant 0 : index
    %13 = vector.load %arg5[%c0_11, %c0_12] : memref<32x32xf32, #tpu.memory_space<vmem>>, vector<32x32xf32>
    %14 = vector.extract_strided_slice %10 {offsets = [0, 0], sizes = [8, 32], strides = [1, 1]} : vector<16x32xf32> to vector<8x32xf32>
    %15 = vector.shape_cast %14 : vector<8x32xf32> to vector<8x4x8xf32>
    %16 = vector.extract_strided_slice %11 {offsets = [0, 0], sizes = [8, 32], strides = [1, 1]} : vector<16x32xf32> to vector<8x32xf32>
    %17 = vector.shape_cast %16 : vector<8x32xf32> to vector<8x4x8xf32>
    %18 = vector.extract_strided_slice %12 {offsets = [0, 0], sizes = [8, 32], strides = [1, 1]} : vector<16x32xf32> to vector<8x32xf32>
    %19 = vector.shape_cast %18 : vector<8x32xf32> to vector<8x4x8xf32>
    "tpu.trace_start"() <{level = 10 : i32, message = "qhd,khd->hqk"}> : () -> ()
    %cst_13 = arith.constant dense<0.000000e+00> : vector<4x8x8xf32>
    %20 = tpu.matmul %15, %17, %cst_13 {dimension_numbers = #tpu.dot_dimension_numbers<[2], [2], [0], [0], [0, 1, 0, 0, 1, 0], [1], [1]>} : vector<8x4x8xf32>, vector<8x4x8xf32>, vector<4x8x8xf32> -> vector<4x8x8xf32>
    "tpu.trace_stop"() : () -> ()
    %cst_14 = arith.constant dense<0xFF800000> : vector<4x8xf32>
    %21 = vector.multi_reduction <maximumf>, %20, %cst_14 [2] : vector<4x8x8xf32> to vector<4x8xf32>
    %22 = vector.shape_cast %21 : vector<4x8xf32> to vector<4x8x1xf32>
    %23 = vector.broadcast %22 : vector<4x8x1xf32> to vector<4x8x8xf32>
    %24 = arith.subf %20, %23 : vector<4x8x8xf32>
    %25 = math.exp %24 : vector<4x8x8xf32>
    %cst_15 = arith.constant dense<0.000000e+00> : vector<4x8xf32>
    %26 = vector.multi_reduction <add>, %25, %cst_15 [2] : vector<4x8x8xf32> to vector<4x8xf32>
    %27 = vector.shape_cast %26 : vector<4x8xf32> to vector<4x8x1xf32>
    %28 = vector.broadcast %27 : vector<4x8x1xf32> to vector<4x8x8xf32>
    %29 = arith.divf %25, %28 : vector<4x8x8xf32>
    "tpu.trace_start"() <{level = 10 : i32, message = "hqk,khd->qhd"}> : () -> ()
    %cst_16 = arith.constant dense<0.000000e+00> : vector<4x8x8xf32>
    %30 = tpu.matmul %19, %29, %cst_16 {dimension_numbers = #tpu.dot_dimension_numbers<[0], [2], [2], [1], [0, 1, 0, 2, 1, 1], [1], [0]>} : vector<8x4x8xf32>, vector<4x8x8xf32>, vector<4x8x8xf32> -> vector<4x8x8xf32>
    %31 = tpu.transpose %30, [2, 0, 1] : vector<4x8x8xf32> -> vector<8x4x8xf32>
    "tpu.trace_stop"() : () -> ()
    %32 = vector.shape_cast %31 : vector<8x4x8xf32> to vector<8x32xf32>
    %33 = vector.extract_strided_slice %10 {offsets = [8, 0], sizes = [8, 32], strides = [1, 1]} : vector<16x32xf32> to vector<8x32xf32>
    %34 = vector.shape_cast %33 : vector<8x32xf32> to vector<8x4x8xf32>
    %35 = vector.extract_strided_slice %11 {offsets = [8, 0], sizes = [8, 32], strides = [1, 1]} : vector<16x32xf32> to vector<8x32xf32>
    %36 = vector.shape_cast %35 : vector<8x32xf32> to vector<8x4x8xf32>
    %37 = vector.extract_strided_slice %12 {offsets = [8, 0], sizes = [8, 32], strides = [1, 1]} : vector<16x32xf32> to vector<8x32xf32>
    %38 = vector.shape_cast %37 : vector<8x32xf32> to vector<8x4x8xf32>
    "tpu.trace_start"() <{level = 10 : i32, message = "qhd,khd->hqk"}> : () -> ()
    %cst_17 = arith.constant dense<0.000000e+00> : vector<4x8x8xf32>
    %39 = tpu.matmul %34, %36, %cst_17 {dimension_numbers = #tpu.dot_dimension_numbers<[2], [2], [0], [0], [0, 1, 0, 0, 1, 0], [1], [1]>} : vector<8x4x8xf32>, vector<8x4x8xf32>, vector<4x8x8xf32> -> vector<4x8x8xf32>
    "tpu.trace_stop"() : () -> ()
    %cst_18 = arith.constant dense<0xFF800000> : vector<4x8xf32>
    %40 = vector.multi_reduction <maximumf>, %39, %cst_18 [2] : vector<4x8x8xf32> to vector<4x8xf32>
    %41 = vector.shape_cast %40 : vector<4x8xf32> to vector<4x8x1xf32>
    %42 = vector.broadcast %41 : vector<4x8x1xf32> to vector<4x8x8xf32>
    %43 = arith.subf %39, %42 : vector<4x8x8xf32>
    %44 = math.exp %43 : vector<4x8x8xf32>
    %cst_19 = arith.constant dense<0.000000e+00> : vector<4x8xf32>
    %45 = vector.multi_reduction <add>, %44, %cst_19 [2] : vector<4x8x8xf32> to vector<4x8xf32>
    %46 = vector.shape_cast %45 : vector<4x8xf32> to vector<4x8x1xf32>
    %47 = vector.broadcast %46 : vector<4x8x1xf32> to vector<4x8x8xf32>
    %48 = arith.divf %44, %47 : vector<4x8x8xf32>
    "tpu.trace_start"() <{level = 10 : i32, message = "hqk,khd->qhd"}> : () -> ()
    %cst_20 = arith.constant dense<0.000000e+00> : vector<4x8x8xf32>
    %49 = tpu.matmul %38, %48, %cst_20 {dimension_numbers = #tpu.dot_dimension_numbers<[0], [2], [2], [1], [0, 1, 0, 2, 1, 1], [1], [0]>} : vector<8x4x8xf32>, vector<4x8x8xf32>, vector<4x8x8xf32> -> vector<4x8x8xf32>
    %50 = tpu.transpose %49, [2, 0, 1] : vector<4x8x8xf32> -> vector<8x4x8xf32>
    "tpu.trace_stop"() : () -> ()
    %51 = vector.shape_cast %50 : vector<8x4x8xf32> to vector<8x32xf32>
    %52 = tpu.concatenate %32, %51 in 0 : vector<8x32xf32>, vector<8x32xf32> -> vector<16x32xf32>
    %53 = vector.extract_strided_slice %4 {offsets = [0, 0], sizes = [1, 32], strides = [1, 1]} : vector<9x32xf32> to vector<1x32xf32>
    %cst_21 = arith.constant dense<0.000000e+00> : vector<16x32xf32>
    %54 = tpu.matmul %52, %13, %cst_21 {dimension_numbers = #tpu.dot_dimension_numbers<[1], [0], [0], [1], [0, 0, 1, 1], [], []>} : vector<16x32xf32>, vector<32x32xf32>, vector<16x32xf32> -> vector<16x32xf32>
    %55 = vector.broadcast %53 : vector<1x32xf32> to vector<16x32xf32>
    %56 = arith.addf %54, %55 : vector<16x32xf32>
    %57 = arith.addf %1, %56 : vector<16x32xf32>
    %cst_22 = arith.constant dense<0.000000e+00> : vector<16xf32>
    %58 = vector.multi_reduction <add>, %57, %cst_22 [1] : vector<16x32xf32> to vector<16xf32>
    %59 = vector.shape_cast %58 : vector<16xf32> to vector<16x1xf32>
    %cst_23 = arith.constant 3.200000e+01 : f32
    %60 = vector.broadcast %cst_23 : f32 to vector<16x1xf32>
    %61 = arith.divf %59, %60 : vector<16x1xf32>
    %62 = vector.broadcast %61 : vector<16x1xf32> to vector<16x32xf32>
    %63 = arith.subf %57, %62 : vector<16x32xf32>
    %64 = arith.mulf %63, %63 : vector<16x32xf32>
    %cst_24 = arith.constant dense<0.000000e+00> : vector<16xf32>
    %65 = vector.multi_reduction <add>, %64, %cst_24 [1] : vector<16x32xf32> to vector<16xf32>
    %66 = vector.shape_cast %65 : vector<16xf32> to vector<16x1xf32>
    %cst_25 = arith.constant 3.200000e+01 : f32
    %67 = vector.broadcast %cst_25 : f32 to vector<16x1xf32>
    %68 = arith.divf %66, %67 : vector<16x1xf32>
    %cst_26 = arith.constant 9.99999974E-6 : f32
    %69 = vector.broadcast %cst_26 : f32 to vector<16x1xf32>
    %70 = arith.addf %68, %69 : vector<16x1xf32>
    %71 = math.rsqrt %70 : vector<16x1xf32>
    %72 = vector.broadcast %71 : vector<16x1xf32> to vector<16x32xf32>
    %73 = arith.mulf %63, %72 : vector<16x32xf32>
    %74 = vector.extract_strided_slice %4 {offsets = [3, 0], sizes = [1, 32], strides = [1, 1]} : vector<9x32xf32> to vector<1x32xf32>
    %75 = vector.broadcast %74 : vector<1x32xf32> to vector<16x32xf32>
    %76 = arith.mulf %73, %75 : vector<16x32xf32>
    %77 = vector.extract_strided_slice %4 {offsets = [4, 0], sizes = [1, 32], strides = [1, 1]} : vector<9x32xf32> to vector<1x32xf32>
    %78 = vector.broadcast %77 : vector<1x32xf32> to vector<16x32xf32>
    %79 = arith.addf %76, %78 : vector<16x32xf32>
    %c0_27 = arith.constant 0 : index
    %c0_28 = arith.constant 0 : index
    %80 = vector.load %arg6[%c0_27, %c0_28] : memref<32x32xf32, #tpu.memory_space<vmem>>, vector<32x32xf32>
    %c0_29 = arith.constant 0 : index
    %c0_30 = arith.constant 0 : index
    %81 = vector.load %arg7[%c0_29, %c0_30] : memref<1x32xf32, #tpu.memory_space<vmem>>, vector<1x32xf32>
    %cst_31 = arith.constant dense<0.000000e+00> : vector<16x32xf32>
    %82 = tpu.matmul %79, %80, %cst_31 {dimension_numbers = #tpu.dot_dimension_numbers<[1], [0], [0], [1], [0, 0, 1, 1], [], []>} : vector<16x32xf32>, vector<32x32xf32>, vector<16x32xf32> -> vector<16x32xf32>
    %83 = vector.broadcast %81 : vector<1x32xf32> to vector<16x32xf32>
    %84 = arith.addf %82, %83 : vector<16x32xf32>
    %c0_32 = arith.constant 0 : index
    %c0_33 = arith.constant 0 : index
    %85 = vector.load %arg8[%c0_32, %c0_33] : memref<32x64xf32, #tpu.memory_space<vmem>>, vector<32x64xf32>
    %c0_34 = arith.constant 0 : index
    %c0_35 = arith.constant 0 : index
    %86 = vector.load %arg9[%c0_34, %c0_35] : memref<1x64xf32, #tpu.memory_space<vmem>>, vector<1x64xf32>
    %cst_36 = arith.constant dense<0.000000e+00> : vector<16x64xf32>
    %87 = tpu.matmul %3, %85, %cst_36 {dimension_numbers = #tpu.dot_dimension_numbers<[1], [0], [0], [1], [0, 0, 1, 1], [], []>} : vector<16x32xf32>, vector<32x64xf32>, vector<16x64xf32> -> vector<16x64xf32>
    %88 = vector.broadcast %86 : vector<1x64xf32> to vector<16x64xf32>
    %89 = arith.addf %87, %88 : vector<16x64xf32>
    %90 = vector.extract_strided_slice %89 {offsets = [0, 0], sizes = [16, 32], strides = [1, 1]} : vector<16x64xf32> to vector<16x32xf32>
    %91 = vector.extract_strided_slice %89 {offsets = [0, 32], sizes = [16, 32], strides = [1, 1]} : vector<16x64xf32> to vector<16x32xf32>
    %c0_37 = arith.constant 0 : index
    %c0_38 = arith.constant 0 : index
    %92 = vector.load %arg10[%c0_37, %c0_38] : memref<32x32xf32, #tpu.memory_space<vmem>>, vector<32x32xf32>
    %93 = vector.extract_strided_slice %84 {offsets = [0, 0], sizes = [8, 32], strides = [1, 1]} : vector<16x32xf32> to vector<8x32xf32>
    %94 = vector.shape_cast %93 : vector<8x32xf32> to vector<8x4x8xf32>
    %95 = vector.extract_strided_slice %90 {offsets = [0, 0], sizes = [8, 32], strides = [1, 1]} : vector<16x32xf32> to vector<8x32xf32>
    %96 = vector.shape_cast %95 : vector<8x32xf32> to vector<8x4x8xf32>
    %97 = vector.extract_strided_slice %91 {offsets = [0, 0], sizes = [8, 32], strides = [1, 1]} : vector<16x32xf32> to vector<8x32xf32>
    %98 = vector.shape_cast %97 : vector<8x32xf32> to vector<8x4x8xf32>
    "tpu.trace_start"() <{level = 10 : i32, message = "qhd,khd->hqk"}> : () -> ()
    %cst_39 = arith.constant dense<0.000000e+00> : vector<4x8x8xf32>
    %99 = tpu.matmul %94, %96, %cst_39 {dimension_numbers = #tpu.dot_dimension_numbers<[2], [2], [0], [0], [0, 1, 0, 0, 1, 0], [1], [1]>} : vector<8x4x8xf32>, vector<8x4x8xf32>, vector<4x8x8xf32> -> vector<4x8x8xf32>
    "tpu.trace_stop"() : () -> ()
    %cst_40 = arith.constant dense<0xFF800000> : vector<4x8xf32>
    %100 = vector.multi_reduction <maximumf>, %99, %cst_40 [2] : vector<4x8x8xf32> to vector<4x8xf32>
    %101 = vector.shape_cast %100 : vector<4x8xf32> to vector<4x8x1xf32>
    %102 = vector.broadcast %101 : vector<4x8x1xf32> to vector<4x8x8xf32>
    %103 = arith.subf %99, %102 : vector<4x8x8xf32>
    %104 = math.exp %103 : vector<4x8x8xf32>
    %cst_41 = arith.constant dense<0.000000e+00> : vector<4x8xf32>
    %105 = vector.multi_reduction <add>, %104, %cst_41 [2] : vector<4x8x8xf32> to vector<4x8xf32>
    %106 = vector.shape_cast %105 : vector<4x8xf32> to vector<4x8x1xf32>
    %107 = vector.broadcast %106 : vector<4x8x1xf32> to vector<4x8x8xf32>
    %108 = arith.divf %104, %107 : vector<4x8x8xf32>
    "tpu.trace_start"() <{level = 10 : i32, message = "hqk,khd->qhd"}> : () -> ()
    %cst_42 = arith.constant dense<0.000000e+00> : vector<4x8x8xf32>
    %109 = tpu.matmul %98, %108, %cst_42 {dimension_numbers = #tpu.dot_dimension_numbers<[0], [2], [2], [1], [0, 1, 0, 2, 1, 1], [1], [0]>} : vector<8x4x8xf32>, vector<4x8x8xf32>, vector<4x8x8xf32> -> vector<4x8x8xf32>
    %110 = tpu.transpose %109, [2, 0, 1] : vector<4x8x8xf32> -> vector<8x4x8xf32>
    "tpu.trace_stop"() : () -> ()
    %111 = vector.shape_cast %110 : vector<8x4x8xf32> to vector<8x32xf32>
    %112 = vector.extract_strided_slice %84 {offsets = [8, 0], sizes = [8, 32], strides = [1, 1]} : vector<16x32xf32> to vector<8x32xf32>
    %113 = vector.shape_cast %112 : vector<8x32xf32> to vector<8x4x8xf32>
    %114 = vector.extract_strided_slice %90 {offsets = [8, 0], sizes = [8, 32], strides = [1, 1]} : vector<16x32xf32> to vector<8x32xf32>
    %115 = vector.shape_cast %114 : vector<8x32xf32> to vector<8x4x8xf32>
    %116 = vector.extract_strided_slice %91 {offsets = [8, 0], sizes = [8, 32], strides = [1, 1]} : vector<16x32xf32> to vector<8x32xf32>
    %117 = vector.shape_cast %116 : vector<8x32xf32> to vector<8x4x8xf32>
    "tpu.trace_start"() <{level = 10 : i32, message = "qhd,khd->hqk"}> : () -> ()
    %cst_43 = arith.constant dense<0.000000e+00> : vector<4x8x8xf32>
    %118 = tpu.matmul %113, %115, %cst_43 {dimension_numbers = #tpu.dot_dimension_numbers<[2], [2], [0], [0], [0, 1, 0, 0, 1, 0], [1], [1]>} : vector<8x4x8xf32>, vector<8x4x8xf32>, vector<4x8x8xf32> -> vector<4x8x8xf32>
    "tpu.trace_stop"() : () -> ()
    %cst_44 = arith.constant dense<0xFF800000> : vector<4x8xf32>
    %119 = vector.multi_reduction <maximumf>, %118, %cst_44 [2] : vector<4x8x8xf32> to vector<4x8xf32>
    %120 = vector.shape_cast %119 : vector<4x8xf32> to vector<4x8x1xf32>
    %121 = vector.broadcast %120 : vector<4x8x1xf32> to vector<4x8x8xf32>
    %122 = arith.subf %118, %121 : vector<4x8x8xf32>
    %123 = math.exp %122 : vector<4x8x8xf32>
    %cst_45 = arith.constant dense<0.000000e+00> : vector<4x8xf32>
    %124 = vector.multi_reduction <add>, %123, %cst_45 [2] : vector<4x8x8xf32> to vector<4x8xf32>
    %125 = vector.shape_cast %124 : vector<4x8xf32> to vector<4x8x1xf32>
    %126 = vector.broadcast %125 : vector<4x8x1xf32> to vector<4x8x8xf32>
    %127 = arith.divf %123, %126 : vector<4x8x8xf32>
    "tpu.trace_start"() <{level = 10 : i32, message = "hqk,khd->qhd"}> : () -> ()
    %cst_46 = arith.constant dense<0.000000e+00> : vector<4x8x8xf32>
    %128 = tpu.matmul %117, %127, %cst_46 {dimension_numbers = #tpu.dot_dimension_numbers<[0], [2], [2], [1], [0, 1, 0, 2, 1, 1], [1], [0]>} : vector<8x4x8xf32>, vector<4x8x8xf32>, vector<4x8x8xf32> -> vector<4x8x8xf32>
    %129 = tpu.transpose %128, [2, 0, 1] : vector<4x8x8xf32> -> vector<8x4x8xf32>
    "tpu.trace_stop"() : () -> ()
    %130 = vector.shape_cast %129 : vector<8x4x8xf32> to vector<8x32xf32>
    %131 = tpu.concatenate %111, %130 in 0 : vector<8x32xf32>, vector<8x32xf32> -> vector<16x32xf32>
    %132 = vector.extract_strided_slice %4 {offsets = [1, 0], sizes = [1, 32], strides = [1, 1]} : vector<9x32xf32> to vector<1x32xf32>
    %cst_47 = arith.constant dense<0.000000e+00> : vector<16x32xf32>
    %133 = tpu.matmul %131, %92, %cst_47 {dimension_numbers = #tpu.dot_dimension_numbers<[1], [0], [0], [1], [0, 0, 1, 1], [], []>} : vector<16x32xf32>, vector<32x32xf32>, vector<16x32xf32> -> vector<16x32xf32>
    %134 = vector.broadcast %132 : vector<1x32xf32> to vector<16x32xf32>
    %135 = arith.addf %133, %134 : vector<16x32xf32>
    %136 = arith.addf %79, %135 : vector<16x32xf32>
    %cst_48 = arith.constant dense<0.000000e+00> : vector<16xf32>
    %137 = vector.multi_reduction <add>, %136, %cst_48 [1] : vector<16x32xf32> to vector<16xf32>
    %138 = vector.shape_cast %137 : vector<16xf32> to vector<16x1xf32>
    %cst_49 = arith.constant 3.200000e+01 : f32
    %139 = vector.broadcast %cst_49 : f32 to vector<16x1xf32>
    %140 = arith.divf %138, %139 : vector<16x1xf32>
    %141 = vector.broadcast %140 : vector<16x1xf32> to vector<16x32xf32>
    %142 = arith.subf %136, %141 : vector<16x32xf32>
    %143 = arith.mulf %142, %142 : vector<16x32xf32>
    %cst_50 = arith.constant dense<0.000000e+00> : vector<16xf32>
    %144 = vector.multi_reduction <add>, %143, %cst_50 [1] : vector<16x32xf32> to vector<16xf32>
    %145 = vector.shape_cast %144 : vector<16xf32> to vector<16x1xf32>
    %cst_51 = arith.constant 3.200000e+01 : f32
    %146 = vector.broadcast %cst_51 : f32 to vector<16x1xf32>
    %147 = arith.divf %145, %146 : vector<16x1xf32>
    %cst_52 = arith.constant 9.99999974E-6 : f32
    %148 = vector.broadcast %cst_52 : f32 to vector<16x1xf32>
    %149 = arith.addf %147, %148 : vector<16x1xf32>
    %150 = math.rsqrt %149 : vector<16x1xf32>
    %151 = vector.broadcast %150 : vector<16x1xf32> to vector<16x32xf32>
    %152 = arith.mulf %142, %151 : vector<16x32xf32>
    %153 = vector.extract_strided_slice %4 {offsets = [5, 0], sizes = [1, 32], strides = [1, 1]} : vector<9x32xf32> to vector<1x32xf32>
    %154 = vector.broadcast %153 : vector<1x32xf32> to vector<16x32xf32>
    %155 = arith.mulf %152, %154 : vector<16x32xf32>
    %156 = vector.extract_strided_slice %4 {offsets = [6, 0], sizes = [1, 32], strides = [1, 1]} : vector<9x32xf32> to vector<1x32xf32>
    %157 = vector.broadcast %156 : vector<1x32xf32> to vector<16x32xf32>
    %158 = arith.addf %155, %157 : vector<16x32xf32>
    %c0_53 = arith.constant 0 : index
    %c0_54 = arith.constant 0 : index
    %159 = vector.load %arg11[%c0_53, %c0_54] : memref<32x64xf32, #tpu.memory_space<vmem>>, vector<32x64xf32>
    %c0_55 = arith.constant 0 : index
    %c0_56 = arith.constant 0 : index
    %160 = vector.load %arg12[%c0_55, %c0_56] : memref<1x64xf32, #tpu.memory_space<vmem>>, vector<1x64xf32>
    %cst_57 = arith.constant dense<0.000000e+00> : vector<16x64xf32>
    %161 = tpu.matmul %158, %159, %cst_57 {dimension_numbers = #tpu.dot_dimension_numbers<[1], [0], [0], [1], [0, 0, 1, 1], [], []>} : vector<16x32xf32>, vector<32x64xf32>, vector<16x64xf32> -> vector<16x64xf32>
    %162 = vector.broadcast %160 : vector<1x64xf32> to vector<16x64xf32>
    %163 = arith.addf %161, %162 : vector<16x64xf32>
    %cst_58 = arith.constant 0.000000e+00 : f32
    %164 = vector.broadcast %cst_58 : f32 to vector<16x64xf32>
    %165 = arith.maximumf %163, %164 : vector<16x64xf32>
    %c0_59 = arith.constant 0 : index
    %c0_60 = arith.constant 0 : index
    %166 = vector.load %arg13[%c0_59, %c0_60] : memref<64x32xf32, #tpu.memory_space<vmem>>, vector<64x32xf32>
    %167 = vector.extract_strided_slice %4 {offsets = [2, 0], sizes = [1, 32], strides = [1, 1]} : vector<9x32xf32> to vector<1x32xf32>
    %cst_61 = arith.constant dense<0.000000e+00> : vector<16x32xf32>
    %168 = tpu.matmul %165, %166, %cst_61 {dimension_numbers = #tpu.dot_dimension_numbers<[1], [0], [0], [1], [0, 0, 1, 1], [], []>} : vector<16x64xf32>, vector<64x32xf32>, vector<16x32xf32> -> vector<16x32xf32>
    %169 = vector.broadcast %167 : vector<1x32xf32> to vector<16x32xf32>
    %170 = arith.addf %168, %169 : vector<16x32xf32>
    %171 = arith.addf %158, %170 : vector<16x32xf32>
    %cst_62 = arith.constant dense<0.000000e+00> : vector<16xf32>
    %172 = vector.multi_reduction <add>, %171, %cst_62 [1] : vector<16x32xf32> to vector<16xf32>
    %173 = vector.shape_cast %172 : vector<16xf32> to vector<16x1xf32>
    %cst_63 = arith.constant 3.200000e+01 : f32
    %174 = vector.broadcast %cst_63 : f32 to vector<16x1xf32>
    %175 = arith.divf %173, %174 : vector<16x1xf32>
    %176 = vector.broadcast %175 : vector<16x1xf32> to vector<16x32xf32>
    %177 = arith.subf %171, %176 : vector<16x32xf32>
    %178 = arith.mulf %177, %177 : vector<16x32xf32>
    %cst_64 = arith.constant dense<0.000000e+00> : vector<16xf32>
    %179 = vector.multi_reduction <add>, %178, %cst_64 [1] : vector<16x32xf32> to vector<16xf32>
    %180 = vector.shape_cast %179 : vector<16xf32> to vector<16x1xf32>
    %cst_65 = arith.constant 3.200000e+01 : f32
    %181 = vector.broadcast %cst_65 : f32 to vector<16x1xf32>
    %182 = arith.divf %180, %181 : vector<16x1xf32>
    %cst_66 = arith.constant 9.99999974E-6 : f32
    %183 = vector.broadcast %cst_66 : f32 to vector<16x1xf32>
    %184 = arith.addf %182, %183 : vector<16x1xf32>
    %185 = math.rsqrt %184 : vector<16x1xf32>
    %186 = vector.broadcast %185 : vector<16x1xf32> to vector<16x32xf32>
    %187 = arith.mulf %177, %186 : vector<16x32xf32>
    %188 = vector.extract_strided_slice %4 {offsets = [7, 0], sizes = [1, 32], strides = [1, 1]} : vector<9x32xf32> to vector<1x32xf32>
    %189 = vector.broadcast %188 : vector<1x32xf32> to vector<16x32xf32>
    %190 = arith.mulf %187, %189 : vector<16x32xf32>
    %191 = vector.extract_strided_slice %4 {offsets = [8, 0], sizes = [1, 32], strides = [1, 1]} : vector<9x32xf32> to vector<1x32xf32>
    %192 = vector.broadcast %191 : vector<1x32xf32> to vector<16x32xf32>
    %193 = arith.addf %190, %192 : vector<16x32xf32>
    %194 = vector.shape_cast %193 : vector<16x32xf32> to vector<2x8x32xf32>
    %c0_67 = arith.constant 0 : index
    %c0_68 = arith.constant 0 : index
    %c0_69 = arith.constant 0 : index
    %195 = vector.load %arg15[%c0_67, %c0_68, %c0_69] : memref<2x8x32xf32, #tpu.memory_space<vmem>>, vector<2x8x32xf32>
    tpu.vector_store %arg15[%c0_67, %c0_68, %c0_69], %194 {strides = array<i32>} : memref<2x8x32xf32, #tpu.memory_space<vmem>>, vector<2x8x32xf32>,
    return
  }
  func.func @transform_0(%arg0: i32) -> (i32, i32, i32) {
    %c0_i32 = arith.constant 0 : i32
    %c0_i32_0 = arith.constant 0 : i32
    %c0_i32_1 = arith.constant 0 : i32
    return %arg0, %c0_i32, %c0_i32_0 : i32, i32, i32
  }
  func.func @transform_1(%arg0: i32) -> (i32, i32, i32) {
    %c0_i32 = arith.constant 0 : i32
    %c0_i32_0 = arith.constant 0 : i32
    %c0_i32_1 = arith.constant 0 : i32
    return %arg0, %c0_i32, %c0_i32_0 : i32, i32, i32
  }
  func.func @transform_2(%arg0: i32) -> (i32, i32) {
    %c0_i32 = arith.constant 0 : i32
    %c0_i32_0 = arith.constant 0 : i32
    %c0_i32_1 = arith.constant 0 : i32
    return %c0_i32, %c0_i32_0 : i32, i32
  }
  func.func @transform_3(%arg0: i32) -> (i32, i32) {
    %c0_i32 = arith.constant 0 : i32
    %c0_i32_0 = arith.constant 0 : i32
    %c0_i32_1 = arith.constant 0 : i32
    return %c0_i32, %c0_i32_0 : i32, i32
  }
  func.func @transform_4(%arg0: i32) -> (i32, i32) {
    %c0_i32 = arith.constant 0 : i32
    %c0_i32_0 = arith.constant 0 : i32
    %c0_i32_1 = arith.constant 0 : i32
    return %c0_i32, %c0_i32_0 : i32, i32
  }
  func.func @transform_5(%arg0: i32) -> (i32, i32) {
    %c0_i32 = arith.constant 0 : i32
    %c0_i32_0 = arith.constant 0 : i32
    %c0_i32_1 = arith.constant 0 : i32
    return %c0_i32, %c0_i32_0 : i32, i32
  }
  func.func @transform_6(%arg0: i32) -> (i32, i32) {
    %c0_i32 = arith.constant 0 : i32
    %c0_i32_0 = arith.constant 0 : i32
    %c0_i32_1 = arith.constant 0 : i32
    return %c0_i32, %c0_i32_0 : i32, i32
  }
  func.func @transform_7(%arg0: i32) -> (i32, i32) {
    %c0_i32 = arith.constant 0 : i32
    %c0_i32_0 = arith.constant 0 : i32
    %c0_i32_1 = arith.constant 0 : i32
    return %c0_i32, %c0_i32_0 : i32, i32
  }
  func.func @transform_8(%arg0: i32) -> (i32, i32) {
    %c0_i32 = arith.constant 0 : i32
    %c0_i32_0 = arith.constant 0 : i32
    %c0_i32_1 = arith.constant 0 : i32
    return %c0_i32, %c0_i32_0 : i32, i32
  }
  func.func @transform_9(%arg0: i32) -> (i32, i32) {
    %c0_i32 = arith.constant 0 : i32
    %c0_i32_0 = arith.constant 0 : i32
    %c0_i32_1 = arith.constant 0 : i32
    return %c0_i32, %c0_i32_0 : i32, i32
  }
  func.func @transform_10(%arg0: i32) -> (i32, i32) {
    %c0_i32 = arith.constant 0 : i32
    %c0_i32_0 = arith.constant 0 : i32
    %c0_i32_1 = arith.constant 0 : i32
    return %c0_i32, %c0_i32_0 : i32, i32
  }
  func.func @transform_11(%arg0: i32) -> (i32, i32) {
    %c0_i32 = arith.constant 0 : i32
    %c0_i32_0 = arith.constant 0 : i32
    %c0_i32_1 = arith.constant 0 : i32
    return %c0_i32, %c0_i32_0 : i32, i32
  }
  func.func @transform_12(%arg0: i32) -> (i32, i32) {
    %c0_i32 = arith.constant 0 : i32
    %c0_i32_0 = arith.constant 0 : i32
    %c0_i32_1 = arith.constant 0 : i32
    return %c0_i32, %c0_i32_0 : i32, i32
  }
  func.func @transform_13(%arg0: i32) -> (i32, i32) {
    %c0_i32 = arith.constant 0 : i32
    %c0_i32_0 = arith.constant 0 : i32
    %c0_i32_1 = arith.constant 0 : i32
    return %c0_i32, %c0_i32_0 : i32, i32
  }
  func.func @transform_14(%arg0: i32) -> (i32, i32, i32) {
    %c0_i32 = arith.constant 0 : i32
    %c0_i32_0 = arith.constant 0 : i32
    %c0_i32_1 = arith.constant 0 : i32
    return %arg0, %c0_i32, %c0_i32_0 : i32, i32, i32
  }
}

</mosaic_0001>

<llo_original>
// kernel: tpu_custom_call.1
$region0: #{tpu_custom_call.1}
  #allocation0 [shape = 'u32[]', space=smem, size = 0x4, offset = 0x4, fixed_abs, tag = 'smem constant byte address 0x4 - core index']
  #allocation1 [shape = 'u32[144,128]{1,0:T(1,128)}', space=vmem, size = 0x12000, scoped, tag = 'internal scratch']
  %s0 = inlined_call_operand.hbm [shape: f32[2,8,32], index: 0, kind: input, shape index: {}]
  %s1 = inlined_call_operand.hbm [shape: f32[2,8,32], index: 1, kind: input, shape index: {}]
  %s2 = inlined_call_operand.vmem [shape: f32[32,96], index: 2, kind: input, shape index: {}]
  %s3 = inlined_call_operand.hbm [shape: f32[1,96], index: 3, kind: input, shape index: {}]
  %s4 = inlined_call_operand.vmem [shape: f32[32,32], index: 4, kind: input, shape index: {}]
  %s5 = inlined_call_operand.vmem [shape: f32[32,32], index: 5, kind: input, shape index: {}]
  %s6 = inlined_call_operand.hbm [shape: f32[1,32], index: 6, kind: input, shape index: {}]
  %s7 = inlined_call_operand.hbm [shape: f32[32,64], index: 7, kind: input, shape index: {}]
  %s8 = inlined_call_operand.hbm [shape: f32[1,64], index: 8, kind: input, shape index: {}]
  %s9 = inlined_call_operand.hbm [shape: f32[32,32], index: 9, kind: input, shape index: {}]
  %s10 = inlined_call_operand.hbm [shape: f32[32,64], index: 10, kind: input, shape index: {}]
  %s11 = inlined_call_operand.vmem [shape: f32[1,64], index: 11, kind: input, shape index: {}]
  %s12 = inlined_call_operand.vmem [shape: f32[64,32], index: 12, kind: input, shape index: {}]
  %s13 = inlined_call_operand.vmem [shape: f32[9,32], index: 13, kind: input, shape index: {}]
  %s14 = inlined_call_operand.hbm [shape: f32[2,8,32], index: 14, kind: output, shape index: {}]
  %s15 = sld [smem:[#allocation0]]
  $region98: #{tpu_custom_call.1} parent=0
    _
  %s17 = ssub.s32 1, %s15
  %s18 = scalar_select 0, %s17, %s15
  $region1: #{tpu_custom_call.1} parent=0
    #allocation2 [shape = 'u8[8192]{0}', space=vmem, size = 0x2000, scoped, tag = 'input window, operand 0, single buffered']
    #allocation3 [shape = 's32[1]{0}', space=sflag, size = 0x4, scoped, tag = 'scoped memory for tpu_custom_call.1']
    #allocation4 [shape = 's32[1]{0}', space=sflag, size = 0x4, scoped, tag = 'scoped memory for tpu_custom_call.1']
    #allocation5 [shape = 'u8[8192]{0}', space=vmem, size = 0x2000, scoped, tag = 'input window, operand 1, single buffered']
    #allocation6 [shape = 's32[1]{0}', space=sflag, size = 0x4, scoped, tag = 'scoped memory for tpu_custom_call.1']
    #allocation7 [shape = 'u8[512]{0}', space=vmem, size = 0x400, scoped, tag = 'input window, operand 3, single buffered']
    #allocation8 [shape = 'u8[512]{0}', space=vmem, size = 0x400, scoped, tag = 'input window, operand 6, single buffered']
    #allocation9 [shape = 's32[1]{0}', space=sflag, size = 0x4, scoped, tag = 'scoped memory for tpu_custom_call.1']
    #allocation10 [shape = 'u8[16384]{0}', space=vmem, size = 0x4000, scoped, tag = 'input window, operand 7, single buffered']
    #allocation11 [shape = 'u8[512]{0}', space=vmem, size = 0x400, scoped, tag = 'input window, operand 8, single buffered']
    #allocation12 [shape = 's32[1]{0}', space=sflag, size = 0x4, scoped, tag = 'scoped memory for tpu_custom_call.1']
    #allocation13 [shape = 'u8[16384]{0}', space=vmem, size = 0x4000, scoped, tag = 'input window, operand 9, single buffered']
    #allocation14 [shape = 'u8[16384]{0}', space=vmem, size = 0x4000, scoped, tag = 'input window, operand 10, single buffered']
    #allocation15 [shape = 's32[1]{0}', space=sflag, size = 0x4, scoped, tag = 'scoped memory for tpu_custom_call.1']
    #allocation16 [shape = 'u8[8192]{0}', space=vmem, size = 0x2000, scoped, tag = 'output window, operand 0, single buffered']
    %19 = vsyncpa [#allocation3], 0
    %20 = vsyncpa [#allocation6], 0
    %21 = vsyncpa [#allocation9], 0
    %22 = vsyncpa [#allocation12], 0
    %23 = vsyncpa [#allocation15], 0
    %24 = vsyncpa [#allocation4], 0
    // Predicated region
    $region2: #{tpu_custom_call.1} parent=1 // pred_check
      _
    $region3: #{tpu_custom_call.1} parent=1 // pred_check_branch
      %26 = sbr.rel (0) target = $region5
    $region4: #{tpu_custom_call.1} parent=1 // pred_region
      %s28 = ssub.s32 256, 256
      %29 = vsyncadd [#allocation3], %s28
      %s30 = sshll.u32 [#allocation2], 4
      %s31 = int_to_ptr.vmem [resolvable:$true] %s30
      %36 = dma.hbm_to_vmem [thread:$0]  %s0, 256, %s31, [#allocation3], 128, 128, 8
    $region5: #{tpu_custom_call.1} parent=1 // pred_fallthru
      _
    // Predicated region
    $region6: #{tpu_custom_call.1} parent=1 // pred_check
      _
    $region7: #{tpu_custom_call.1} parent=1 // pred_check_branch
      %38 = sbr.rel (0) target = $region9
    $region8: #{tpu_custom_call.1} parent=1 // pred_region
      %s40 = ssub.s32 256, 256
      %41 = vsyncadd [#allocation6], %s40
      %s42 = sshll.u32 [#allocation5], 4
      %s43 = int_to_ptr.vmem [resolvable:$true] %s42
      %48 = dma.hbm_to_vmem [thread:$0]  %s1, 256, %s43, [#allocation6], 128, 128, 8
    $region9: #{tpu_custom_call.1} parent=1 // pred_fallthru
      _
    // Predicated region
    $region10: #{tpu_custom_call.1} parent=1 // pred_check
      _
    $region11: #{tpu_custom_call.1} parent=1 // pred_check_branch
      %50 = sbr.rel (0) target = $region13
    $region12: #{tpu_custom_call.1} parent=1 // pred_region
      _
    $region13: #{tpu_custom_call.1} parent=1 // pred_fallthru
      _
    // Predicated region
    $region14: #{tpu_custom_call.1} parent=1 // pred_check
      _
    $region15: #{tpu_custom_call.1} parent=1 // pred_check_branch
      %52 = sbr.rel (0) target = $region17
    $region16: #{tpu_custom_call.1} parent=1 // pred_region
      %s54 = ssub.s32 16, 16
      %55 = vsyncadd [#allocation6], %s54
      %s57 = sshll.u32 [#allocation7], 4
      %s58 = int_to_ptr.vmem [resolvable:$true] %s57
      %60 = dma.hbm_to_vmem [thread:$0]  %s3, 16, %s58, [#allocation6]
    $region17: #{tpu_custom_call.1} parent=1 // pred_fallthru
      _
    // Predicated region
    $region18: #{tpu_custom_call.1} parent=1 // pred_check
      _
    $region19: #{tpu_custom_call.1} parent=1 // pred_check_branch
      %62 = sbr.rel (0) target = $region21
    $region20: #{tpu_custom_call.1} parent=1 // pred_region
      _
    $region21: #{tpu_custom_call.1} parent=1 // pred_fallthru
      _
    // Predicated region
    $region22: #{tpu_custom_call.1} parent=1 // pred_check
      _
    $region23: #{tpu_custom_call.1} parent=1 // pred_check_branch
      %64 = sbr.rel (0) target = $region25
    $region24: #{tpu_custom_call.1} parent=1 // pred_region
      _
    $region25: #{tpu_custom_call.1} parent=1 // pred_fallthru
      _
    // Predicated region
    $region26: #{tpu_custom_call.1} parent=1 // pred_check
      _
    $region27: #{tpu_custom_call.1} parent=1 // pred_check_branch
      %66 = sbr.rel (0) target = $region29
    $region28: #{tpu_custom_call.1} parent=1 // pred_region
      %s68 = ssub.s32 16, 16
      %69 = vsyncadd [#allocation9], %s68
      %s71 = sshll.u32 [#allocation8], 4
      %s72 = int_to_ptr.vmem [resolvable:$true] %s71
      %74 = dma.hbm_to_vmem [thread:$0]  %s6, 16, %s72, [#allocation9]
    $region29: #{tpu_custom_call.1} parent=1 // pred_fallthru
      _
    // Predicated region
    $region30: #{tpu_custom_call.1} parent=1 // pred_check
      _
    $region31: #{tpu_custom_call.1} parent=1 // pred_check_branch
      %76 = sbr.rel (0) target = $region33
    $region32: #{tpu_custom_call.1} parent=1 // pred_region
      %s78 = ssub.s32 512, 512
      %79 = vsyncadd [#allocation9], %s78
      %s80 = sshll.u32 [#allocation10], 4
      %s81 = int_to_ptr.vmem [resolvable:$true] %s80
      %86 = dma.hbm_to_vmem [thread:$0]  %s7, 512, %s81, [#allocation9], 128, 128, 8
    $region33: #{tpu_custom_call.1} parent=1 // pred_fallthru
      _
    // Predicated region
    $region34: #{tpu_custom_call.1} parent=1 // pred_check
      _
    $region35: #{tpu_custom_call.1} parent=1 // pred_check_branch
      %88 = sbr.rel (0) target = $region37
    $region36: #{tpu_custom_call.1} parent=1 // pred_region
      %s90 = ssub.s32 16, 16
      %91 = vsyncadd [#allocation12], %s90
      %s93 = sshll.u32 [#allocation11], 4
      %s94 = int_to_ptr.vmem [resolvable:$true] %s93
      %96 = dma.hbm_to_vmem [thread:$0]  %s8, 16, %s94, [#allocation12]
    $region37: #{tpu_custom_call.1} parent=1 // pred_fallthru
      _
    // Predicated region
    $region38: #{tpu_custom_call.1} parent=1 // pred_check
      _
    $region39: #{tpu_custom_call.1} parent=1 // pred_check_branch
      %98 = sbr.rel (0) target = $region41
    $region40: #{tpu_custom_call.1} parent=1 // pred_region
      %s100 = ssub.s32 512, 512
      %101 = vsyncadd [#allocation12], %s100
      %s102 = sshll.u32 [#allocation13], 4
      %s103 = int_to_ptr.vmem [resolvable:$true] %s102
      %108 = dma.hbm_to_vmem [thread:$0]  %s9, 512, %s103, [#allocation12], 128, 128, 8
    $region41: #{tpu_custom_call.1} parent=1 // pred_fallthru
      _
    // Predicated region
    $region42: #{tpu_custom_call.1} parent=1 // pred_check
      _
    $region43: #{tpu_custom_call.1} parent=1 // pred_check_branch
      %110 = sbr.rel (0) target = $region45
    $region44: #{tpu_custom_call.1} parent=1 // pred_region
      %s112 = ssub.s32 512, 512
      %113 = vsyncadd [#allocation15], %s112
      %s114 = sshll.u32 [#allocation14], 4
      %s115 = int_to_ptr.vmem [resolvable:$true] %s114
      %120 = dma.hbm_to_vmem [thread:$0]  %s10, 512, %s115, [#allocation15], 128, 128, 8
    $region45: #{tpu_custom_call.1} parent=1 // pred_fallthru
      _
    // Predicated region
    $region46: #{tpu_custom_call.1} parent=1 // pred_check
      _
    $region47: #{tpu_custom_call.1} parent=1 // pred_check_branch
      %122 = sbr.rel (0) target = $region49
    $region48: #{tpu_custom_call.1} parent=1 // pred_region
      _
    $region49: #{tpu_custom_call.1} parent=1 // pred_fallthru
      _
    // Predicated region
    $region50: #{tpu_custom_call.1} parent=1 // pred_check
      _
    $region51: #{tpu_custom_call.1} parent=1 // pred_check_branch
      %124 = sbr.rel (0) target = $region53
    $region52: #{tpu_custom_call.1} parent=1 // pred_region
      _
    $region53: #{tpu_custom_call.1} parent=1 // pred_fallthru
      _
    // Predicated region
    $region54: #{tpu_custom_call.1} parent=1 // pred_check
      _
    $region55: #{tpu_custom_call.1} parent=1 // pred_check_branch
      %126 = sbr.rel (0) target = $region57
    $region56: #{tpu_custom_call.1} parent=1 // pred_region
      _
    $region57: #{tpu_custom_call.1} parent=1 // pred_fallthru
      _
    // Predicated region
    $region58: #{tpu_custom_call.1} parent=1 // pred_check
      _
    $region59: #{tpu_custom_call.1} parent=1 // pred_check_branch
      %128 = sbr.rel (0) target = $region61
    $region60: #{tpu_custom_call.1} parent=1 // pred_region
      %129 = dma.done [#allocation3], 256
    $region61: #{tpu_custom_call.1} parent=1 // pred_fallthru
      _
    // Predicated region
    $region62: #{tpu_custom_call.1} parent=1 // pred_check
      _
    $region63: #{tpu_custom_call.1} parent=1 // pred_check_branch
      %131 = sbr.rel (0) target = $region65
    $region64: #{tpu_custom_call.1} parent=1 // pred_region
      %132 = dma.done [#allocation6], 256
    $region65: #{tpu_custom_call.1} parent=1 // pred_fallthru
      _
    // Predicated region
    $region66: #{tpu_custom_call.1} parent=1 // pred_check
      _
    $region67: #{tpu_custom_call.1} parent=1 // pred_check_branch
      %134 = sbr.rel (0) target = $region69
    $region68: #{tpu_custom_call.1} parent=1 // pred_region
      %135 = dma.done [#allocation6], 16
    $region69: #{tpu_custom_call.1} parent=1 // pred_fallthru
      _
    // Predicated region
    $region70: #{tpu_custom_call.1} parent=1 // pred_check
      _
    $region71: #{tpu_custom_call.1} parent=1 // pred_check_branch
      %137 = sbr.rel (0) target = $region73
    $region72: #{tpu_custom_call.1} parent=1 // pred_region
      %138 = dma.done [#allocation9], 16
    $region73: #{tpu_custom_call.1} parent=1 // pred_fallthru
      _
    // Predicated region
    $region74: #{tpu_custom_call.1} parent=1 // pred_check
      _
    $region75: #{tpu_custom_call.1} parent=1 // pred_check_branch
      %140 = sbr.rel (0) target = $region77
    $region76: #{tpu_custom_call.1} parent=1 // pred_region
      %141 = dma.done [#allocation9], 512
    $region77: #{tpu_custom_call.1} parent=1 // pred_fallthru
      _
    // Predicated region
    $region78: #{tpu_custom_call.1} parent=1 // pred_check
      _
    $region79: #{tpu_custom_call.1} parent=1 // pred_check_branch
      %143 = sbr.rel (0) target = $region81
    $region80: #{tpu_custom_call.1} parent=1 // pred_region
      %144 = dma.done [#allocation12], 16
    $region81: #{tpu_custom_call.1} parent=1 // pred_fallthru
      _
    // Predicated region
    $region82: #{tpu_custom_call.1} parent=1 // pred_check
      _
    $region83: #{tpu_custom_call.1} parent=1 // pred_check_branch
      %146 = sbr.rel (0) target = $region85
    $region84: #{tpu_custom_call.1} parent=1 // pred_region
      %147 = dma.done [#allocation12], 512
    $region85: #{tpu_custom_call.1} parent=1 // pred_fallthru
      _
    // Predicated region
    $region86: #{tpu_custom_call.1} parent=1 // pred_check
      _
    $region87: #{tpu_custom_call.1} parent=1 // pred_check_branch
      %149 = sbr.rel (0) target = $region89
    $region88: #{tpu_custom_call.1} parent=1 // pred_region
      %150 = dma.done [#allocation15], 512
    $region89: #{tpu_custom_call.1} parent=1 // pred_fallthru
      _
    %v151 = vld [vmem:[#allocation2] sm:$0xff]
    %v152 = vld [vmem:[#allocation2 + $0x8] sm:$0xff]
    %v153 = vld [vmem:[#allocation5] sm:$0xff]
    %v154 = vld [vmem:[#allocation5 + $0x8] sm:$0xff]
    %v155 = vld [vmem:[%s13] sm:$0xff]
    %v156 = vld [vmem:[%s13 + $0x8] sm:$0x1]
    %v157 = vld [vmem:[%s2] sm:$0xff]
    %v158 = vld [vmem:[%s2 + $0x8] sm:$0xff]
    %v159 = vld [vmem:[%s2 + $0x10] sm:$0xff]
    %v160 = vld [vmem:[%s2 + $0x18] sm:$0xff]
    %v161 = vld [vmem:[#allocation7] sm:$0x1]
    %v163 = vlaneseq
    %v164 = vshrl.u32 %v163, 7
    %v165 = vsub.s32 0, %v164
    %v166 = vrot.slane %v161, %v165
    %vm168 = vcmask 261120
    %v170 = vsel %vm168, %v151, 0
    %v173 = vsel %vm168, %v152, 0
    %175 = vmatprep.subr.mxu0 0.0
    %176 = vmatpush1.msra.mxu0 0.0
    %177 = vmatprep.subr.mxu0 0.0
    %178 = vmatpush1.msra.mxu0 0.0
    %179 = vmatprep.subr.mxu0 0.0
    %180 = vmatpush1.msra.mxu0 0.0
    %181 = vmatprep.subr.mxu0 0.0
    %182 = vmatpush1.msra.mxu0 0.0
    %183 = vmatprep.subr.mxu0 0.0
    %184 = vmatpush1.msra.mxu0 0.0
    %185 = vmatprep.subr.mxu0 0.0
    %186 = vmatpush1.msra.mxu0 0.0
    %187 = vmatprep.subr.mxu0 0.0
    %188 = vmatpush1.msra.mxu0 0.0
    %189 = vmatprep.subr.mxu0 0.0
    %190 = vmatpush1.msra.mxu0 0.0
    %191 = vmatprep.subr.mxu0 0.0
    %192 = vmatpush1.msra.mxu0 0.0
    %193 = vmatprep.subr.mxu0 0.0
    %194 = vmatpush1.msra.mxu0 0.0
    %195 = vmatprep.subr.mxu0 0.0
    %196 = vmatpush1.msra.mxu0 0.0
    %197 = vmatprep.subr.mxu0 0.0
    %198 = vmatpush1.msra.mxu0 0.0
    %199 = vmatprep.subr.mxu0 0.0
    %200 = vmatpush1.msra.mxu0 %v160
    %201 = vmatprep.subr.mxu0 0.0
    %202 = vmatpush1.msra.mxu0 %v159
    %203 = vmatprep.subr.mxu0 0.0
    %204 = vmatpush1.msra.mxu0 %v158
    %205 = vmatprep.subr.mxu0 0.0
    %206 = vmatpush1.msra.mxu0 %v157
    %207 = vmatprep.subr.mxu0 0.0
    %208 = vmatpush2.msra.mxu0 0.0
    %209 = vmatprep.subr.mxu0 0.0
    %210 = vmatpush2.msra.mxu0 0.0
    %211 = vmatprep.subr.mxu0 0.0
    %212 = vmatpush2.msra.mxu0 0.0
    %213 = vmatprep.subr.mxu0 0.0
    %214 = vmatpush2.msra.mxu0 0.0
    %215 = vmatprep.subr.mxu0 0.0
    %216 = vmatpush2.msra.mxu0 0.0
    %217 = vmatprep.subr.mxu0 0.0
    %218 = vmatpush2.msra.mxu0 0.0
    %219 = vmatprep.subr.mxu0 0.0
    %220 = vmatpush2.msra.mxu0 0.0
    %221 = vmatprep.subr.mxu0 0.0
    %222 = vmatpush2.msra.mxu0 0.0
    %223 = vmatprep.subr.mxu0 0.0
    %224 = vmatpush2.msra.mxu0 0.0
    %225 = vmatprep.subr.mxu0 0.0
    %226 = vmatpush2.msra.mxu0 0.0
    %227 = vmatprep.subr.mxu0 0.0
    %228 = vmatpush2.msra.mxu0 0.0
    %229 = vmatprep.subr.mxu0 0.0
    %230 = vmatpush2.msra.mxu0 0.0
    %231 = vmatprep.subr.mxu0 0.0
    %232 = vmatpush2.msra.mxu0 0.0
    %233 = vmatprep.subr.mxu0 0.0
    %234 = vmatpush2.msra.mxu0 0.0
    %235 = vmatprep.subr.mxu0 0.0
    %236 = vmatpush2.msra.mxu0 0.0
    %237 = vmatprep.subr.mxu0 0.0
    %238 = vmatpush2.msra.mxu0 0.0
    %239 = vmatprep.mubr.f32.mxu0 0.0
    %240 = vmatmul.mubr.f32.gmra.mxu0 %v170
    %v241 = vpop.f32.mrf.mxu0
    %v242 = vadd.f32 %v166, %v241
    %v243 = vpop.f32.mrf.mxu0
    %244 = vmatprep.mubr.f32.mxu0 0.0
    %245 = vmatmul.mubr.f32.gmra.mxu0 %v173
    %v246 = vpop.f32.mrf.mxu0
    %v247 = vadd.f32 %v166, %v246
    %v248 = vpop.f32.mrf.mxu0
    %249 = vdwg.mxu0
    %v250 = vld [vmem:[%s4] sm:$0xff]
    %v251 = vld [vmem:[%s4 + $0x8] sm:$0xff]
    %v252 = vld [vmem:[%s4 + $0x10] sm:$0xff]
    %v253 = vld [vmem:[%s4 + $0x18] sm:$0xff]
    %255 = vrot.lane.b32.xlu0 %v242, 120
    %v256 = vpop.permute.xlu0 %255
    %257 = vrot.lane.b32.xlu0 %v242, 112
    %v258 = vpop.permute.xlu0 %257
    %259 = vrot.lane.b32.xlu0 %v242, 104
    %v260 = vpop.permute.xlu0 %259
    %261 = vrot.lane.b32.xlu0 %v242, 96
    %v262 = vpop.permute.xlu0 %261
    %263 = vrot.lane.b32.xlu0 %v256, 96
    %v264 = vpop.permute.xlu0 %263
    %265 = vrot.lane.b32.xlu0 %v258, 96
    %v266 = vpop.permute.xlu0 %265
    %267 = vrot.lane.b32.xlu0 %v260, 96
    %v268 = vpop.permute.xlu0 %267
    %273 = vxpose.xlu0.b32.start [1/16] %v262, 128
    %274 = vxpose.xlu0.b32.cont [2/16] 0.0, 128
    %275 = vxpose.xlu0.b32.cont [3/16] 0.0, 128
    %276 = vxpose.xlu0.b32.cont [4/16] 0.0, 128
    %277 = vxpose.xlu0.b32.cont [5/16] 0.0, 128
    %278 = vxpose.xlu0.b32.cont [6/16] 0.0, 128
    %279 = vxpose.xlu0.b32.cont [7/16] 0.0, 128
    %280 = vxpose.xlu0.b32.cont [8/16] 0.0, 128
    %281 = vxpose.xlu0.b32.cont [9/16] 0.0, 128
    %282 = vxpose.xlu0.b32.cont [10/16] 0.0, 128
    %283 = vxpose.xlu0.b32.cont [11/16] 0.0, 128
    %284 = vxpose.xlu0.b32.cont [12/16] 0.0, 128
    %285 = vxpose.xlu0.b32.cont [13/16] 0.0, 128
    %286 = vxpose.xlu0.b32.cont [14/16] 0.0, 128
    %287 = vxpose.xlu0.b32.cont [15/16] 0.0, 128
    %288 = vxpose.xlu0.b32.end [16/16] 0.0, 128
    %v289 = vpop.trf.xlu0
    %v290 = vpop.trf.xlu0
    %v291 = vpop.trf.xlu0
    %v292 = vpop.trf.xlu0
    %v293 = vpop.trf.xlu0
    %v294 = vpop.trf.xlu0
    %v295 = vpop.trf.xlu0
    %v296 = vpop.trf.xlu0
    %v297 = vpop.trf.xlu0
    %v298 = vpop.trf.xlu0
    %v299 = vpop.trf.xlu0
    %v300 = vpop.trf.xlu0
    %v301 = vpop.trf.xlu0
    %v302 = vpop.trf.xlu0
    %v303 = vpop.trf.xlu0
    %v304 = vpop.trf.xlu0
    %305 = vxpose.xlu0.b32.start [1/16] %v264, 128
    %306 = vxpose.xlu0.b32.cont [2/16] 0.0, 128
    %307 = vxpose.xlu0.b32.cont [3/16] 0.0, 128
    %308 = vxpose.xlu0.b32.cont [4/16] 0.0, 128
    %309 = vxpose.xlu0.b32.cont [5/16] 0.0, 128
    %310 = vxpose.xlu0.b32.cont [6/16] 0.0, 128
    %311 = vxpose.xlu0.b32.cont [7/16] 0.0, 128
    %312 = vxpose.xlu0.b32.cont [8/16] 0.0, 128
    %313 = vxpose.xlu0.b32.cont [9/16] 0.0, 128
    %314 = vxpose.xlu0.b32.cont [10/16] 0.0, 128
    %315 = vxpose.xlu0.b32.cont [11/16] 0.0, 128
    %316 = vxpose.xlu0.b32.cont [12/16] 0.0, 128
    %317 = vxpose.xlu0.b32.cont [13/16] 0.0, 128
    %318 = vxpose.xlu0.b32.cont [14/16] 0.0, 128
    %319 = vxpose.xlu0.b32.cont [15/16] 0.0, 128
    %320 = vxpose.xlu0.b32.end [16/16] 0.0, 128
    %v321 = vpop.trf.xlu0
    %v322 = vpop.trf.xlu0
    %v323 = vpop.trf.xlu0
    %v324 = vpop.trf.xlu0
    %v325 = vpop.trf.xlu0
    %v326 = vpop.trf.xlu0
    %v327 = vpop.trf.xlu0
    %v328 = vpop.trf.xlu0
    %v329 = vpop.trf.xlu0
    %v330 = vpop.trf.xlu0
    %v331 = vpop.trf.xlu0
    %v332 = vpop.trf.xlu0
    %v333 = vpop.trf.xlu0
    %v334 = vpop.trf.xlu0
    %v335 = vpop.trf.xlu0
    %v336 = vpop.trf.xlu0
    %337 = vxpose.xlu0.b32.start [1/16] %v266, 128
    %338 = vxpose.xlu0.b32.cont [2/16] 0.0, 128
    %339 = vxpose.xlu0.b32.cont [3/16] 0.0, 128
    %340 = vxpose.xlu0.b32.cont [4/16] 0.0, 128
    %341 = vxpose.xlu0.b32.cont [5/16] 0.0, 128
    %342 = vxpose.xlu0.b32.cont [6/16] 0.0, 128
    %343 = vxpose.xlu0.b32.cont [7/16] 0.0, 128
    %344 = vxpose.xlu0.b32.cont [8/16] 0.0, 128
    %345 = vxpose.xlu0.b32.cont [9/16] 0.0, 128
    %346 = vxpose.xlu0.b32.cont [10/16] 0.0, 128
    %347 = vxpose.xlu0.b32.cont [11/16] 0.0, 128
    %348 = vxpose.xlu0.b32.cont [12/16] 0.0, 128
    %349 = vxpose.xlu0.b32.cont [13/16] 0.0, 128
    %350 = vxpose.xlu0.b32.cont [14/16] 0.0, 128
    %351 = vxpose.xlu0.b32.cont [15/16] 0.0, 128
    %352 = vxpose.xlu0.b32.end [16/16] 0.0, 128
    %v353 = vpop.trf.xlu0
    %v354 = vpop.trf.xlu0
    %v355 = vpop.trf.xlu0
    %v356 = vpop.trf.xlu0
    %v357 = vpop.trf.xlu0
    %v358 = vpop.trf.xlu0
    %v359 = vpop.trf.xlu0
    %v360 = vpop.trf.xlu0
    %v361 = vpop.trf.xlu0
    %v362 = vpop.trf.xlu0
    %v363 = vpop.trf.xlu0
    %v364 = vpop.trf.xlu0
    %v365 = vpop.trf.xlu0
    %v366 = vpop.trf.xlu0
    %v367 = vpop.trf.xlu0
    %v368 = vpop.trf.xlu0
    %369 = vxpose.xlu0.b32.start [1/16] %v268, 128
    %370 = vxpose.xlu0.b32.cont [2/16] 0.0, 128
    %371 = vxpose.xlu0.b32.cont [3/16] 0.0, 128
    %372 = vxpose.xlu0.b32.cont [4/16] 0.0, 128
    %373 = vxpose.xlu0.b32.cont [5/16] 0.0, 128
    %374 = vxpose.xlu0.b32.cont [6/16] 0.0, 128
    %375 = vxpose.xlu0.b32.cont [7/16] 0.0, 128
    %376 = vxpose.xlu0.b32.cont [8/16] 0.0, 128
    %377 = vxpose.xlu0.b32.cont [9/16] 0.0, 128
    %378 = vxpose.xlu0.b32.cont [10/16] 0.0, 128
    %379 = vxpose.xlu0.b32.cont [11/16] 0.0, 128
    %380 = vxpose.xlu0.b32.cont [12/16] 0.0, 128
    %381 = vxpose.xlu0.b32.cont [13/16] 0.0, 128
    %382 = vxpose.xlu0.b32.cont [14/16] 0.0, 128
    %383 = vxpose.xlu0.b32.cont [15/16] 0.0, 128
    %384 = vxpose.xlu0.b32.end [16/16] 0.0, 128
    %v385 = vpop.trf.xlu0
    %v386 = vpop.trf.xlu0
    %v387 = vpop.trf.xlu0
    %v388 = vpop.trf.xlu0
    %v389 = vpop.trf.xlu0
    %v390 = vpop.trf.xlu0
    %v391 = vpop.trf.xlu0
    %v392 = vpop.trf.xlu0
    %v393 = vpop.trf.xlu0
    %v394 = vpop.trf.xlu0
    %v395 = vpop.trf.xlu0
    %v396 = vpop.trf.xlu0
    %v397 = vpop.trf.xlu0
    %v398 = vpop.trf.xlu0
    %v399 = vpop.trf.xlu0
    %v400 = vpop.trf.xlu0
    %vm401 = vcmask 64512
    %v402 = vsel %vm401, %v242, 0
    %404 = vmatprep.subr.mxu0 0.0
    %405 = vmatpush1.msra.mxu0 0.0
    %406 = vmatprep.subr.mxu0 0.0
    %407 = vmatpush1.msra.mxu0 0.0
    %408 = vmatprep.subr.mxu0 0.0
    %409 = vmatpush1.msra.mxu0 0.0
    %410 = vmatprep.subr.mxu0 0.0
    %411 = vmatpush1.msra.mxu0 0.0
    %412 = vmatprep.subr.mxu0 0.0
    %413 = vmatpush1.msra.mxu0 0.0
    %414 = vmatprep.subr.mxu0 0.0
    %415 = vmatpush1.msra.mxu0 0.0
    %416 = vmatprep.subr.mxu0 0.0
    %417 = vmatpush1.msra.mxu0 0.0
    %418 = vmatprep.subr.mxu0 0.0
    %419 = vmatpush1.msra.mxu0 0.0
    %420 = vmatprep.subr.mxu0 0.0
    %421 = vmatpush1.msra.mxu0 0.0
    %422 = vmatprep.subr.mxu0 0.0
    %423 = vmatpush1.msra.mxu0 0.0
    %424 = vmatprep.subr.mxu0 0.0
    %425 = vmatpush1.msra.mxu0 0.0
    %426 = vmatprep.subr.mxu0 0.0
    %427 = vmatpush1.msra.mxu0 0.0
    %428 = vmatprep.subr.mxu0 0.0
    %429 = vmatpush1.msra.mxu0 0.0
    %430 = vmatprep.subr.mxu0 0.0
    %431 = vmatpush1.msra.mxu0 0.0
    %432 = vmatprep.subr.mxu0 0.0
    %433 = vmatpush1.msra.mxu0 0.0
    %434 = vmatprep.subr.mxu0 0.0
    %435 = vmatpush1.msra.mxu0 %v289
    %436 = vmatprep.subr.mxu0 0.0
    %437 = vmatpush2.msra.mxu0 0.0
    %438 = vmatprep.subr.mxu0 0.0
    %439 = vmatpush2.msra.mxu0 0.0
    %440 = vmatprep.subr.mxu0 0.0
    %441 = vmatpush2.msra.mxu0 0.0
    %442 = vmatprep.subr.mxu0 0.0
    %443 = vmatpush2.msra.mxu0 0.0
    %444 = vmatprep.subr.mxu0 0.0
    %445 = vmatpush2.msra.mxu0 0.0
    %446 = vmatprep.subr.mxu0 0.0
    %447 = vmatpush2.msra.mxu0 0.0
    %448 = vmatprep.subr.mxu0 0.0
    %449 = vmatpush2.msra.mxu0 0.0
    %450 = vmatprep.subr.mxu0 0.0
    %451 = vmatpush2.msra.mxu0 0.0
    %452 = vmatprep.subr.mxu0 0.0
    %453 = vmatpush2.msra.mxu0 0.0
    %454 = vmatprep.subr.mxu0 0.0
    %455 = vmatpush2.msra.mxu0 0.0
    %456 = vmatprep.subr.mxu0 0.0
    %457 = vmatpush2.msra.mxu0 0.0
    %458 = vmatprep.subr.mxu0 0.0
    %459 = vmatpush2.msra.mxu0 0.0
    %460 = vmatprep.subr.mxu0 0.0
    %461 = vmatpush2.msra.mxu0 0.0
    %462 = vmatprep.subr.mxu0 0.0
    %463 = vmatpush2.msra.mxu0 0.0
    %464 = vmatprep.subr.mxu0 0.0
    %465 = vmatpush2.msra.mxu0 0.0
    %466 = vmatprep.subr.mxu0 0.0
    %467 = vmatpush2.msra.mxu0 0.0
    %468 = vmatprep.mubr.f32.mxu0 0.0
    %469 = vmatmul.mubr.f32.gmra.mxu0 %v402
    %v470 = vpop.f32.mrf.mxu0
    %v471 = vadd.f32 0.0, %v470
    %v472 = vpop.f32.mrf.mxu0
    %473 = vdwg.mxu0
    %v474 = vsel %vm401, %v256, 0
    %476 = vmatprep.subr.mxu0 0.0
    %477 = vmatpush1.msra.mxu0 0.0
    %478 = vmatprep.subr.mxu0 0.0
    %479 = vmatpush1.msra.mxu0 0.0
    %480 = vmatprep.subr.mxu0 0.0
    %481 = vmatpush1.msra.mxu0 0.0
    %482 = vmatprep.subr.mxu0 0.0
    %483 = vmatpush1.msra.mxu0 0.0
    %484 = vmatprep.subr.mxu0 0.0
    %485 = vmatpush1.msra.mxu0 0.0
    %486 = vmatprep.subr.mxu0 0.0
    %487 = vmatpush1.msra.mxu0 0.0
    %488 = vmatprep.subr.mxu0 0.0
    %489 = vmatpush1.msra.mxu0 0.0
    %490 = vmatprep.subr.mxu0 0.0
    %491 = vmatpush1.msra.mxu0 0.0
    %492 = vmatprep.subr.mxu0 0.0
    %493 = vmatpush1.msra.mxu0 0.0
    %494 = vmatprep.subr.mxu0 0.0
    %495 = vmatpush1.msra.mxu0 0.0
    %496 = vmatprep.subr.mxu0 0.0
    %497 = vmatpush1.msra.mxu0 0.0
    %498 = vmatprep.subr.mxu0 0.0
    %499 = vmatpush1.msra.mxu0 0.0
    %500 = vmatprep.subr.mxu0 0.0
    %501 = vmatpush1.msra.mxu0 0.0
    %502 = vmatprep.subr.mxu0 0.0
    %503 = vmatpush1.msra.mxu0 0.0
    %504 = vmatprep.subr.mxu0 0.0
    %505 = vmatpush1.msra.mxu0 0.0
    %506 = vmatprep.subr.mxu0 0.0
    %507 = vmatpush1.msra.mxu0 %v321
    %508 = vmatprep.subr.mxu0 0.0
    %509 = vmatpush2.msra.mxu0 0.0
    %510 = vmatprep.subr.mxu0 0.0
    %511 = vmatpush2.msra.mxu0 0.0
    %512 = vmatprep.subr.mxu0 0.0
    %513 = vmatpush2.msra.mxu0 0.0
    %514 = vmatprep.subr.mxu0 0.0
    %515 = vmatpush2.msra.mxu0 0.0
    %516 = vmatprep.subr.mxu0 0.0
    %517 = vmatpush2.msra.mxu0 0.0
    %518 = vmatprep.subr.mxu0 0.0
    %519 = vmatpush2.msra.mxu0 0.0
    %520 = vmatprep.subr.mxu0 0.0
    %521 = vmatpush2.msra.mxu0 0.0
    %522 = vmatprep.subr.mxu0 0.0
    %523 = vmatpush2.msra.mxu0 0.0
    %524 = vmatprep.subr.mxu0 0.0
    %525 = vmatpush2.msra.mxu0 0.0
    %526 = vmatprep.subr.mxu0 0.0
    %527 = vmatpush2.msra.mxu0 0.0
    %528 = vmatprep.subr.mxu0 0.0
    %529 = vmatpush2.msra.mxu0 0.0
    %530 = vmatprep.subr.mxu0 0.0
    %531 = vmatpush2.msra.mxu0 0.0
    %532 = vmatprep.subr.mxu0 0.0
    %533 = vmatpush2.msra.mxu0 0.0
    %534 = vmatprep.subr.mxu0 0.0
    %535 = vmatpush2.msra.mxu0 0.0
    %536 = vmatprep.subr.mxu0 0.0
    %537 = vmatpush2.msra.mxu0 0.0
    %538 = vmatprep.subr.mxu0 0.0
    %539 = vmatpush2.msra.mxu0 0.0
    %540 = vmatprep.mubr.f32.mxu0 0.0
    %541 = vmatmul.mubr.f32.gmra.mxu0 %v474
    %v542 = vpop.f32.mrf.mxu0
    %v543 = vadd.f32 0.0, %v542
    %v544 = vpop.f32.mrf.mxu0
    %545 = vdwg.mxu0
    %v546 = vsel %vm401, %v258, 0
    %548 = vmatprep.subr.mxu0 0.0
    %549 = vmatpush1.msra.mxu0 0.0
    %550 = vmatprep.subr.mxu0 0.0
    %551 = vmatpush1.msra.mxu0 0.0
    %552 = vmatprep.subr.mxu0 0.0
    %553 = vmatpush1.msra.mxu0 0.0
    %554 = vmatprep.subr.mxu0 0.0
    %555 = vmatpush1.msra.mxu0 0.0
    %556 = vmatprep.subr.mxu0 0.0
    %557 = vmatpush1.msra.mxu0 0.0
    %558 = vmatprep.subr.mxu0 0.0
    %559 = vmatpush1.msra.mxu0 0.0
    %560 = vmatprep.subr.mxu0 0.0
    %561 = vmatpush1.msra.mxu0 0.0
    %562 = vmatprep.subr.mxu0 0.0
    %563 = vmatpush1.msra.mxu0 0.0
    %564 = vmatprep.subr.mxu0 0.0
    %565 = vmatpush1.msra.mxu0 0.0
    %566 = vmatprep.subr.mxu0 0.0
    %567 = vmatpush1.msra.mxu0 0.0
    %568 = vmatprep.subr.mxu0 0.0
    %569 = vmatpush1.msra.mxu0 0.0
    %570 = vmatprep.subr.mxu0 0.0
    %571 = vmatpush1.msra.mxu0 0.0
    %572 = vmatprep.subr.mxu0 0.0
    %573 = vmatpush1.msra.mxu0 0.0
    %574 = vmatprep.subr.mxu0 0.0
    %575 = vmatpush1.msra.mxu0 0.0
    %576 = vmatprep.subr.mxu0 0.0
    %577 = vmatpush1.msra.mxu0 0.0
    %578 = vmatprep.subr.mxu0 0.0
    %579 = vmatpush1.msra.mxu0 %v353
    %580 = vmatprep.subr.mxu0 0.0
    %581 = vmatpush2.msra.mxu0 0.0
    %582 = vmatprep.subr.mxu0 0.0
    %583 = vmatpush2.msra.mxu0 0.0
    %584 = vmatprep.subr.mxu0 0.0
    %585 = vmatpush2.msra.mxu0 0.0
    %586 = vmatprep.subr.mxu0 0.0
    %587 = vmatpush2.msra.mxu0 0.0
    %588 = vmatprep.subr.mxu0 0.0
    %589 = vmatpush2.msra.mxu0 0.0
    %590 = vmatprep.subr.mxu0 0.0
    %591 = vmatpush2.msra.mxu0 0.0
    %592 = vmatprep.subr.mxu0 0.0
    %593 = vmatpush2.msra.mxu0 0.0
    %594 = vmatprep.subr.mxu0 0.0
    %595 = vmatpush2.msra.mxu0 0.0
    %596 = vmatprep.subr.mxu0 0.0
    %597 = vmatpush2.msra.mxu0 0.0
    %598 = vmatprep.subr.mxu0 0.0
    %599 = vmatpush2.msra.mxu0 0.0
    %600 = vmatprep.subr.mxu0 0.0
    %601 = vmatpush2.msra.mxu0 0.0
    %602 = vmatprep.subr.mxu0 0.0
    %603 = vmatpush2.msra.mxu0 0.0
    %604 = vmatprep.subr.mxu0 0.0
    %605 = vmatpush2.msra.mxu0 0.0
    %606 = vmatprep.subr.mxu0 0.0
    %607 = vmatpush2.msra.mxu0 0.0
    %608 = vmatprep.subr.mxu0 0.0
    %609 = vmatpush2.msra.mxu0 0.0
    %610 = vmatprep.subr.mxu0 0.0
    %611 = vmatpush2.msra.mxu0 0.0
    %612 = vmatprep.mubr.f32.mxu0 0.0
    %613 = vmatmul.mubr.f32.gmra.mxu0 %v546
    %v614 = vpop.f32.mrf.mxu0
    %v615 = vadd.f32 0.0, %v614
    %v616 = vpop.f32.mrf.mxu0
    %617 = vdwg.mxu0
    %v618 = vsel %vm401, %v260, 0
    %620 = vmatprep.subr.mxu0 0.0
    %621 = vmatpush1.msra.mxu0 0.0
    %622 = vmatprep.subr.mxu0 0.0
    %623 = vmatpush1.msra.mxu0 0.0
    %624 = vmatprep.subr.mxu0 0.0
    %625 = vmatpush1.msra.mxu0 0.0
    %626 = vmatprep.subr.mxu0 0.0
    %627 = vmatpush1.msra.mxu0 0.0
    %628 = vmatprep.subr.mxu0 0.0
    %629 = vmatpush1.msra.mxu0 0.0
    %630 = vmatprep.subr.mxu0 0.0
    %631 = vmatpush1.msra.mxu0 0.0
    %632 = vmatprep.subr.mxu0 0.0
    %633 = vmatpush1.msra.mxu0 0.0
    %634 = vmatprep.subr.mxu0 0.0
    %635 = vmatpush1.msra.mxu0 0.0
    %636 = vmatprep.subr.mxu0 0.0
    %637 = vmatpush1.msra.mxu0 0.0
    %638 = vmatprep.subr.mxu0 0.0
    %639 = vmatpush1.msra.mxu0 0.0
    %640 = vmatprep.subr.mxu0 0.0
    %641 = vmatpush1.msra.mxu0 0.0
    %642 = vmatprep.subr.mxu0 0.0
    %643 = vmatpush1.msra.mxu0 0.0
    %644 = vmatprep.subr.mxu0 0.0
    %645 = vmatpush1.msra.mxu0 0.0
    %646 = vmatprep.subr.mxu0 0.0
    %647 = vmatpush1.msra.mxu0 0.0
    %648 = vmatprep.subr.mxu0 0.0
    %649 = vmatpush1.msra.mxu0 0.0
    %650 = vmatprep.subr.mxu0 0.0
    %651 = vmatpush1.msra.mxu0 %v385
    %652 = vmatprep.subr.mxu0 0.0
    %653 = vmatpush2.msra.mxu0 0.0
    %654 = vmatprep.subr.mxu0 0.0
    %655 = vmatpush2.msra.mxu0 0.0
    %656 = vmatprep.subr.mxu0 0.0
    %657 = vmatpush2.msra.mxu0 0.0
    %658 = vmatprep.subr.mxu0 0.0
    %659 = vmatpush2.msra.mxu0 0.0
    %660 = vmatprep.subr.mxu0 0.0
    %661 = vmatpush2.msra.mxu0 0.0
    %662 = vmatprep.subr.mxu0 0.0
    %663 = vmatpush2.msra.mxu0 0.0
    %664 = vmatprep.subr.mxu0 0.0
    %665 = vmatpush2.msra.mxu0 0.0
    %666 = vmatprep.subr.mxu0 0.0
    %667 = vmatpush2.msra.mxu0 0.0
    %668 = vmatprep.subr.mxu0 0.0
    %669 = vmatpush2.msra.mxu0 0.0
    %670 = vmatprep.subr.mxu0 0.0
    %671 = vmatpush2.msra.mxu0 0.0
    %672 = vmatprep.subr.mxu0 0.0
    %673 = vmatpush2.msra.mxu0 0.0
    %674 = vmatprep.subr.mxu0 0.0
    %675 = vmatpush2.msra.mxu0 0.0
    %676 = vmatprep.subr.mxu0 0.0
    %677 = vmatpush2.msra.mxu0 0.0
    %678 = vmatprep.subr.mxu0 0.0
    %679 = vmatpush2.msra.mxu0 0.0
    %680 = vmatprep.subr.mxu0 0.0
    %681 = vmatpush2.msra.mxu0 0.0
    %682 = vmatprep.subr.mxu0 0.0
    %683 = vmatpush2.msra.mxu0 0.0
    %684 = vmatprep.mubr.f32.mxu0 0.0
    %685 = vmatmul.mubr.f32.gmra.mxu0 %v618
    %v686 = vpop.f32.mrf.mxu0
    %v687 = vadd.f32 0.0, %v686
    %v688 = vpop.f32.mrf.mxu0
    %689 = vdwg.mxu0
    %v690 = vsel %vm401, %v471, -inf
    %691 = vmax.xlane.f32.xlu0 %v690
    %v692 = vpop.xlane.xlu0 %691
    %v693 = vsel %vm401, %v543, -inf
    %694 = vmax.xlane.f32.xlu0 %v693
    %v695 = vpop.xlane.xlu0 %694
    %v696 = vsel %vm401, %v615, -inf
    %697 = vmax.xlane.f32.xlu0 %v696
    %v698 = vpop.xlane.xlu0 %697
    %v699 = vsel %vm401, %v687, -inf
    %700 = vmax.xlane.f32.xlu0 %v699
    %v701 = vpop.xlane.xlu0 %700
    %v702 = vsub.f32 %v471, %v692
    %v703 = vsub.f32 %v543, %v695
    %v704 = vsub.f32 %v615, %v698
    %v705 = vsub.f32 %v687, %v701
    %v706 = vmul.f32 %v702, 1.442695
    %v707 = vpow.pop %v706
    %v708 = vmul.f32 %v703, 1.442695
    %v709 = vpow.pop %v708
    %v710 = vmul.f32 %v704, 1.442695
    %v711 = vpow.pop %v710
    %v712 = vmul.f32 %v705, 1.442695
    %v713 = vpow.pop %v712
    %v714 = vsel %vm401, %v707, 0.0
    %715 = vadd.xlane.f32.xlu0 %v714
    %v716 = vpop.xlane.xlu0 %715
    %v717 = vsel %vm401, %v709, 0.0
    %718 = vadd.xlane.f32.xlu0 %v717
    %v719 = vpop.xlane.xlu0 %718
    %v720 = vsel %vm401, %v711, 0.0
    %721 = vadd.xlane.f32.xlu0 %v720
    %v722 = vpop.xlane.xlu0 %721
    %v723 = vsel %vm401, %v713, 0.0
    %724 = vadd.xlane.f32.xlu0 %v723
    %v725 = vpop.xlane.xlu0 %724
    %v726 = vrcp.pop %v716
    %v727 = vmul.f32 %v707, %v726
    %v728 = vrcp.pop %v719
    %v729 = vmul.f32 %v709, %v728
    %v730 = vrcp.pop %v722
    %v731 = vmul.f32 %v711, %v730
    %v732 = vrcp.pop %v725
    %v733 = vmul.f32 %v713, %v732
    %734 = vrot.lane.b32.xlu0 %v242, 64
    %v735 = vpop.permute.xlu0 %734
    %736 = vrot.lane.b32.xlu0 %v256, 64
    %v737 = vpop.permute.xlu0 %736
    %738 = vrot.lane.b32.xlu0 %v258, 64
    %v739 = vpop.permute.xlu0 %738
    %740 = vrot.lane.b32.xlu0 %v260, 64
    %v741 = vpop.permute.xlu0 %740
    %746 = vxpose.xlu0.b32.start [1/16] %v735, 128
    %747 = vxpose.xlu0.b32.cont [2/16] 0.0, 128
    %748 = vxpose.xlu0.b32.cont [3/16] 0.0, 128
    %749 = vxpose.xlu0.b32.cont [4/16] 0.0, 128
    %750 = vxpose.xlu0.b32.cont [5/16] 0.0, 128
    %751 = vxpose.xlu0.b32.cont [6/16] 0.0, 128
    %752 = vxpose.xlu0.b32.cont [7/16] 0.0, 128
    %753 = vxpose.xlu0.b32.cont [8/16] 0.0, 128
    %754 = vxpose.xlu0.b32.cont [9/16] 0.0, 128
    %755 = vxpose.xlu0.b32.cont [10/16] 0.0, 128
    %756 = vxpose.xlu0.b32.cont [11/16] 0.0, 128
    %757 = vxpose.xlu0.b32.cont [12/16] 0.0, 128
    %758 = vxpose.xlu0.b32.cont [13/16] 0.0, 128
    %759 = vxpose.xlu0.b32.cont [14/16] 0.0, 128
    %760 = vxpose.xlu0.b32.cont [15/16] 0.0, 128
    %761 = vxpose.xlu0.b32.end [16/16] 0.0, 128
    %v762 = vpop.trf.xlu0
    %v763 = vpop.trf.xlu0
    %v764 = vpop.trf.xlu0
    %v765 = vpop.trf.xlu0
    %v766 = vpop.trf.xlu0
    %v767 = vpop.trf.xlu0
    %v768 = vpop.trf.xlu0
    %v769 = vpop.trf.xlu0
    %v770 = vpop.trf.xlu0
    %v771 = vpop.trf.xlu0
    %v772 = vpop.trf.xlu0
    %v773 = vpop.trf.xlu0
    %v774 = vpop.trf.xlu0
    %v775 = vpop.trf.xlu0
    %v776 = vpop.trf.xlu0
    %v777 = vpop.trf.xlu0
    %778 = vxpose.xlu0.b32.start [1/16] %v737, 128
    %779 = vxpose.xlu0.b32.cont [2/16] 0.0, 128
    %780 = vxpose.xlu0.b32.cont [3/16] 0.0, 128
    %781 = vxpose.xlu0.b32.cont [4/16] 0.0, 128
    %782 = vxpose.xlu0.b32.cont [5/16] 0.0, 128
    %783 = vxpose.xlu0.b32.cont [6/16] 0.0, 128
    %784 = vxpose.xlu0.b32.cont [7/16] 0.0, 128
    %785 = vxpose.xlu0.b32.cont [8/16] 0.0, 128
    %786 = vxpose.xlu0.b32.cont [9/16] 0.0, 128
    %787 = vxpose.xlu0.b32.cont [10/16] 0.0, 128
    %788 = vxpose.xlu0.b32.cont [11/16] 0.0, 128
    %789 = vxpose.xlu0.b32.cont [12/16] 0.0, 128
    %790 = vxpose.xlu0.b32.cont [13/16] 0.0, 128
    %791 = vxpose.xlu0.b32.cont [14/16] 0.0, 128
    %792 = vxpose.xlu0.b32.cont [15/16] 0.0, 128
    %793 = vxpose.xlu0.b32.end [16/16] 0.0, 128
    %v794 = vpop.trf.xlu0
    %v795 = vpop.trf.xlu0
    %v796 = vpop.trf.xlu0
    %v797 = vpop.trf.xlu0
    %v798 = vpop.trf.xlu0
    %v799 = vpop.trf.xlu0
    %v800 = vpop.trf.xlu0
    %v801 = vpop.trf.xlu0
    %v802 = vpop.trf.xlu0
    %v803 = vpop.trf.xlu0
    %v804 = vpop.trf.xlu0
    %v805 = vpop.trf.xlu0
    %v806 = vpop.trf.xlu0
    %v807 = vpop.trf.xlu0
    %v808 = vpop.trf.xlu0
    %v809 = vpop.trf.xlu0
    %810 = vxpose.xlu0.b32.start [1/16] %v739, 128
    %811 = vxpose.xlu0.b32.cont [2/16] 0.0, 128
    %812 = vxpose.xlu0.b32.cont [3/16] 0.0, 128
    %813 = vxpose.xlu0.b32.cont [4/16] 0.0, 128
    %814 = vxpose.xlu0.b32.cont [5/16] 0.0, 128
    %815 = vxpose.xlu0.b32.cont [6/16] 0.0, 128
    %816 = vxpose.xlu0.b32.cont [7/16] 0.0, 128
    %817 = vxpose.xlu0.b32.cont [8/16] 0.0, 128
    %818 = vxpose.xlu0.b32.cont [9/16] 0.0, 128
    %819 = vxpose.xlu0.b32.cont [10/16] 0.0, 128
    %820 = vxpose.xlu0.b32.cont [11/16] 0.0, 128
    %821 = vxpose.xlu0.b32.cont [12/16] 0.0, 128
    %822 = vxpose.xlu0.b32.cont [13/16] 0.0, 128
    %823 = vxpose.xlu0.b32.cont [14/16] 0.0, 128
    %824 = vxpose.xlu0.b32.cont [15/16] 0.0, 128
    %825 = vxpose.xlu0.b32.end [16/16] 0.0, 128
    %v826 = vpop.trf.xlu0
    %v827 = vpop.trf.xlu0
    %v828 = vpop.trf.xlu0
    %v829 = vpop.trf.xlu0
    %v830 = vpop.trf.xlu0
    %v831 = vpop.trf.xlu0
    %v832 = vpop.trf.xlu0
    %v833 = vpop.trf.xlu0
    %v834 = vpop.trf.xlu0
    %v835 = vpop.trf.xlu0
    %v836 = vpop.trf.xlu0
    %v837 = vpop.trf.xlu0
    %v838 = vpop.trf.xlu0
    %v839 = vpop.trf.xlu0
    %v840 = vpop.trf.xlu0
    %v841 = vpop.trf.xlu0
    %842 = vxpose.xlu0.b32.start [1/16] %v741, 128
    %843 = vxpose.xlu0.b32.cont [2/16] 0.0, 128
    %844 = vxpose.xlu0.b32.cont [3/16] 0.0, 128
    %845 = vxpose.xlu0.b32.cont [4/16] 0.0, 128
    %846 = vxpose.xlu0.b32.cont [5/16] 0.0, 128
    %847 = vxpose.xlu0.b32.cont [6/16] 0.0, 128
    %848 = vxpose.xlu0.b32.cont [7/16] 0.0, 128
    %849 = vxpose.xlu0.b32.cont [8/16] 0.0, 128
    %850 = vxpose.xlu0.b32.cont [9/16] 0.0, 128
    %851 = vxpose.xlu0.b32.cont [10/16] 0.0, 128
    %852 = vxpose.xlu0.b32.cont [11/16] 0.0, 128
    %853 = vxpose.xlu0.b32.cont [12/16] 0.0, 128
    %854 = vxpose.xlu0.b32.cont [13/16] 0.0, 128
    %855 = vxpose.xlu0.b32.cont [14/16] 0.0, 128
    %856 = vxpose.xlu0.b32.cont [15/16] 0.0, 128
    %857 = vxpose.xlu0.b32.end [16/16] 0.0, 128
    %v858 = vpop.trf.xlu0
    %v859 = vpop.trf.xlu0
    %v860 = vpop.trf.xlu0
    %v861 = vpop.trf.xlu0
    %v862 = vpop.trf.xlu0
    %v863 = vpop.trf.xlu0
    %v864 = vpop.trf.xlu0
    %v865 = vpop.trf.xlu0
    %v866 = vpop.trf.xlu0
    %v867 = vpop.trf.xlu0
    %v868 = vpop.trf.xlu0
    %v869 = vpop.trf.xlu0
    %v870 = vpop.trf.xlu0
    %v871 = vpop.trf.xlu0
    %v872 = vpop.trf.xlu0
    %v873 = vpop.trf.xlu0
    %v875 = vsel %vm401, %v762, 0
    %v878 = vsel %vm401, %v727, 0
    %880 = vmatprep.subr.mxu0 0.0
    %881 = vmatpush1.xpose.msra.mxu0 0.0
    %882 = vmatprep.subr.mxu0 0.0
    %883 = vmatpush1.xpose.msra.mxu0 0.0
    %884 = vmatprep.subr.mxu0 0.0
    %885 = vmatpush1.xpose.msra.mxu0 0.0
    %886 = vmatprep.subr.mxu0 0.0
    %887 = vmatpush1.xpose.msra.mxu0 0.0
    %888 = vmatprep.subr.mxu0 0.0
    %889 = vmatpush1.xpose.msra.mxu0 0.0
    %890 = vmatprep.subr.mxu0 0.0
    %891 = vmatpush1.xpose.msra.mxu0 0.0
    %892 = vmatprep.subr.mxu0 0.0
    %893 = vmatpush1.xpose.msra.mxu0 0.0
    %894 = vmatprep.subr.mxu0 0.0
    %895 = vmatpush1.xpose.msra.mxu0 0.0
    %896 = vmatprep.subr.mxu0 0.0
    %897 = vmatpush1.xpose.msra.mxu0 0.0
    %898 = vmatprep.subr.mxu0 0.0
    %899 = vmatpush1.xpose.msra.mxu0 0.0
    %900 = vmatprep.subr.mxu0 0.0
    %901 = vmatpush1.xpose.msra.mxu0 0.0
    %902 = vmatprep.subr.mxu0 0.0
    %903 = vmatpush1.xpose.msra.mxu0 0.0
    %904 = vmatprep.subr.mxu0 0.0
    %905 = vmatpush1.xpose.msra.mxu0 0.0
    %906 = vmatprep.subr.mxu0 0.0
    %907 = vmatpush1.xpose.msra.mxu0 0.0
    %908 = vmatprep.subr.mxu0 0.0
    %909 = vmatpush1.xpose.msra.mxu0 0.0
    %910 = vmatprep.subr.mxu0 0.0
    %911 = vmatpush1.xpose.msra.mxu0 %v878
    %912 = vmatprep.subr.mxu0 0.0
    %913 = vmatpush2.xpose.msra.mxu0 0.0
    %914 = vmatprep.subr.mxu0 0.0
    %915 = vmatpush2.xpose.msra.mxu0 0.0
    %916 = vmatprep.subr.mxu0 0.0
    %917 = vmatpush2.xpose.msra.mxu0 0.0
    %918 = vmatprep.subr.mxu0 0.0
    %919 = vmatpush2.xpose.msra.mxu0 0.0
    %920 = vmatprep.subr.mxu0 0.0
    %921 = vmatpush2.xpose.msra.mxu0 0.0
    %922 = vmatprep.subr.mxu0 0.0
    %923 = vmatpush2.xpose.msra.mxu0 0.0
    %924 = vmatprep.subr.mxu0 0.0
    %925 = vmatpush2.xpose.msra.mxu0 0.0
    %926 = vmatprep.subr.mxu0 0.0
    %927 = vmatpush2.xpose.msra.mxu0 0.0
    %928 = vmatprep.subr.mxu0 0.0
    %929 = vmatpush2.xpose.msra.mxu0 0.0
    %930 = vmatprep.subr.mxu0 0.0
    %931 = vmatpush2.xpose.msra.mxu0 0.0
    %932 = vmatprep.subr.mxu0 0.0
    %933 = vmatpush2.xpose.msra.mxu0 0.0
    %934 = vmatprep.subr.mxu0 0.0
    %935 = vmatpush2.xpose.msra.mxu0 0.0
    %936 = vmatprep.subr.mxu0 0.0
    %937 = vmatpush2.xpose.msra.mxu0 0.0
    %938 = vmatprep.subr.mxu0 0.0
    %939 = vmatpush2.xpose.msra.mxu0 0.0
    %940 = vmatprep.subr.mxu0 0.0
    %941 = vmatpush2.xpose.msra.mxu0 0.0
    %942 = vmatprep.subr.mxu0 0.0
    %943 = vmatpush2.xpose.msra.mxu0 0.0
    %944 = vmatprep.mubr.f32.mxu0 0.0
    %945 = vmatmul.mubr.f32.gmra.mxu0 %v875
    %v946 = vpop.f32.mrf.mxu0
    %v947 = vadd.f32 0.0, %v946
    %v948 = vpop.f32.mrf.mxu0
    %949 = vdwg.mxu0
    %v951 = vsel %vm401, %v794, 0
    %v954 = vsel %vm401, %v729, 0
    %956 = vmatprep.subr.mxu0 0.0
    %957 = vmatpush1.xpose.msra.mxu0 0.0
    %958 = vmatprep.subr.mxu0 0.0
    %959 = vmatpush1.xpose.msra.mxu0 0.0
    %960 = vmatprep.subr.mxu0 0.0
    %961 = vmatpush1.xpose.msra.mxu0 0.0
    %962 = vmatprep.subr.mxu0 0.0
    %963 = vmatpush1.xpose.msra.mxu0 0.0
    %964 = vmatprep.subr.mxu0 0.0
    %965 = vmatpush1.xpose.msra.mxu0 0.0
    %966 = vmatprep.subr.mxu0 0.0
    %967 = vmatpush1.xpose.msra.mxu0 0.0
    %968 = vmatprep.subr.mxu0 0.0
    %969 = vmatpush1.xpose.msra.mxu0 0.0
    %970 = vmatprep.subr.mxu0 0.0
    %971 = vmatpush1.xpose.msra.mxu0 0.0
    %972 = vmatprep.subr.mxu0 0.0
    %973 = vmatpush1.xpose.msra.mxu0 0.0
    %974 = vmatprep.subr.mxu0 0.0
    %975 = vmatpush1.xpose.msra.mxu0 0.0
    %976 = vmatprep.subr.mxu0 0.0
    %977 = vmatpush1.xpose.msra.mxu0 0.0
    %978 = vmatprep.subr.mxu0 0.0
    %979 = vmatpush1.xpose.msra.mxu0 0.0
    %980 = vmatprep.subr.mxu0 0.0
    %981 = vmatpush1.xpose.msra.mxu0 0.0
    %982 = vmatprep.subr.mxu0 0.0
    %983 = vmatpush1.xpose.msra.mxu0 0.0
    %984 = vmatprep.subr.mxu0 0.0
    %985 = vmatpush1.xpose.msra.mxu0 0.0
    %986 = vmatprep.subr.mxu0 0.0
    %987 = vmatpush1.xpose.msra.mxu0 %v954
    %988 = vmatprep.subr.mxu0 0.0
    %989 = vmatpush2.xpose.msra.mxu0 0.0
    %990 = vmatprep.subr.mxu0 0.0
    %991 = vmatpush2.xpose.msra.mxu0 0.0
    %992 = vmatprep.subr.mxu0 0.0
    %993 = vmatpush2.xpose.msra.mxu0 0.0
    %994 = vmatprep.subr.mxu0 0.0
    %995 = vmatpush2.xpose.msra.mxu0 0.0
    %996 = vmatprep.subr.mxu0 0.0
    %997 = vmatpush2.xpose.msra.mxu0 0.0
    %998 = vmatprep.subr.mxu0 0.0
    %999 = vmatpush2.xpose.msra.mxu0 0.0
    %1000 = vmatprep.subr.mxu0 0.0
    %1001 = vmatpush2.xpose.msra.mxu0 0.0
    %1002 = vmatprep.subr.mxu0 0.0
    %1003 = vmatpush2.xpose.msra.mxu0 0.0
    %1004 = vmatprep.subr.mxu0 0.0
    %1005 = vmatpush2.xpose.msra.mxu0 0.0
    %1006 = vmatprep.subr.mxu0 0.0
    %1007 = vmatpush2.xpose.msra.mxu0 0.0
    %1008 = vmatprep.subr.mxu0 0.0
    %1009 = vmatpush2.xpose.msra.mxu0 0.0
    %1010 = vmatprep.subr.mxu0 0.0
    %1011 = vmatpush2.xpose.msra.mxu0 0.0
    %1012 = vmatprep.subr.mxu0 0.0
    %1013 = vmatpush2.xpose.msra.mxu0 0.0
    %1014 = vmatprep.subr.mxu0 0.0
    %1015 = vmatpush2.xpose.msra.mxu0 0.0
    %1016 = vmatprep.subr.mxu0 0.0
    %1017 = vmatpush2.xpose.msra.mxu0 0.0
    %1018 = vmatprep.subr.mxu0 0.0
    %1019 = vmatpush2.xpose.msra.mxu0 0.0
    %1020 = vmatprep.mubr.f32.mxu0 0.0
    %1021 = vmatmul.mubr.f32.gmra.mxu0 %v951
    %v1022 = vpop.f32.mrf.mxu0
    %v1023 = vadd.f32 0.0, %v1022
    %v1024 = vpop.f32.mrf.mxu0
    %1025 = vdwg.mxu0
    %v1027 = vsel %vm401, %v826, 0
    %v1030 = vsel %vm401, %v731, 0
    %1032 = vmatprep.subr.mxu0 0.0
    %1033 = vmatpush1.xpose.msra.mxu0 0.0
    %1034 = vmatprep.subr.mxu0 0.0
    %1035 = vmatpush1.xpose.msra.mxu0 0.0
    %1036 = vmatprep.subr.mxu0 0.0
    %1037 = vmatpush1.xpose.msra.mxu0 0.0
    %1038 = vmatprep.subr.mxu0 0.0
    %1039 = vmatpush1.xpose.msra.mxu0 0.0
    %1040 = vmatprep.subr.mxu0 0.0
    %1041 = vmatpush1.xpose.msra.mxu0 0.0
    %1042 = vmatprep.subr.mxu0 0.0
    %1043 = vmatpush1.xpose.msra.mxu0 0.0
    %1044 = vmatprep.subr.mxu0 0.0
    %1045 = vmatpush1.xpose.msra.mxu0 0.0
    %1046 = vmatprep.subr.mxu0 0.0
    %1047 = vmatpush1.xpose.msra.mxu0 0.0
    %1048 = vmatprep.subr.mxu0 0.0
    %1049 = vmatpush1.xpose.msra.mxu0 0.0
    %1050 = vmatprep.subr.mxu0 0.0
    %1051 = vmatpush1.xpose.msra.mxu0 0.0
    %1052 = vmatprep.subr.mxu0 0.0
    %1053 = vmatpush1.xpose.msra.mxu0 0.0
    %1054 = vmatprep.subr.mxu0 0.0
    %1055 = vmatpush1.xpose.msra.mxu0 0.0
    %1056 = vmatprep.subr.mxu0 0.0
    %1057 = vmatpush1.xpose.msra.mxu0 0.0
    %1058 = vmatprep.subr.mxu0 0.0
    %1059 = vmatpush1.xpose.msra.mxu0 0.0
    %1060 = vmatprep.subr.mxu0 0.0
    %1061 = vmatpush1.xpose.msra.mxu0 0.0
    %1062 = vmatprep.subr.mxu0 0.0
    %1063 = vmatpush1.xpose.msra.mxu0 %v1030
    %1064 = vmatprep.subr.mxu0 0.0
    %1065 = vmatpush2.xpose.msra.mxu0 0.0
    %1066 = vmatprep.subr.mxu0 0.0
    %1067 = vmatpush2.xpose.msra.mxu0 0.0
    %1068 = vmatprep.subr.mxu0 0.0
    %1069 = vmatpush2.xpose.msra.mxu0 0.0
    %1070 = vmatprep.subr.mxu0 0.0
    %1071 = vmatpush2.xpose.msra.mxu0 0.0
    %1072 = vmatprep.subr.mxu0 0.0
    %1073 = vmatpush2.xpose.msra.mxu0 0.0
    %1074 = vmatprep.subr.mxu0 0.0
    %1075 = vmatpush2.xpose.msra.mxu0 0.0
    %1076 = vmatprep.subr.mxu0 0.0
    %1077 = vmatpush2.xpose.msra.mxu0 0.0
    %1078 = vmatprep.subr.mxu0 0.0
    %1079 = vmatpush2.xpose.msra.mxu0 0.0
    %1080 = vmatprep.subr.mxu0 0.0
    %1081 = vmatpush2.xpose.msra.mxu0 0.0
    %1082 = vmatprep.subr.mxu0 0.0
    %1083 = vmatpush2.xpose.msra.mxu0 0.0
    %1084 = vmatprep.subr.mxu0 0.0
    %1085 = vmatpush2.xpose.msra.mxu0 0.0
    %1086 = vmatprep.subr.mxu0 0.0
    %1087 = vmatpush2.xpose.msra.mxu0 0.0
    %1088 = vmatprep.subr.mxu0 0.0
    %1089 = vmatpush2.xpose.msra.mxu0 0.0
    %1090 = vmatprep.subr.mxu0 0.0
    %1091 = vmatpush2.xpose.msra.mxu0 0.0
    %1092 = vmatprep.subr.mxu0 0.0
    %1093 = vmatpush2.xpose.msra.mxu0 0.0
    %1094 = vmatprep.subr.mxu0 0.0
    %1095 = vmatpush2.xpose.msra.mxu0 0.0
    %1096 = vmatprep.mubr.f32.mxu0 0.0
    %1097 = vmatmul.mubr.f32.gmra.mxu0 %v1027
    %v1098 = vpop.f32.mrf.mxu0
    %v1099 = vadd.f32 0.0, %v1098
    %v1100 = vpop.f32.mrf.mxu0
    %1101 = vdwg.mxu0
    %v1103 = vsel %vm401, %v858, 0
    %v1106 = vsel %vm401, %v733, 0
    %1108 = vmatprep.subr.mxu0 0.0
    %1109 = vmatpush1.xpose.msra.mxu0 0.0
    %1110 = vmatprep.subr.mxu0 0.0
    %1111 = vmatpush1.xpose.msra.mxu0 0.0
    %1112 = vmatprep.subr.mxu0 0.0
    %1113 = vmatpush1.xpose.msra.mxu0 0.0
    %1114 = vmatprep.subr.mxu0 0.0
    %1115 = vmatpush1.xpose.msra.mxu0 0.0
    %1116 = vmatprep.subr.mxu0 0.0
    %1117 = vmatpush1.xpose.msra.mxu0 0.0
    %1118 = vmatprep.subr.mxu0 0.0
    %1119 = vmatpush1.xpose.msra.mxu0 0.0
    %1120 = vmatprep.subr.mxu0 0.0
    %1121 = vmatpush1.xpose.msra.mxu0 0.0
    %1122 = vmatprep.subr.mxu0 0.0
    %1123 = vmatpush1.xpose.msra.mxu0 0.0
    %1124 = vmatprep.subr.mxu0 0.0
    %1125 = vmatpush1.xpose.msra.mxu0 0.0
    %1126 = vmatprep.subr.mxu0 0.0
    %1127 = vmatpush1.xpose.msra.mxu0 0.0
    %1128 = vmatprep.subr.mxu0 0.0
    %1129 = vmatpush1.xpose.msra.mxu0 0.0
    %1130 = vmatprep.subr.mxu0 0.0
    %1131 = vmatpush1.xpose.msra.mxu0 0.0
    %1132 = vmatprep.subr.mxu0 0.0
    %1133 = vmatpush1.xpose.msra.mxu0 0.0
    %1134 = vmatprep.subr.mxu0 0.0
    %1135 = vmatpush1.xpose.msra.mxu0 0.0
    %1136 = vmatprep.subr.mxu0 0.0
    %1137 = vmatpush1.xpose.msra.mxu0 0.0
    %1138 = vmatprep.subr.mxu0 0.0
    %1139 = vmatpush1.xpose.msra.mxu0 %v1106
    %1140 = vmatprep.subr.mxu0 0.0
    %1141 = vmatpush2.xpose.msra.mxu0 0.0
    %1142 = vmatprep.subr.mxu0 0.0
    %1143 = vmatpush2.xpose.msra.mxu0 0.0
    %1144 = vmatprep.subr.mxu0 0.0
    %1145 = vmatpush2.xpose.msra.mxu0 0.0
    %1146 = vmatprep.subr.mxu0 0.0
    %1147 = vmatpush2.xpose.msra.mxu0 0.0
    %1148 = vmatprep.subr.mxu0 0.0
    %1149 = vmatpush2.xpose.msra.mxu0 0.0
    %1150 = vmatprep.subr.mxu0 0.0
    %1151 = vmatpush2.xpose.msra.mxu0 0.0
    %1152 = vmatprep.subr.mxu0 0.0
    %1153 = vmatpush2.xpose.msra.mxu0 0.0
    %1154 = vmatprep.subr.mxu0 0.0
    %1155 = vmatpush2.xpose.msra.mxu0 0.0
    %1156 = vmatprep.subr.mxu0 0.0
    %1157 = vmatpush2.xpose.msra.mxu0 0.0
    %1158 = vmatprep.subr.mxu0 0.0
    %1159 = vmatpush2.xpose.msra.mxu0 0.0
    %1160 = vmatprep.subr.mxu0 0.0
    %1161 = vmatpush2.xpose.msra.mxu0 0.0
    %1162 = vmatprep.subr.mxu0 0.0
    %1163 = vmatpush2.xpose.msra.mxu0 0.0
    %1164 = vmatprep.subr.mxu0 0.0
    %1165 = vmatpush2.xpose.msra.mxu0 0.0
    %1166 = vmatprep.subr.mxu0 0.0
    %1167 = vmatpush2.xpose.msra.mxu0 0.0
    %1168 = vmatprep.subr.mxu0 0.0
    %1169 = vmatpush2.xpose.msra.mxu0 0.0
    %1170 = vmatprep.subr.mxu0 0.0
    %1171 = vmatpush2.xpose.msra.mxu0 0.0
    %1172 = vmatprep.mubr.f32.mxu0 0.0
    %1173 = vmatmul.mubr.f32.gmra.mxu0 %v1103
    %v1174 = vpop.f32.mrf.mxu0
    %v1175 = vadd.f32 0.0, %v1174
    %v1176 = vpop.f32.mrf.mxu0
    %1177 = vdwg.mxu0
    %1178 = vxpose.xlu0.b32.start [1/16] %v947, 128
    %1179 = vxpose.xlu0.b32.cont [2/16] 0.0, 128
    %1180 = vxpose.xlu0.b32.cont [3/16] 0.0, 128
    %1181 = vxpose.xlu0.b32.cont [4/16] 0.0, 128
    %1182 = vxpose.xlu0.b32.cont [5/16] 0.0, 128
    %1183 = vxpose.xlu0.b32.cont [6/16] 0.0, 128
    %1184 = vxpose.xlu0.b32.cont [7/16] 0.0, 128
    %1185 = vxpose.xlu0.b32.cont [8/16] 0.0, 128
    %1186 = vxpose.xlu0.b32.cont [9/16] 0.0, 128
    %1187 = vxpose.xlu0.b32.cont [10/16] 0.0, 128
    %1188 = vxpose.xlu0.b32.cont [11/16] 0.0, 128
    %1189 = vxpose.xlu0.b32.cont [12/16] 0.0, 128
    %1190 = vxpose.xlu0.b32.cont [13/16] 0.0, 128
    %1191 = vxpose.xlu0.b32.cont [14/16] 0.0, 128
    %1192 = vxpose.xlu0.b32.cont [15/16] 0.0, 128
    %1193 = vxpose.xlu0.b32.end [16/16] 0.0, 128
    %v1194 = vpop.trf.xlu0
    %v1195 = vpop.trf.xlu0
    %v1196 = vpop.trf.xlu0
    %v1197 = vpop.trf.xlu0
    %v1198 = vpop.trf.xlu0
    %v1199 = vpop.trf.xlu0
    %v1200 = vpop.trf.xlu0
    %v1201 = vpop.trf.xlu0
    %v1202 = vpop.trf.xlu0
    %v1203 = vpop.trf.xlu0
    %v1204 = vpop.trf.xlu0
    %v1205 = vpop.trf.xlu0
    %v1206 = vpop.trf.xlu0
    %v1207 = vpop.trf.xlu0
    %v1208 = vpop.trf.xlu0
    %v1209 = vpop.trf.xlu0
    %1210 = vxpose.xlu0.b32.start [1/16] %v1023, 128
    %1211 = vxpose.xlu0.b32.cont [2/16] 0.0, 128
    %1212 = vxpose.xlu0.b32.cont [3/16] 0.0, 128
    %1213 = vxpose.xlu0.b32.cont [4/16] 0.0, 128
    %1214 = vxpose.xlu0.b32.cont [5/16] 0.0, 128
    %1215 = vxpose.xlu0.b32.cont [6/16] 0.0, 128
    %1216 = vxpose.xlu0.b32.cont [7/16] 0.0, 128
    %1217 = vxpose.xlu0.b32.cont [8/16] 0.0, 128
    %1218 = vxpose.xlu0.b32.cont [9/16] 0.0, 128
    %1219 = vxpose.xlu0.b32.cont [10/16] 0.0, 128
    %1220 = vxpose.xlu0.b32.cont [11/16] 0.0, 128
    %1221 = vxpose.xlu0.b32.cont [12/16] 0.0, 128
    %1222 = vxpose.xlu0.b32.cont [13/16] 0.0, 128
    %1223 = vxpose.xlu0.b32.cont [14/16] 0.0, 128
    %1224 = vxpose.xlu0.b32.cont [15/16] 0.0, 128
    %1225 = vxpose.xlu0.b32.end [16/16] 0.0, 128
    %v1226 = vpop.trf.xlu0
    %v1227 = vpop.trf.xlu0
    %v1228 = vpop.trf.xlu0
    %v1229 = vpop.trf.xlu0
    %v1230 = vpop.trf.xlu0
    %v1231 = vpop.trf.xlu0
    %v1232 = vpop.trf.xlu0
    %v1233 = vpop.trf.xlu0
    %v1234 = vpop.trf.xlu0
    %v1235 = vpop.trf.xlu0
    %v1236 = vpop.trf.xlu0
    %v1237 = vpop.trf.xlu0
    %v1238 = vpop.trf.xlu0
    %v1239 = vpop.trf.xlu0
    %v1240 = vpop.trf.xlu0
    %v1241 = vpop.trf.xlu0
    %1242 = vxpose.xlu0.b32.start [1/16] %v1099, 128
    %1243 = vxpose.xlu0.b32.cont [2/16] 0.0, 128
    %1244 = vxpose.xlu0.b32.cont [3/16] 0.0, 128
    %1245 = vxpose.xlu0.b32.cont [4/16] 0.0, 128
    %1246 = vxpose.xlu0.b32.cont [5/16] 0.0, 128
    %1247 = vxpose.xlu0.b32.cont [6/16] 0.0, 128
    %1248 = vxpose.xlu0.b32.cont [7/16] 0.0, 128
    %1249 = vxpose.xlu0.b32.cont [8/16] 0.0, 128
    %1250 = vxpose.xlu0.b32.cont [9/16] 0.0, 128
    %1251 = vxpose.xlu0.b32.cont [10/16] 0.0, 128
    %1252 = vxpose.xlu0.b32.cont [11/16] 0.0, 128
    %1253 = vxpose.xlu0.b32.cont [12/16] 0.0, 128
    %1254 = vxpose.xlu0.b32.cont [13/16] 0.0, 128
    %1255 = vxpose.xlu0.b32.cont [14/16] 0.0, 128
    %1256 = vxpose.xlu0.b32.cont [15/16] 0.0, 128
    %1257 = vxpose.xlu0.b32.end [16/16] 0.0, 128
    %v1258 = vpop.trf.xlu0
    %v1259 = vpop.trf.xlu0
    %v1260 = vpop.trf.xlu0
    %v1261 = vpop.trf.xlu0
    %v1262 = vpop.trf.xlu0
    %v1263 = vpop.trf.xlu0
    %v1264 = vpop.trf.xlu0
    %v1265 = vpop.trf.xlu0
    %v1266 = vpop.trf.xlu0
    %v1267 = vpop.trf.xlu0
    %v1268 = vpop.trf.xlu0
    %v1269 = vpop.trf.xlu0
    %v1270 = vpop.trf.xlu0
    %v1271 = vpop.trf.xlu0
    %v1272 = vpop.trf.xlu0
    %v1273 = vpop.trf.xlu0
    %1274 = vxpose.xlu0.b32.start [1/16] %v1175, 128
    %1275 = vxpose.xlu0.b32.cont [2/16] 0.0, 128
    %1276 = vxpose.xlu0.b32.cont [3/16] 0.0, 128
    %1277 = vxpose.xlu0.b32.cont [4/16] 0.0, 128
    %1278 = vxpose.xlu0.b32.cont [5/16] 0.0, 128
    %1279 = vxpose.xlu0.b32.cont [6/16] 0.0, 128
    %1280 = vxpose.xlu0.b32.cont [7/16] 0.0, 128
    %1281 = vxpose.xlu0.b32.cont [8/16] 0.0, 128
    %1282 = vxpose.xlu0.b32.cont [9/16] 0.0, 128
    %1283 = vxpose.xlu0.b32.cont [10/16] 0.0, 128
    %1284 = vxpose.xlu0.b32.cont [11/16] 0.0, 128
    %1285 = vxpose.xlu0.b32.cont [12/16] 0.0, 128
    %1286 = vxpose.xlu0.b32.cont [13/16] 0.0, 128
    %1287 = vxpose.xlu0.b32.cont [14/16] 0.0, 128
    %1288 = vxpose.xlu0.b32.cont [15/16] 0.0, 128
    %1289 = vxpose.xlu0.b32.end [16/16] 0.0, 128
    %v1290 = vpop.trf.xlu0
    %v1291 = vpop.trf.xlu0
    %v1292 = vpop.trf.xlu0
    %v1293 = vpop.trf.xlu0
    %v1294 = vpop.trf.xlu0
    %v1295 = vpop.trf.xlu0
    %v1296 = vpop.trf.xlu0
    %v1297 = vpop.trf.xlu0
    %v1298 = vpop.trf.xlu0
    %v1299 = vpop.trf.xlu0
    %v1300 = vpop.trf.xlu0
    %v1301 = vpop.trf.xlu0
    %v1302 = vpop.trf.xlu0
    %v1303 = vpop.trf.xlu0
    %v1304 = vpop.trf.xlu0
    %v1305 = vpop.trf.xlu0
    %v1306 = vcombine.low %v1194, %v1258
    %v1307 = vcombine.high %v1194, %v1258
    %v1309 = vunpack.c.l.s4 1983009808
    %v1310 = vunpack.c.0.s8 %v1309
    %v1311 = vlaneseq
    %v1312 = vshrl.u32 %v1311, 7
    %v1313 = vsub.s32 %v1310, %v1312
    %v1314 = vrot.slane %v1306, %v1313
    %v1316 = vunpack.c.l.s4 1983009808
    %v1317 = vunpack.c.0.s8 %v1316
    %v1318 = vlaneseq
    %v1319 = vshrl.u32 %v1318, 7
    %v1320 = vsub.s32 %v1317, %v1319
    %v1321 = vrot.slane %v1307, %v1320
    %v1322 = vcombine.low %v1226, %v1290
    %v1323 = vcombine.high %v1226, %v1290
    %v1325 = vunpack.c.l.s4 1983009808
    %v1326 = vunpack.c.0.s8 %v1325
    %v1327 = vlaneseq
    %v1328 = vshrl.u32 %v1327, 7
    %v1329 = vsub.s32 %v1326, %v1328
    %v1330 = vrot.slane %v1322, %v1329
    %v1332 = vunpack.c.l.s4 1983009808
    %v1333 = vunpack.c.0.s8 %v1332
    %v1334 = vlaneseq
    %v1335 = vshrl.u32 %v1334, 7
    %v1336 = vsub.s32 %v1333, %v1335
    %v1337 = vrot.slane %v1323, %v1336
    %v1338 = vcombine.low %v1314, %v1330
    %v1339 = vcombine.high %v1314, %v1330
    %v1341 = vunpack.c.l.s4 1934713408
    %v1342 = vunpack.c.0.s8 %v1341
    %v1343 = vlaneseq
    %v1344 = vshrl.u32 %v1343, 7
    %v1345 = vsub.s32 %v1342, %v1344
    %v1346 = vrot.slane %v1338, %v1345
    %v1348 = vunpack.c.l.s4 1934713408
    %v1349 = vunpack.c.0.s8 %v1348
    %v1350 = vlaneseq
    %v1351 = vshrl.u32 %v1350, 7
    %v1352 = vsub.s32 %v1349, %v1351
    %v1353 = vrot.slane %v1339, %v1352
    %v1354 = vcombine.low %v1321, %v1337
    %v1355 = vcombine.high %v1321, %v1337
    %v1357 = vunpack.c.l.s4 1934713408
    %v1358 = vunpack.c.0.s8 %v1357
    %v1359 = vlaneseq
    %v1360 = vshrl.u32 %v1359, 7
    %v1361 = vsub.s32 %v1358, %v1360
    %v1362 = vrot.slane %v1354, %v1361
    %v1364 = vunpack.c.l.s4 1934713408
    %v1365 = vunpack.c.0.s8 %v1364
    %v1366 = vlaneseq
    %v1367 = vshrl.u32 %v1366, 7
    %v1368 = vsub.s32 %v1365, %v1367
    %v1369 = vrot.slane %v1355, %v1368
    %v1370 = vcombine.high %v1346, 0.0
    %v1371 = vcombine.high %v1353, 0.0
    %v1372 = vcombine.high %v1362, 0.0
    %v1373 = vcombine.high %v1369, 0.0
    %v1374 = vcombine.low %v1346, %v1353
    %v1376 = vunpack.c.l.s4 1983009808
    %v1377 = vunpack.c.0.s8 %v1376
    %v1378 = vlaneseq
    %v1379 = vshrl.u32 %v1378, 7
    %v1380 = vsub.s32 %v1377, %v1379
    %v1381 = vrot.slane %v1374, %v1380
    %v1382 = vcombine.low %v1370, %v1371
    %v1384 = vunpack.c.l.s4 1983009808
    %v1385 = vunpack.c.0.s8 %v1384
    %v1386 = vlaneseq
    %v1387 = vshrl.u32 %v1386, 7
    %v1388 = vsub.s32 %v1385, %v1387
    %v1389 = vrot.slane %v1382, %v1388
    %v1390 = vcombine.low %v1362, %v1369
    %v1392 = vunpack.c.l.s4 1983009808
    %v1393 = vunpack.c.0.s8 %v1392
    %v1394 = vlaneseq
    %v1395 = vshrl.u32 %v1394, 7
    %v1396 = vsub.s32 %v1393, %v1395
    %v1397 = vrot.slane %v1390, %v1396
    %v1398 = vcombine.low %v1372, %v1373
    %v1400 = vunpack.c.l.s4 1983009808
    %v1401 = vunpack.c.0.s8 %v1400
    %v1402 = vlaneseq
    %v1403 = vshrl.u32 %v1402, 7
    %v1404 = vsub.s32 %v1401, %v1403
    %v1405 = vrot.slane %v1398, %v1404
    %v1406 = vcombine.low %v1381, %v1389
    %v1407 = vcombine.high %v1381, %v1389
    %v1409 = vunpack.c.l.s4 1934713408
    %v1410 = vunpack.c.0.s8 %v1409
    %v1411 = vlaneseq
    %v1412 = vshrl.u32 %v1411, 7
    %v1413 = vsub.s32 %v1410, %v1412
    %v1414 = vrot.slane %v1406, %v1413
    %v1416 = vunpack.c.l.s4 1934713408
    %v1417 = vunpack.c.0.s8 %v1416
    %v1418 = vlaneseq
    %v1419 = vshrl.u32 %v1418, 7
    %v1420 = vsub.s32 %v1417, %v1419
    %v1421 = vrot.slane %v1407, %v1420
    %v1422 = vcombine.low %v1397, %v1405
    %v1423 = vcombine.high %v1397, %v1405
    %v1425 = vunpack.c.l.s4 1934713408
    %v1426 = vunpack.c.0.s8 %v1425
    %v1427 = vlaneseq
    %v1428 = vshrl.u32 %v1427, 7
    %v1429 = vsub.s32 %v1426, %v1428
    %v1430 = vrot.slane %v1422, %v1429
    %v1432 = vunpack.c.l.s4 1934713408
    %v1433 = vunpack.c.0.s8 %v1432
    %v1434 = vlaneseq
    %v1435 = vshrl.u32 %v1434, 7
    %v1436 = vsub.s32 %v1433, %v1435
    %v1437 = vrot.slane %v1423, %v1436
    %v1438 = vcombine.low %v1414, %v1430
    %v1439 = vcombine.high %v1414, %v1430
    %v1440 = vcombine.low %v1421, %v1437
    %v1441 = vcombine.high %v1421, %v1437
    %1443 = vrot.lane.b32.xlu0 %v1439, 8
    %v1444 = vpop.permute.xlu0 %1443
    %1447 = vrot.lane.b32.xlu0 %v1440, 16
    %v1448 = vpop.permute.xlu0 %1447
    %1451 = vrot.lane.b32.xlu0 %v1441, 24
    %v1452 = vpop.permute.xlu0 %1451
    %v1454 = vsel %vm401, %v1438, %v1444
    %vm1455 = vcmask 130048
    %v1456 = vsel %vm1455, %v1454, %v1448
    %vm1457 = vcmask 195584
    %v1458 = vsel %vm1457, %v1456, %v1452
    %1460 = vrot.lane.b32.xlu0 %v247, 120
    %v1461 = vpop.permute.xlu0 %1460
    %1462 = vrot.lane.b32.xlu0 %v247, 112
    %v1463 = vpop.permute.xlu0 %1462
    %1464 = vrot.lane.b32.xlu0 %v247, 104
    %v1465 = vpop.permute.xlu0 %1464
    %1466 = vrot.lane.b32.xlu0 %v247, 96
    %v1467 = vpop.permute.xlu0 %1466
    %1468 = vrot.lane.b32.xlu0 %v1461, 96
    %v1469 = vpop.permute.xlu0 %1468
    %1470 = vrot.lane.b32.xlu0 %v1463, 96
    %v1471 = vpop.permute.xlu0 %1470
    %1472 = vrot.lane.b32.xlu0 %v1465, 96
    %v1473 = vpop.permute.xlu0 %1472
    %1478 = vxpose.xlu0.b32.start [1/16] %v1467, 128
    %1479 = vxpose.xlu0.b32.cont [2/16] 0.0, 128
    %1480 = vxpose.xlu0.b32.cont [3/16] 0.0, 128
    %1481 = vxpose.xlu0.b32.cont [4/16] 0.0, 128
    %1482 = vxpose.xlu0.b32.cont [5/16] 0.0, 128
    %1483 = vxpose.xlu0.b32.cont [6/16] 0.0, 128
    %1484 = vxpose.xlu0.b32.cont [7/16] 0.0, 128
    %1485 = vxpose.xlu0.b32.cont [8/16] 0.0, 128
    %1486 = vxpose.xlu0.b32.cont [9/16] 0.0, 128
    %1487 = vxpose.xlu0.b32.cont [10/16] 0.0, 128
    %1488 = vxpose.xlu0.b32.cont [11/16] 0.0, 128
    %1489 = vxpose.xlu0.b32.cont [12/16] 0.0, 128
    %1490 = vxpose.xlu0.b32.cont [13/16] 0.0, 128
    %1491 = vxpose.xlu0.b32.cont [14/16] 0.0, 128
    %1492 = vxpose.xlu0.b32.cont [15/16] 0.0, 128
    %1493 = vxpose.xlu0.b32.end [16/16] 0.0, 128
    %v1494 = vpop.trf.xlu0
    %v1495 = vpop.trf.xlu0
    %v1496 = vpop.trf.xlu0
    %v1497 = vpop.trf.xlu0
    %v1498 = vpop.trf.xlu0
    %v1499 = vpop.trf.xlu0
    %v1500 = vpop.trf.xlu0
    %v1501 = vpop.trf.xlu0
    %v1502 = vpop.trf.xlu0
    %v1503 = vpop.trf.xlu0
    %v1504 = vpop.trf.xlu0
    %v1505 = vpop.trf.xlu0
    %v1506 = vpop.trf.xlu0
    %v1507 = vpop.trf.xlu0
    %v1508 = vpop.trf.xlu0
    %v1509 = vpop.trf.xlu0
    %1510 = vxpose.xlu0.b32.start [1/16] %v1469, 128
    %1511 = vxpose.xlu0.b32.cont [2/16] 0.0, 128
    %1512 = vxpose.xlu0.b32.cont [3/16] 0.0, 128
    %1513 = vxpose.xlu0.b32.cont [4/16] 0.0, 128
    %1514 = vxpose.xlu0.b32.cont [5/16] 0.0, 128
    %1515 = vxpose.xlu0.b32.cont [6/16] 0.0, 128
    %1516 = vxpose.xlu0.b32.cont [7/16] 0.0, 128
    %1517 = vxpose.xlu0.b32.cont [8/16] 0.0, 128
    %1518 = vxpose.xlu0.b32.cont [9/16] 0.0, 128
    %1519 = vxpose.xlu0.b32.cont [10/16] 0.0, 128
    %1520 = vxpose.xlu0.b32.cont [11/16] 0.0, 128
    %1521 = vxpose.xlu0.b32.cont [12/16] 0.0, 128
    %1522 = vxpose.xlu0.b32.cont [13/16] 0.0, 128
    %1523 = vxpose.xlu0.b32.cont [14/16] 0.0, 128
    %1524 = vxpose.xlu0.b32.cont [15/16] 0.0, 128
    %1525 = vxpose.xlu0.b32.end [16/16] 0.0, 128
    %v1526 = vpop.trf.xlu0
    %v1527 = vpop.trf.xlu0
    %v1528 = vpop.trf.xlu0
    %v1529 = vpop.trf.xlu0
    %v1530 = vpop.trf.xlu0
    %v1531 = vpop.trf.xlu0
    %v1532 = vpop.trf.xlu0
    %v1533 = vpop.trf.xlu0
    %v1534 = vpop.trf.xlu0
    %v1535 = vpop.trf.xlu0
    %v1536 = vpop.trf.xlu0
    %v1537 = vpop.trf.xlu0
    %v1538 = vpop.trf.xlu0
    %v1539 = vpop.trf.xlu0
    %v1540 = vpop.trf.xlu0
    %v1541 = vpop.trf.xlu0
    %1542 = vxpose.xlu0.b32.start [1/16] %v1471, 128
    %1543 = vxpose.xlu0.b32.cont [2/16] 0.0, 128
    %1544 = vxpose.xlu0.b32.cont [3/16] 0.0, 128
    %1545 = vxpose.xlu0.b32.cont [4/16] 0.0, 128
    %1546 = vxpose.xlu0.b32.cont [5/16] 0.0, 128
    %1547 = vxpose.xlu0.b32.cont [6/16] 0.0, 128
    %1548 = vxpose.xlu0.b32.cont [7/16] 0.0, 128
    %1549 = vxpose.xlu0.b32.cont [8/16] 0.0, 128
    %1550 = vxpose.xlu0.b32.cont [9/16] 0.0, 128
    %1551 = vxpose.xlu0.b32.cont [10/16] 0.0, 128
    %1552 = vxpose.xlu0.b32.cont [11/16] 0.0, 128
    %1553 = vxpose.xlu0.b32.cont [12/16] 0.0, 128
    %1554 = vxpose.xlu0.b32.cont [13/16] 0.0, 128
    %1555 = vxpose.xlu0.b32.cont [14/16] 0.0, 128
    %1556 = vxpose.xlu0.b32.cont [15/16] 0.0, 128
    %1557 = vxpose.xlu0.b32.end [16/16] 0.0, 128
    %v1558 = vpop.trf.xlu0
    %v1559 = vpop.trf.xlu0
    %v1560 = vpop.trf.xlu0
    %v1561 = vpop.trf.xlu0
    %v1562 = vpop.trf.xlu0
    %v1563 = vpop.trf.xlu0
    %v1564 = vpop.trf.xlu0
    %v1565 = vpop.trf.xlu0
    %v1566 = vpop.trf.xlu0
    %v1567 = vpop.trf.xlu0
    %v1568 = vpop.trf.xlu0
    %v1569 = vpop.trf.xlu0
    %v1570 = vpop.trf.xlu0
    %v1571 = vpop.trf.xlu0
    %v1572 = vpop.trf.xlu0
    %v1573 = vpop.trf.xlu0
    %1574 = vxpose.xlu0.b32.start [1/16] %v1473, 128
    %1575 = vxpose.xlu0.b32.cont [2/16] 0.0, 128
    %1576 = vxpose.xlu0.b32.cont [3/16] 0.0, 128
    %1577 = vxpose.xlu0.b32.cont [4/16] 0.0, 128
    %1578 = vxpose.xlu0.b32.cont [5/16] 0.0, 128
    %1579 = vxpose.xlu0.b32.cont [6/16] 0.0, 128
    %1580 = vxpose.xlu0.b32.cont [7/16] 0.0, 128
    %1581 = vxpose.xlu0.b32.cont [8/16] 0.0, 128
    %1582 = vxpose.xlu0.b32.cont [9/16] 0.0, 128
    %1583 = vxpose.xlu0.b32.cont [10/16] 0.0, 128
    %1584 = vxpose.xlu0.b32.cont [11/16] 0.0, 128
    %1585 = vxpose.xlu0.b32.cont [12/16] 0.0, 128
    %1586 = vxpose.xlu0.b32.cont [13/16] 0.0, 128
    %1587 = vxpose.xlu0.b32.cont [14/16] 0.0, 128
    %1588 = vxpose.xlu0.b32.cont [15/16] 0.0, 128
    %1589 = vxpose.xlu0.b32.end [16/16] 0.0, 128
    %v1590 = vpop.trf.xlu0
    %v1591 = vpop.trf.xlu0
    %v1592 = vpop.trf.xlu0
    %v1593 = vpop.trf.xlu0
    %v1594 = vpop.trf.xlu0
    %v1595 = vpop.trf.xlu0
    %v1596 = vpop.trf.xlu0
    %v1597 = vpop.trf.xlu0
    %v1598 = vpop.trf.xlu0
    %v1599 = vpop.trf.xlu0
    %v1600 = vpop.trf.xlu0
    %v1601 = vpop.trf.xlu0
    %v1602 = vpop.trf.xlu0
    %v1603 = vpop.trf.xlu0
    %v1604 = vpop.trf.xlu0
    %v1605 = vpop.trf.xlu0
    %v1606 = vsel %vm401, %v247, 0
    %1608 = vmatprep.subr.mxu0 0.0
    %1609 = vmatpush1.msra.mxu0 0.0
    %1610 = vmatprep.subr.mxu0 0.0
    %1611 = vmatpush1.msra.mxu0 0.0
    %1612 = vmatprep.subr.mxu0 0.0
    %1613 = vmatpush1.msra.mxu0 0.0
    %1614 = vmatprep.subr.mxu0 0.0
    %1615 = vmatpush1.msra.mxu0 0.0
    %1616 = vmatprep.subr.mxu0 0.0
    %1617 = vmatpush1.msra.mxu0 0.0
    %1618 = vmatprep.subr.mxu0 0.0
    %1619 = vmatpush1.msra.mxu0 0.0
    %1620 = vmatprep.subr.mxu0 0.0
    %1621 = vmatpush1.msra.mxu0 0.0
    %1622 = vmatprep.subr.mxu0 0.0
    %1623 = vmatpush1.msra.mxu0 0.0
    %1624 = vmatprep.subr.mxu0 0.0
    %1625 = vmatpush1.msra.mxu0 0.0
    %1626 = vmatprep.subr.mxu0 0.0
    %1627 = vmatpush1.msra.mxu0 0.0
    %1628 = vmatprep.subr.mxu0 0.0
    %1629 = vmatpush1.msra.mxu0 0.0
    %1630 = vmatprep.subr.mxu0 0.0
    %1631 = vmatpush1.msra.mxu0 0.0
    %1632 = vmatprep.subr.mxu0 0.0
    %1633 = vmatpush1.msra.mxu0 0.0
    %1634 = vmatprep.subr.mxu0 0.0
    %1635 = vmatpush1.msra.mxu0 0.0
    %1636 = vmatprep.subr.mxu0 0.0
    %1637 = vmatpush1.msra.mxu0 0.0
    %1638 = vmatprep.subr.mxu0 0.0
    %1639 = vmatpush1.msra.mxu0 %v1494
    %1640 = vmatprep.subr.mxu0 0.0
    %1641 = vmatpush2.msra.mxu0 0.0
    %1642 = vmatprep.subr.mxu0 0.0
    %1643 = vmatpush2.msra.mxu0 0.0
    %1644 = vmatprep.subr.mxu0 0.0
    %1645 = vmatpush2.msra.mxu0 0.0
    %1646 = vmatprep.subr.mxu0 0.0
    %1647 = vmatpush2.msra.mxu0 0.0
    %1648 = vmatprep.subr.mxu0 0.0
    %1649 = vmatpush2.msra.mxu0 0.0
    %1650 = vmatprep.subr.mxu0 0.0
    %1651 = vmatpush2.msra.mxu0 0.0
    %1652 = vmatprep.subr.mxu0 0.0
    %1653 = vmatpush2.msra.mxu0 0.0
    %1654 = vmatprep.subr.mxu0 0.0
    %1655 = vmatpush2.msra.mxu0 0.0
    %1656 = vmatprep.subr.mxu0 0.0
    %1657 = vmatpush2.msra.mxu0 0.0
    %1658 = vmatprep.subr.mxu0 0.0
    %1659 = vmatpush2.msra.mxu0 0.0
    %1660 = vmatprep.subr.mxu0 0.0
    %1661 = vmatpush2.msra.mxu0 0.0
    %1662 = vmatprep.subr.mxu0 0.0
    %1663 = vmatpush2.msra.mxu0 0.0
    %1664 = vmatprep.subr.mxu0 0.0
    %1665 = vmatpush2.msra.mxu0 0.0
    %1666 = vmatprep.subr.mxu0 0.0
    %1667 = vmatpush2.msra.mxu0 0.0
    %1668 = vmatprep.subr.mxu0 0.0
    %1669 = vmatpush2.msra.mxu0 0.0
    %1670 = vmatprep.subr.mxu0 0.0
    %1671 = vmatpush2.msra.mxu0 0.0
    %1672 = vmatprep.mubr.f32.mxu0 0.0
    %1673 = vmatmul.mubr.f32.gmra.mxu0 %v1606
    %v1674 = vpop.f32.mrf.mxu0
    %v1675 = vadd.f32 0.0, %v1674
    %v1676 = vpop.f32.mrf.mxu0
    %1677 = vdwg.mxu0
    %v1678 = vsel %vm401, %v1461, 0
    %1680 = vmatprep.subr.mxu0 0.0
    %1681 = vmatpush1.msra.mxu0 0.0
    %1682 = vmatprep.subr.mxu0 0.0
    %1683 = vmatpush1.msra.mxu0 0.0
    %1684 = vmatprep.subr.mxu0 0.0
    %1685 = vmatpush1.msra.mxu0 0.0
    %1686 = vmatprep.subr.mxu0 0.0
    %1687 = vmatpush1.msra.mxu0 0.0
    %1688 = vmatprep.subr.mxu0 0.0
    %1689 = vmatpush1.msra.mxu0 0.0
    %1690 = vmatprep.subr.mxu0 0.0
    %1691 = vmatpush1.msra.mxu0 0.0
    %1692 = vmatprep.subr.mxu0 0.0
    %1693 = vmatpush1.msra.mxu0 0.0
    %1694 = vmatprep.subr.mxu0 0.0
    %1695 = vmatpush1.msra.mxu0 0.0
    %1696 = vmatprep.subr.mxu0 0.0
    %1697 = vmatpush1.msra.mxu0 0.0
    %1698 = vmatprep.subr.mxu0 0.0
    %1699 = vmatpush1.msra.mxu0 0.0
    %1700 = vmatprep.subr.mxu0 0.0
    %1701 = vmatpush1.msra.mxu0 0.0
    %1702 = vmatprep.subr.mxu0 0.0
    %1703 = vmatpush1.msra.mxu0 0.0
    %1704 = vmatprep.subr.mxu0 0.0
    %1705 = vmatpush1.msra.mxu0 0.0
    %1706 = vmatprep.subr.mxu0 0.0
    %1707 = vmatpush1.msra.mxu0 0.0
    %1708 = vmatprep.subr.mxu0 0.0
    %1709 = vmatpush1.msra.mxu0 0.0
    %1710 = vmatprep.subr.mxu0 0.0
    %1711 = vmatpush1.msra.mxu0 %v1526
    %1712 = vmatprep.subr.mxu0 0.0
    %1713 = vmatpush2.msra.mxu0 0.0
    %1714 = vmatprep.subr.mxu0 0.0
    %1715 = vmatpush2.msra.mxu0 0.0
    %1716 = vmatprep.subr.mxu0 0.0
    %1717 = vmatpush2.msra.mxu0 0.0
    %1718 = vmatprep.subr.mxu0 0.0
    %1719 = vmatpush2.msra.mxu0 0.0
    %1720 = vmatprep.subr.mxu0 0.0
    %1721 = vmatpush2.msra.mxu0 0.0
    %1722 = vmatprep.subr.mxu0 0.0
    %1723 = vmatpush2.msra.mxu0 0.0
    %1724 = vmatprep.subr.mxu0 0.0
    %1725 = vmatpush2.msra.mxu0 0.0
    %1726 = vmatprep.subr.mxu0 0.0
    %1727 = vmatpush2.msra.mxu0 0.0
    %1728 = vmatprep.subr.mxu0 0.0
    %1729 = vmatpush2.msra.mxu0 0.0
    %1730 = vmatprep.subr.mxu0 0.0
    %1731 = vmatpush2.msra.mxu0 0.0
    %1732 = vmatprep.subr.mxu0 0.0
    %1733 = vmatpush2.msra.mxu0 0.0
    %1734 = vmatprep.subr.mxu0 0.0
    %1735 = vmatpush2.msra.mxu0 0.0
    %1736 = vmatprep.subr.mxu0 0.0
    %1737 = vmatpush2.msra.mxu0 0.0
    %1738 = vmatprep.subr.mxu0 0.0
    %1739 = vmatpush2.msra.mxu0 0.0
    %1740 = vmatprep.subr.mxu0 0.0
    %1741 = vmatpush2.msra.mxu0 0.0
    %1742 = vmatprep.subr.mxu0 0.0
    %1743 = vmatpush2.msra.mxu0 0.0
    %1744 = vmatprep.mubr.f32.mxu0 0.0
    %1745 = vmatmul.mubr.f32.gmra.mxu0 %v1678
    %v1746 = vpop.f32.mrf.mxu0
    %v1747 = vadd.f32 0.0, %v1746
    %v1748 = vpop.f32.mrf.mxu0
    %1749 = vdwg.mxu0
    %v1750 = vsel %vm401, %v1463, 0
    %1752 = vmatprep.subr.mxu0 0.0
    %1753 = vmatpush1.msra.mxu0 0.0
    %1754 = vmatprep.subr.mxu0 0.0
    %1755 = vmatpush1.msra.mxu0 0.0
    %1756 = vmatprep.subr.mxu0 0.0
    %1757 = vmatpush1.msra.mxu0 0.0
    %1758 = vmatprep.subr.mxu0 0.0
    %1759 = vmatpush1.msra.mxu0 0.0
    %1760 = vmatprep.subr.mxu0 0.0
    %1761 = vmatpush1.msra.mxu0 0.0
    %1762 = vmatprep.subr.mxu0 0.0
    %1763 = vmatpush1.msra.mxu0 0.0
    %1764 = vmatprep.subr.mxu0 0.0
    %1765 = vmatpush1.msra.mxu0 0.0
    %1766 = vmatprep.subr.mxu0 0.0
    %1767 = vmatpush1.msra.mxu0 0.0
    %1768 = vmatprep.subr.mxu0 0.0
    %1769 = vmatpush1.msra.mxu0 0.0
    %1770 = vmatprep.subr.mxu0 0.0
    %1771 = vmatpush1.msra.mxu0 0.0
    %1772 = vmatprep.subr.mxu0 0.0
    %1773 = vmatpush1.msra.mxu0 0.0
    %1774 = vmatprep.subr.mxu0 0.0
    %1775 = vmatpush1.msra.mxu0 0.0
    %1776 = vmatprep.subr.mxu0 0.0
    %1777 = vmatpush1.msra.mxu0 0.0
    %1778 = vmatprep.subr.mxu0 0.0
    %1779 = vmatpush1.msra.mxu0 0.0
    %1780 = vmatprep.subr.mxu0 0.0
    %1781 = vmatpush1.msra.mxu0 0.0
    %1782 = vmatprep.subr.mxu0 0.0
    %1783 = vmatpush1.msra.mxu0 %v1558
    %1784 = vmatprep.subr.mxu0 0.0
    %1785 = vmatpush2.msra.mxu0 0.0
    %1786 = vmatprep.subr.mxu0 0.0
    %1787 = vmatpush2.msra.mxu0 0.0
    %1788 = vmatprep.subr.mxu0 0.0
    %1789 = vmatpush2.msra.mxu0 0.0
    %1790 = vmatprep.subr.mxu0 0.0
    %1791 = vmatpush2.msra.mxu0 0.0
    %1792 = vmatprep.subr.mxu0 0.0
    %1793 = vmatpush2.msra.mxu0 0.0
    %1794 = vmatprep.subr.mxu0 0.0
    %1795 = vmatpush2.msra.mxu0 0.0
    %1796 = vmatprep.subr.mxu0 0.0
    %1797 = vmatpush2.msra.mxu0 0.0
    %1798 = vmatprep.subr.mxu0 0.0
    %1799 = vmatpush2.msra.mxu0 0.0
    %1800 = vmatprep.subr.mxu0 0.0
    %1801 = vmatpush2.msra.mxu0 0.0
    %1802 = vmatprep.subr.mxu0 0.0
    %1803 = vmatpush2.msra.mxu0 0.0
    %1804 = vmatprep.subr.mxu0 0.0
    %1805 = vmatpush2.msra.mxu0 0.0
    %1806 = vmatprep.subr.mxu0 0.0
    %1807 = vmatpush2.msra.mxu0 0.0
    %1808 = vmatprep.subr.mxu0 0.0
    %1809 = vmatpush2.msra.mxu0 0.0
    %1810 = vmatprep.subr.mxu0 0.0
    %1811 = vmatpush2.msra.mxu0 0.0
    %1812 = vmatprep.subr.mxu0 0.0
    %1813 = vmatpush2.msra.mxu0 0.0
    %1814 = vmatprep.subr.mxu0 0.0
    %1815 = vmatpush2.msra.mxu0 0.0
    %1816 = vmatprep.mubr.f32.mxu0 0.0
    %1817 = vmatmul.mubr.f32.gmra.mxu0 %v1750
    %v1818 = vpop.f32.mrf.mxu0
    %v1819 = vadd.f32 0.0, %v1818
    %v1820 = vpop.f32.mrf.mxu0
    %1821 = vdwg.mxu0
    %v1822 = vsel %vm401, %v1465, 0
    %1824 = vmatprep.subr.mxu0 0.0
    %1825 = vmatpush1.msra.mxu0 0.0
    %1826 = vmatprep.subr.mxu0 0.0
    %1827 = vmatpush1.msra.mxu0 0.0
    %1828 = vmatprep.subr.mxu0 0.0
    %1829 = vmatpush1.msra.mxu0 0.0
    %1830 = vmatprep.subr.mxu0 0.0
    %1831 = vmatpush1.msra.mxu0 0.0
    %1832 = vmatprep.subr.mxu0 0.0
    %1833 = vmatpush1.msra.mxu0 0.0
    %1834 = vmatprep.subr.mxu0 0.0
    %1835 = vmatpush1.msra.mxu0 0.0
    %1836 = vmatprep.subr.mxu0 0.0
    %1837 = vmatpush1.msra.mxu0 0.0
    %1838 = vmatprep.subr.mxu0 0.0
    %1839 = vmatpush1.msra.mxu0 0.0
    %1840 = vmatprep.subr.mxu0 0.0
    %1841 = vmatpush1.msra.mxu0 0.0
    %1842 = vmatprep.subr.mxu0 0.0
    %1843 = vmatpush1.msra.mxu0 0.0
    %1844 = vmatprep.subr.mxu0 0.0
    %1845 = vmatpush1.msra.mxu0 0.0
    %1846 = vmatprep.subr.mxu0 0.0
    %1847 = vmatpush1.msra.mxu0 0.0
    %1848 = vmatprep.subr.mxu0 0.0
    %1849 = vmatpush1.msra.mxu0 0.0
    %1850 = vmatprep.subr.mxu0 0.0
    %1851 = vmatpush1.msra.mxu0 0.0
    %1852 = vmatprep.subr.mxu0 0.0
    %1853 = vmatpush1.msra.mxu0 0.0
    %1854 = vmatprep.subr.mxu0 0.0
    %1855 = vmatpush1.msra.mxu0 %v1590
    %1856 = vmatprep.subr.mxu0 0.0
    %1857 = vmatpush2.msra.mxu0 0.0
    %1858 = vmatprep.subr.mxu0 0.0
    %1859 = vmatpush2.msra.mxu0 0.0
    %1860 = vmatprep.subr.mxu0 0.0
    %1861 = vmatpush2.msra.mxu0 0.0
    %1862 = vmatprep.subr.mxu0 0.0
    %1863 = vmatpush2.msra.mxu0 0.0
    %1864 = vmatprep.subr.mxu0 0.0
    %1865 = vmatpush2.msra.mxu0 0.0
    %1866 = vmatprep.subr.mxu0 0.0
    %1867 = vmatpush2.msra.mxu0 0.0
    %1868 = vmatprep.subr.mxu0 0.0
    %1869 = vmatpush2.msra.mxu0 0.0
    %1870 = vmatprep.subr.mxu0 0.0
    %1871 = vmatpush2.msra.mxu0 0.0
    %1872 = vmatprep.subr.mxu0 0.0
    %1873 = vmatpush2.msra.mxu0 0.0
    %1874 = vmatprep.subr.mxu0 0.0
    %1875 = vmatpush2.msra.mxu0 0.0
    %1876 = vmatprep.subr.mxu0 0.0
    %1877 = vmatpush2.msra.mxu0 0.0
    %1878 = vmatprep.subr.mxu0 0.0
    %1879 = vmatpush2.msra.mxu0 0.0
    %1880 = vmatprep.subr.mxu0 0.0
    %1881 = vmatpush2.msra.mxu0 0.0
    %1882 = vmatprep.subr.mxu0 0.0
    %1883 = vmatpush2.msra.mxu0 0.0
    %1884 = vmatprep.subr.mxu0 0.0
    %1885 = vmatpush2.msra.mxu0 0.0
    %1886 = vmatprep.subr.mxu0 0.0
    %1887 = vmatpush2.msra.mxu0 0.0
    %1888 = vmatprep.mubr.f32.mxu0 0.0
    %1889 = vmatmul.mubr.f32.gmra.mxu0 %v1822
    %v1890 = vpop.f32.mrf.mxu0
    %v1891 = vadd.f32 0.0, %v1890
    %v1892 = vpop.f32.mrf.mxu0
    %1893 = vdwg.mxu0
    %v1894 = vsel %vm401, %v1675, -inf
    %1895 = vmax.xlane.f32.xlu0 %v1894
    %v1896 = vpop.xlane.xlu0 %1895
    %v1897 = vsel %vm401, %v1747, -inf
    %1898 = vmax.xlane.f32.xlu0 %v1897
    %v1899 = vpop.xlane.xlu0 %1898
    %v1900 = vsel %vm401, %v1819, -inf
    %1901 = vmax.xlane.f32.xlu0 %v1900
    %v1902 = vpop.xlane.xlu0 %1901
    %v1903 = vsel %vm401, %v1891, -inf
    %1904 = vmax.xlane.f32.xlu0 %v1903
    %v1905 = vpop.xlane.xlu0 %1904
    %v1906 = vsub.f32 %v1675, %v1896
    %v1907 = vsub.f32 %v1747, %v1899
    %v1908 = vsub.f32 %v1819, %v1902
    %v1909 = vsub.f32 %v1891, %v1905
    %v1910 = vmul.f32 %v1906, 1.442695
    %v1911 = vpow.pop %v1910
    %v1912 = vmul.f32 %v1907, 1.442695
    %v1913 = vpow.pop %v1912
    %v1914 = vmul.f32 %v1908, 1.442695
    %v1915 = vpow.pop %v1914
    %v1916 = vmul.f32 %v1909, 1.442695
    %v1917 = vpow.pop %v1916
    %v1918 = vsel %vm401, %v1911, 0.0
    %1919 = vadd.xlane.f32.xlu0 %v1918
    %v1920 = vpop.xlane.xlu0 %1919
    %v1921 = vsel %vm401, %v1913, 0.0
    %1922 = vadd.xlane.f32.xlu0 %v1921
    %v1923 = vpop.xlane.xlu0 %1922
    %v1924 = vsel %vm401, %v1915, 0.0
    %1925 = vadd.xlane.f32.xlu0 %v1924
    %v1926 = vpop.xlane.xlu0 %1925
    %v1927 = vsel %vm401, %v1917, 0.0
    %1928 = vadd.xlane.f32.xlu0 %v1927
    %v1929 = vpop.xlane.xlu0 %1928
    %v1930 = vrcp.pop %v1920
    %v1931 = vmul.f32 %v1911, %v1930
    %v1932 = vrcp.pop %v1923
    %v1933 = vmul.f32 %v1913, %v1932
    %v1934 = vrcp.pop %v1926
    %v1935 = vmul.f32 %v1915, %v1934
    %v1936 = vrcp.pop %v1929
    %v1937 = vmul.f32 %v1917, %v1936
    %1938 = vrot.lane.b32.xlu0 %v247, 64
    %v1939 = vpop.permute.xlu0 %1938
    %1940 = vrot.lane.b32.xlu0 %v1461, 64
    %v1941 = vpop.permute.xlu0 %1940
    %1942 = vrot.lane.b32.xlu0 %v1463, 64
    %v1943 = vpop.permute.xlu0 %1942
    %1944 = vrot.lane.b32.xlu0 %v1465, 64
    %v1945 = vpop.permute.xlu0 %1944
    %1950 = vxpose.xlu0.b32.start [1/16] %v1939, 128
    %1951 = vxpose.xlu0.b32.cont [2/16] 0.0, 128
    %1952 = vxpose.xlu0.b32.cont [3/16] 0.0, 128
    %1953 = vxpose.xlu0.b32.cont [4/16] 0.0, 128
    %1954 = vxpose.xlu0.b32.cont [5/16] 0.0, 128
    %1955 = vxpose.xlu0.b32.cont [6/16] 0.0, 128
    %1956 = vxpose.xlu0.b32.cont [7/16] 0.0, 128
    %1957 = vxpose.xlu0.b32.cont [8/16] 0.0, 128
    %1958 = vxpose.xlu0.b32.cont [9/16] 0.0, 128
    %1959 = vxpose.xlu0.b32.cont [10/16] 0.0, 128
    %1960 = vxpose.xlu0.b32.cont [11/16] 0.0, 128
    %1961 = vxpose.xlu0.b32.cont [12/16] 0.0, 128
    %1962 = vxpose.xlu0.b32.cont [13/16] 0.0, 128
    %1963 = vxpose.xlu0.b32.cont [14/16] 0.0, 128
    %1964 = vxpose.xlu0.b32.cont [15/16] 0.0, 128
    %1965 = vxpose.xlu0.b32.end [16/16] 0.0, 128
    %v1966 = vpop.trf.xlu0
    %v1967 = vpop.trf.xlu0
    %v1968 = vpop.trf.xlu0
    %v1969 = vpop.trf.xlu0
    %v1970 = vpop.trf.xlu0
    %v1971 = vpop.trf.xlu0
    %v1972 = vpop.trf.xlu0
    %v1973 = vpop.trf.xlu0
    %v1974 = vpop.trf.xlu0
    %v1975 = vpop.trf.xlu0
    %v1976 = vpop.trf.xlu0
    %v1977 = vpop.trf.xlu0
    %v1978 = vpop.trf.xlu0
    %v1979 = vpop.trf.xlu0
    %v1980 = vpop.trf.xlu0
    %v1981 = vpop.trf.xlu0
    %1982 = vxpose.xlu0.b32.start [1/16] %v1941, 128
    %1983 = vxpose.xlu0.b32.cont [2/16] 0.0, 128
    %1984 = vxpose.xlu0.b32.cont [3/16] 0.0, 128
    %1985 = vxpose.xlu0.b32.cont [4/16] 0.0, 128
    %1986 = vxpose.xlu0.b32.cont [5/16] 0.0, 128
    %1987 = vxpose.xlu0.b32.cont [6/16] 0.0, 128
    %1988 = vxpose.xlu0.b32.cont [7/16] 0.0, 128
    %1989 = vxpose.xlu0.b32.cont [8/16] 0.0, 128
    %1990 = vxpose.xlu0.b32.cont [9/16] 0.0, 128
    %1991 = vxpose.xlu0.b32.cont [10/16] 0.0, 128
    %1992 = vxpose.xlu0.b32.cont [11/16] 0.0, 128
    %1993 = vxpose.xlu0.b32.cont [12/16] 0.0, 128
    %1994 = vxpose.xlu0.b32.cont [13/16] 0.0, 128
    %1995 = vxpose.xlu0.b32.cont [14/16] 0.0, 128
    %1996 = vxpose.xlu0.b32.cont [15/16] 0.0, 128
    %1997 = vxpose.xlu0.b32.end [16/16] 0.0, 128
    %v1998 = vpop.trf.xlu0
    %v1999 = vpop.trf.xlu0
    %v2000 = vpop.trf.xlu0
    %v2001 = vpop.trf.xlu0
    %v2002 = vpop.trf.xlu0
    %v2003 = vpop.trf.xlu0
    %v2004 = vpop.trf.xlu0
    %v2005 = vpop.trf.xlu0
    %v2006 = vpop.trf.xlu0
    %v2007 = vpop.trf.xlu0
    %v2008 = vpop.trf.xlu0
    %v2009 = vpop.trf.xlu0
    %v2010 = vpop.trf.xlu0
    %v2011 = vpop.trf.xlu0
    %v2012 = vpop.trf.xlu0
    %v2013 = vpop.trf.xlu0
    %2014 = vxpose.xlu0.b32.start [1/16] %v1943, 128
    %2015 = vxpose.xlu0.b32.cont [2/16] 0.0, 128
    %2016 = vxpose.xlu0.b32.cont [3/16] 0.0, 128
    %2017 = vxpose.xlu0.b32.cont [4/16] 0.0, 128
    %2018 = vxpose.xlu0.b32.cont [5/16] 0.0, 128
    %2019 = vxpose.xlu0.b32.cont [6/16] 0.0, 128
    %2020 = vxpose.xlu0.b32.cont [7/16] 0.0, 128
    %2021 = vxpose.xlu0.b32.cont [8/16] 0.0, 128
    %2022 = vxpose.xlu0.b32.cont [9/16] 0.0, 128
    %2023 = vxpose.xlu0.b32.cont [10/16] 0.0, 128
    %2024 = vxpose.xlu0.b32.cont [11/16] 0.0, 128
    %2025 = vxpose.xlu0.b32.cont [12/16] 0.0, 128
    %2026 = vxpose.xlu0.b32.cont [13/16] 0.0, 128
    %2027 = vxpose.xlu0.b32.cont [14/16] 0.0, 128
    %2028 = vxpose.xlu0.b32.cont [15/16] 0.0, 128
    %2029 = vxpose.xlu0.b32.end [16/16] 0.0, 128
    %v2030 = vpop.trf.xlu0
    %v2031 = vpop.trf.xlu0
    %v2032 = vpop.trf.xlu0
    %v2033 = vpop.trf.xlu0
    %v2034 = vpop.trf.xlu0
    %v2035 = vpop.trf.xlu0
    %v2036 = vpop.trf.xlu0
    %v2037 = vpop.trf.xlu0
    %v2038 = vpop.trf.xlu0
    %v2039 = vpop.trf.xlu0
    %v2040 = vpop.trf.xlu0
    %v2041 = vpop.trf.xlu0
    %v2042 = vpop.trf.xlu0
    %v2043 = vpop.trf.xlu0
    %v2044 = vpop.trf.xlu0
    %v2045 = vpop.trf.xlu0
    %2046 = vxpose.xlu0.b32.start [1/16] %v1945, 128
    %2047 = vxpose.xlu0.b32.cont [2/16] 0.0, 128
    %2048 = vxpose.xlu0.b32.cont [3/16] 0.0, 128
    %2049 = vxpose.xlu0.b32.cont [4/16] 0.0, 128
    %2050 = vxpose.xlu0.b32.cont [5/16] 0.0, 128
    %2051 = vxpose.xlu0.b32.cont [6/16] 0.0, 128
    %2052 = vxpose.xlu0.b32.cont [7/16] 0.0, 128
    %2053 = vxpose.xlu0.b32.cont [8/16] 0.0, 128
    %2054 = vxpose.xlu0.b32.cont [9/16] 0.0, 128
    %2055 = vxpose.xlu0.b32.cont [10/16] 0.0, 128
    %2056 = vxpose.xlu0.b32.cont [11/16] 0.0, 128
    %2057 = vxpose.xlu0.b32.cont [12/16] 0.0, 128
    %2058 = vxpose.xlu0.b32.cont [13/16] 0.0, 128
    %2059 = vxpose.xlu0.b32.cont [14/16] 0.0, 128
    %2060 = vxpose.xlu0.b32.cont [15/16] 0.0, 128
    %2061 = vxpose.xlu0.b32.end [16/16] 0.0, 128
    %v2062 = vpop.trf.xlu0
    %v2063 = vpop.trf.xlu0
    %v2064 = vpop.trf.xlu0
    %v2065 = vpop.trf.xlu0
    %v2066 = vpop.trf.xlu0
    %v2067 = vpop.trf.xlu0
    %v2068 = vpop.trf.xlu0
    %v2069 = vpop.trf.xlu0
    %v2070 = vpop.trf.xlu0
    %v2071 = vpop.trf.xlu0
    %v2072 = vpop.trf.xlu0
    %v2073 = vpop.trf.xlu0
    %v2074 = vpop.trf.xlu0
    %v2075 = vpop.trf.xlu0
    %v2076 = vpop.trf.xlu0
    %v2077 = vpop.trf.xlu0
    %v2079 = vsel %vm401, %v1966, 0
    %v2082 = vsel %vm401, %v1931, 0
    %2084 = vmatprep.subr.mxu0 0.0
    %2085 = vmatpush1.xpose.msra.mxu0 0.0
    %2086 = vmatprep.subr.mxu0 0.0
    %2087 = vmatpush1.xpose.msra.mxu0 0.0
    %2088 = vmatprep.subr.mxu0 0.0
    %2089 = vmatpush1.xpose.msra.mxu0 0.0
    %2090 = vmatprep.subr.mxu0 0.0
    %2091 = vmatpush1.xpose.msra.mxu0 0.0
    %2092 = vmatprep.subr.mxu0 0.0
    %2093 = vmatpush1.xpose.msra.mxu0 0.0
    %2094 = vmatprep.subr.mxu0 0.0
    %2095 = vmatpush1.xpose.msra.mxu0 0.0
    %2096 = vmatprep.subr.mxu0 0.0
    %2097 = vmatpush1.xpose.msra.mxu0 0.0
    %2098 = vmatprep.subr.mxu0 0.0
    %2099 = vmatpush1.xpose.msra.mxu0 0.0
    %2100 = vmatprep.subr.mxu0 0.0
    %2101 = vmatpush1.xpose.msra.mxu0 0.0
    %2102 = vmatprep.subr.mxu0 0.0
    %2103 = vmatpush1.xpose.msra.mxu0 0.0
    %2104 = vmatprep.subr.mxu0 0.0
    %2105 = vmatpush1.xpose.msra.mxu0 0.0
    %2106 = vmatprep.subr.mxu0 0.0
    %2107 = vmatpush1.xpose.msra.mxu0 0.0
    %2108 = vmatprep.subr.mxu0 0.0
    %2109 = vmatpush1.xpose.msra.mxu0 0.0
    %2110 = vmatprep.subr.mxu0 0.0
    %2111 = vmatpush1.xpose.msra.mxu0 0.0
    %2112 = vmatprep.subr.mxu0 0.0
    %2113 = vmatpush1.xpose.msra.mxu0 0.0
    %2114 = vmatprep.subr.mxu0 0.0
    %2115 = vmatpush1.xpose.msra.mxu0 %v2082
    %2116 = vmatprep.subr.mxu0 0.0
    %2117 = vmatpush2.xpose.msra.mxu0 0.0
    %2118 = vmatprep.subr.mxu0 0.0
    %2119 = vmatpush2.xpose.msra.mxu0 0.0
    %2120 = vmatprep.subr.mxu0 0.0
    %2121 = vmatpush2.xpose.msra.mxu0 0.0
    %2122 = vmatprep.subr.mxu0 0.0
    %2123 = vmatpush2.xpose.msra.mxu0 0.0
    %2124 = vmatprep.subr.mxu0 0.0
    %2125 = vmatpush2.xpose.msra.mxu0 0.0
    %2126 = vmatprep.subr.mxu0 0.0
    %2127 = vmatpush2.xpose.msra.mxu0 0.0
    %2128 = vmatprep.subr.mxu0 0.0
    %2129 = vmatpush2.xpose.msra.mxu0 0.0
    %2130 = vmatprep.subr.mxu0 0.0
    %2131 = vmatpush2.xpose.msra.mxu0 0.0
    %2132 = vmatprep.subr.mxu0 0.0
    %2133 = vmatpush2.xpose.msra.mxu0 0.0
    %2134 = vmatprep.subr.mxu0 0.0
    %2135 = vmatpush2.xpose.msra.mxu0 0.0
    %2136 = vmatprep.subr.mxu0 0.0
    %2137 = vmatpush2.xpose.msra.mxu0 0.0
    %2138 = vmatprep.subr.mxu0 0.0
    %2139 = vmatpush2.xpose.msra.mxu0 0.0
    %2140 = vmatprep.subr.mxu0 0.0
    %2141 = vmatpush2.xpose.msra.mxu0 0.0
    %2142 = vmatprep.subr.mxu0 0.0
    %2143 = vmatpush2.xpose.msra.mxu0 0.0
    %2144 = vmatprep.subr.mxu0 0.0
    %2145 = vmatpush2.xpose.msra.mxu0 0.0
    %2146 = vmatprep.subr.mxu0 0.0
    %2147 = vmatpush2.xpose.msra.mxu0 0.0
    %2148 = vmatprep.mubr.f32.mxu0 0.0
    %2149 = vmatmul.mubr.f32.gmra.mxu0 %v2079
    %v2150 = vpop.f32.mrf.mxu0
    %v2151 = vadd.f32 0.0, %v2150
    %v2152 = vpop.f32.mrf.mxu0
    %2153 = vdwg.mxu0
    %v2155 = vsel %vm401, %v1998, 0
    %v2158 = vsel %vm401, %v1933, 0
    %2160 = vmatprep.subr.mxu0 0.0
    %2161 = vmatpush1.xpose.msra.mxu0 0.0
    %2162 = vmatprep.subr.mxu0 0.0
    %2163 = vmatpush1.xpose.msra.mxu0 0.0
    %2164 = vmatprep.subr.mxu0 0.0
    %2165 = vmatpush1.xpose.msra.mxu0 0.0
    %2166 = vmatprep.subr.mxu0 0.0
    %2167 = vmatpush1.xpose.msra.mxu0 0.0
    %2168 = vmatprep.subr.mxu0 0.0
    %2169 = vmatpush1.xpose.msra.mxu0 0.0
    %2170 = vmatprep.subr.mxu0 0.0
    %2171 = vmatpush1.xpose.msra.mxu0 0.0
    %2172 = vmatprep.subr.mxu0 0.0
    %2173 = vmatpush1.xpose.msra.mxu0 0.0
    %2174 = vmatprep.subr.mxu0 0.0
    %2175 = vmatpush1.xpose.msra.mxu0 0.0
    %2176 = vmatprep.subr.mxu0 0.0
    %2177 = vmatpush1.xpose.msra.mxu0 0.0
    %2178 = vmatprep.subr.mxu0 0.0
    %2179 = vmatpush1.xpose.msra.mxu0 0.0
    %2180 = vmatprep.subr.mxu0 0.0
    %2181 = vmatpush1.xpose.msra.mxu0 0.0
    %2182 = vmatprep.subr.mxu0 0.0
    %2183 = vmatpush1.xpose.msra.mxu0 0.0
    %2184 = vmatprep.subr.mxu0 0.0
    %2185 = vmatpush1.xpose.msra.mxu0 0.0
    %2186 = vmatprep.subr.mxu0 0.0
    %2187 = vmatpush1.xpose.msra.mxu0 0.0
    %2188 = vmatprep.subr.mxu0 0.0
    %2189 = vmatpush1.xpose.msra.mxu0 0.0
    %2190 = vmatprep.subr.mxu0 0.0
    %2191 = vmatpush1.xpose.msra.mxu0 %v2158
    %2192 = vmatprep.subr.mxu0 0.0
    %2193 = vmatpush2.xpose.msra.mxu0 0.0
    %2194 = vmatprep.subr.mxu0 0.0
    %2195 = vmatpush2.xpose.msra.mxu0 0.0
    %2196 = vmatprep.subr.mxu0 0.0
    %2197 = vmatpush2.xpose.msra.mxu0 0.0
    %2198 = vmatprep.subr.mxu0 0.0
    %2199 = vmatpush2.xpose.msra.mxu0 0.0
    %2200 = vmatprep.subr.mxu0 0.0
    %2201 = vmatpush2.xpose.msra.mxu0 0.0
    %2202 = vmatprep.subr.mxu0 0.0
    %2203 = vmatpush2.xpose.msra.mxu0 0.0
    %2204 = vmatprep.subr.mxu0 0.0
    %2205 = vmatpush2.xpose.msra.mxu0 0.0
    %2206 = vmatprep.subr.mxu0 0.0
    %2207 = vmatpush2.xpose.msra.mxu0 0.0
    %2208 = vmatprep.subr.mxu0 0.0
    %2209 = vmatpush2.xpose.msra.mxu0 0.0
    %2210 = vmatprep.subr.mxu0 0.0
    %2211 = vmatpush2.xpose.msra.mxu0 0.0
    %2212 = vmatprep.subr.mxu0 0.0
    %2213 = vmatpush2.xpose.msra.mxu0 0.0
    %2214 = vmatprep.subr.mxu0 0.0
    %2215 = vmatpush2.xpose.msra.mxu0 0.0
    %2216 = vmatprep.subr.mxu0 0.0
    %2217 = vmatpush2.xpose.msra.mxu0 0.0
    %2218 = vmatprep.subr.mxu0 0.0
    %2219 = vmatpush2.xpose.msra.mxu0 0.0
    %2220 = vmatprep.subr.mxu0 0.0
    %2221 = vmatpush2.xpose.msra.mxu0 0.0
    %2222 = vmatprep.subr.mxu0 0.0
    %2223 = vmatpush2.xpose.msra.mxu0 0.0
    %2224 = vmatprep.mubr.f32.mxu0 0.0
    %2225 = vmatmul.mubr.f32.gmra.mxu0 %v2155
    %v2226 = vpop.f32.mrf.mxu0
    %v2227 = vadd.f32 0.0, %v2226
    %v2228 = vpop.f32.mrf.mxu0
    %2229 = vdwg.mxu0
    %v2231 = vsel %vm401, %v2030, 0
    %v2234 = vsel %vm401, %v1935, 0
    %2236 = vmatprep.subr.mxu0 0.0
    %2237 = vmatpush1.xpose.msra.mxu0 0.0
    %2238 = vmatprep.subr.mxu0 0.0
    %2239 = vmatpush1.xpose.msra.mxu0 0.0
    %2240 = vmatprep.subr.mxu0 0.0
    %2241 = vmatpush1.xpose.msra.mxu0 0.0
    %2242 = vmatprep.subr.mxu0 0.0
    %2243 = vmatpush1.xpose.msra.mxu0 0.0
    %2244 = vmatprep.subr.mxu0 0.0
    %2245 = vmatpush1.xpose.msra.mxu0 0.0
    %2246 = vmatprep.subr.mxu0 0.0
    %2247 = vmatpush1.xpose.msra.mxu0 0.0
    %2248 = vmatprep.subr.mxu0 0.0
    %2249 = vmatpush1.xpose.msra.mxu0 0.0
    %2250 = vmatprep.subr.mxu0 0.0
    %2251 = vmatpush1.xpose.msra.mxu0 0.0
    %2252 = vmatprep.subr.mxu0 0.0
    %2253 = vmatpush1.xpose.msra.mxu0 0.0
    %2254 = vmatprep.subr.mxu0 0.0
    %2255 = vmatpush1.xpose.msra.mxu0 0.0
    %2256 = vmatprep.subr.mxu0 0.0
    %2257 = vmatpush1.xpose.msra.mxu0 0.0
    %2258 = vmatprep.subr.mxu0 0.0
    %2259 = vmatpush1.xpose.msra.mxu0 0.0
    %2260 = vmatprep.subr.mxu0 0.0
    %2261 = vmatpush1.xpose.msra.mxu0 0.0
    %2262 = vmatprep.subr.mxu0 0.0
    %2263 = vmatpush1.xpose.msra.mxu0 0.0
    %2264 = vmatprep.subr.mxu0 0.0
    %2265 = vmatpush1.xpose.msra.mxu0 0.0
    %2266 = vmatprep.subr.mxu0 0.0
    %2267 = vmatpush1.xpose.msra.mxu0 %v2234
    %2268 = vmatprep.subr.mxu0 0.0
    %2269 = vmatpush2.xpose.msra.mxu0 0.0
    %2270 = vmatprep.subr.mxu0 0.0
    %2271 = vmatpush2.xpose.msra.mxu0 0.0
    %2272 = vmatprep.subr.mxu0 0.0
    %2273 = vmatpush2.xpose.msra.mxu0 0.0
    %2274 = vmatprep.subr.mxu0 0.0
    %2275 = vmatpush2.xpose.msra.mxu0 0.0
    %2276 = vmatprep.subr.mxu0 0.0
    %2277 = vmatpush2.xpose.msra.mxu0 0.0
    %2278 = vmatprep.subr.mxu0 0.0
    %2279 = vmatpush2.xpose.msra.mxu0 0.0
    %2280 = vmatprep.subr.mxu0 0.0
    %2281 = vmatpush2.xpose.msra.mxu0 0.0
    %2282 = vmatprep.subr.mxu0 0.0
    %2283 = vmatpush2.xpose.msra.mxu0 0.0
    %2284 = vmatprep.subr.mxu0 0.0
    %2285 = vmatpush2.xpose.msra.mxu0 0.0
    %2286 = vmatprep.subr.mxu0 0.0
    %2287 = vmatpush2.xpose.msra.mxu0 0.0
    %2288 = vmatprep.subr.mxu0 0.0
    %2289 = vmatpush2.xpose.msra.mxu0 0.0
    %2290 = vmatprep.subr.mxu0 0.0
    %2291 = vmatpush2.xpose.msra.mxu0 0.0
    %2292 = vmatprep.subr.mxu0 0.0
    %2293 = vmatpush2.xpose.msra.mxu0 0.0
    %2294 = vmatprep.subr.mxu0 0.0
    %2295 = vmatpush2.xpose.msra.mxu0 0.0
    %2296 = vmatprep.subr.mxu0 0.0
    %2297 = vmatpush2.xpose.msra.mxu0 0.0
    %2298 = vmatprep.subr.mxu0 0.0
    %2299 = vmatpush2.xpose.msra.mxu0 0.0
    %2300 = vmatprep.mubr.f32.mxu0 0.0
    %2301 = vmatmul.mubr.f32.gmra.mxu0 %v2231
    %v2302 = vpop.f32.mrf.mxu0
    %v2303 = vadd.f32 0.0, %v2302
    %v2304 = vpop.f32.mrf.mxu0
    %2305 = vdwg.mxu0
    %v2307 = vsel %vm401, %v2062, 0
    %v2310 = vsel %vm401, %v1937, 0
    %2312 = vmatprep.subr.mxu0 0.0
    %2313 = vmatpush1.xpose.msra.mxu0 0.0
    %2314 = vmatprep.subr.mxu0 0.0
    %2315 = vmatpush1.xpose.msra.mxu0 0.0
    %2316 = vmatprep.subr.mxu0 0.0
    %2317 = vmatpush1.xpose.msra.mxu0 0.0
    %2318 = vmatprep.subr.mxu0 0.0
    %2319 = vmatpush1.xpose.msra.mxu0 0.0
    %2320 = vmatprep.subr.mxu0 0.0
    %2321 = vmatpush1.xpose.msra.mxu0 0.0
    %2322 = vmatprep.subr.mxu0 0.0
    %2323 = vmatpush1.xpose.msra.mxu0 0.0
    %2324 = vmatprep.subr.mxu0 0.0
    %2325 = vmatpush1.xpose.msra.mxu0 0.0
    %2326 = vmatprep.subr.mxu0 0.0
    %2327 = vmatpush1.xpose.msra.mxu0 0.0
    %2328 = vmatprep.subr.mxu0 0.0
    %2329 = vmatpush1.xpose.msra.mxu0 0.0
    %2330 = vmatprep.subr.mxu0 0.0
    %2331 = vmatpush1.xpose.msra.mxu0 0.0
    %2332 = vmatprep.subr.mxu0 0.0
    %2333 = vmatpush1.xpose.msra.mxu0 0.0
    %2334 = vmatprep.subr.mxu0 0.0
    %2335 = vmatpush1.xpose.msra.mxu0 0.0
    %2336 = vmatprep.subr.mxu0 0.0
    %2337 = vmatpush1.xpose.msra.mxu0 0.0
    %2338 = vmatprep.subr.mxu0 0.0
    %2339 = vmatpush1.xpose.msra.mxu0 0.0
    %2340 = vmatprep.subr.mxu0 0.0
    %2341 = vmatpush1.xpose.msra.mxu0 0.0
    %2342 = vmatprep.subr.mxu0 0.0
    %2343 = vmatpush1.xpose.msra.mxu0 %v2310
    %2344 = vmatprep.subr.mxu0 0.0
    %2345 = vmatpush2.xpose.msra.mxu0 0.0
    %2346 = vmatprep.subr.mxu0 0.0
    %2347 = vmatpush2.xpose.msra.mxu0 0.0
    %2348 = vmatprep.subr.mxu0 0.0
    %2349 = vmatpush2.xpose.msra.mxu0 0.0
    %2350 = vmatprep.subr.mxu0 0.0
    %2351 = vmatpush2.xpose.msra.mxu0 0.0
    %2352 = vmatprep.subr.mxu0 0.0
    %2353 = vmatpush2.xpose.msra.mxu0 0.0
    %2354 = vmatprep.subr.mxu0 0.0
    %2355 = vmatpush2.xpose.msra.mxu0 0.0
    %2356 = vmatprep.subr.mxu0 0.0
    %2357 = vmatpush2.xpose.msra.mxu0 0.0
    %2358 = vmatprep.subr.mxu0 0.0
    %2359 = vmatpush2.xpose.msra.mxu0 0.0
    %2360 = vmatprep.subr.mxu0 0.0
    %2361 = vmatpush2.xpose.msra.mxu0 0.0
    %2362 = vmatprep.subr.mxu0 0.0
    %2363 = vmatpush2.xpose.msra.mxu0 0.0
    %2364 = vmatprep.subr.mxu0 0.0
    %2365 = vmatpush2.xpose.msra.mxu0 0.0
    %2366 = vmatprep.subr.mxu0 0.0
    %2367 = vmatpush2.xpose.msra.mxu0 0.0
    %2368 = vmatprep.subr.mxu0 0.0
    %2369 = vmatpush2.xpose.msra.mxu0 0.0
    %2370 = vmatprep.subr.mxu0 0.0
    %2371 = vmatpush2.xpose.msra.mxu0 0.0
    %2372 = vmatprep.subr.mxu0 0.0
    %2373 = vmatpush2.xpose.msra.mxu0 0.0
    %2374 = vmatprep.subr.mxu0 0.0
    %2375 = vmatpush2.xpose.msra.mxu0 0.0
    %2376 = vmatprep.mubr.f32.mxu0 0.0
    %2377 = vmatmul.mubr.f32.gmra.mxu0 %v2307
    %v2378 = vpop.f32.mrf.mxu0
    %v2379 = vadd.f32 0.0, %v2378
    %v2380 = vpop.f32.mrf.mxu0
    %2381 = vdwg.mxu0
    %2382 = vxpose.xlu0.b32.start [1/16] %v2151, 128
    %2383 = vxpose.xlu0.b32.cont [2/16] 0.0, 128
    %2384 = vxpose.xlu0.b32.cont [3/16] 0.0, 128
    %2385 = vxpose.xlu0.b32.cont [4/16] 0.0, 128
    %2386 = vxpose.xlu0.b32.cont [5/16] 0.0, 128
    %2387 = vxpose.xlu0.b32.cont [6/16] 0.0, 128
    %2388 = vxpose.xlu0.b32.cont [7/16] 0.0, 128
    %2389 = vxpose.xlu0.b32.cont [8/16] 0.0, 128
    %2390 = vxpose.xlu0.b32.cont [9/16] 0.0, 128
    %2391 = vxpose.xlu0.b32.cont [10/16] 0.0, 128
    %2392 = vxpose.xlu0.b32.cont [11/16] 0.0, 128
    %2393 = vxpose.xlu0.b32.cont [12/16] 0.0, 128
    %2394 = vxpose.xlu0.b32.cont [13/16] 0.0, 128
    %2395 = vxpose.xlu0.b32.cont [14/16] 0.0, 128
    %2396 = vxpose.xlu0.b32.cont [15/16] 0.0, 128
    %2397 = vxpose.xlu0.b32.end [16/16] 0.0, 128
    %v2398 = vpop.trf.xlu0
    %v2399 = vpop.trf.xlu0
    %v2400 = vpop.trf.xlu0
    %v2401 = vpop.trf.xlu0
    %v2402 = vpop.trf.xlu0
    %v2403 = vpop.trf.xlu0
    %v2404 = vpop.trf.xlu0
    %v2405 = vpop.trf.xlu0
    %v2406 = vpop.trf.xlu0
    %v2407 = vpop.trf.xlu0
    %v2408 = vpop.trf.xlu0
    %v2409 = vpop.trf.xlu0
    %v2410 = vpop.trf.xlu0
    %v2411 = vpop.trf.xlu0
    %v2412 = vpop.trf.xlu0
    %v2413 = vpop.trf.xlu0
    %2414 = vxpose.xlu0.b32.start [1/16] %v2227, 128
    %2415 = vxpose.xlu0.b32.cont [2/16] 0.0, 128
    %2416 = vxpose.xlu0.b32.cont [3/16] 0.0, 128
    %2417 = vxpose.xlu0.b32.cont [4/16] 0.0, 128
    %2418 = vxpose.xlu0.b32.cont [5/16] 0.0, 128
    %2419 = vxpose.xlu0.b32.cont [6/16] 0.0, 128
    %2420 = vxpose.xlu0.b32.cont [7/16] 0.0, 128
    %2421 = vxpose.xlu0.b32.cont [8/16] 0.0, 128
    %2422 = vxpose.xlu0.b32.cont [9/16] 0.0, 128
    %2423 = vxpose.xlu0.b32.cont [10/16] 0.0, 128
    %2424 = vxpose.xlu0.b32.cont [11/16] 0.0, 128
    %2425 = vxpose.xlu0.b32.cont [12/16] 0.0, 128
    %2426 = vxpose.xlu0.b32.cont [13/16] 0.0, 128
    %2427 = vxpose.xlu0.b32.cont [14/16] 0.0, 128
    %2428 = vxpose.xlu0.b32.cont [15/16] 0.0, 128
    %2429 = vxpose.xlu0.b32.end [16/16] 0.0, 128
    %v2430 = vpop.trf.xlu0
    %v2431 = vpop.trf.xlu0
    %v2432 = vpop.trf.xlu0
    %v2433 = vpop.trf.xlu0
    %v2434 = vpop.trf.xlu0
    %v2435 = vpop.trf.xlu0
    %v2436 = vpop.trf.xlu0
    %v2437 = vpop.trf.xlu0
    %v2438 = vpop.trf.xlu0
    %v2439 = vpop.trf.xlu0
    %v2440 = vpop.trf.xlu0
    %v2441 = vpop.trf.xlu0
    %v2442 = vpop.trf.xlu0
    %v2443 = vpop.trf.xlu0
    %v2444 = vpop.trf.xlu0
    %v2445 = vpop.trf.xlu0
    %2446 = vxpose.xlu0.b32.start [1/16] %v2303, 128
    %2447 = vxpose.xlu0.b32.cont [2/16] 0.0, 128
    %2448 = vxpose.xlu0.b32.cont [3/16] 0.0, 128
    %2449 = vxpose.xlu0.b32.cont [4/16] 0.0, 128
    %2450 = vxpose.xlu0.b32.cont [5/16] 0.0, 128
    %2451 = vxpose.xlu0.b32.cont [6/16] 0.0, 128
    %2452 = vxpose.xlu0.b32.cont [7/16] 0.0, 128
    %2453 = vxpose.xlu0.b32.cont [8/16] 0.0, 128
    %2454 = vxpose.xlu0.b32.cont [9/16] 0.0, 128
    %2455 = vxpose.xlu0.b32.cont [10/16] 0.0, 128
    %2456 = vxpose.xlu0.b32.cont [11/16] 0.0, 128
    %2457 = vxpose.xlu0.b32.cont [12/16] 0.0, 128
    %2458 = vxpose.xlu0.b32.cont [13/16] 0.0, 128
    %2459 = vxpose.xlu0.b32.cont [14/16] 0.0, 128
    %2460 = vxpose.xlu0.b32.cont [15/16] 0.0, 128
    %2461 = vxpose.xlu0.b32.end [16/16] 0.0, 128
    %v2462 = vpop.trf.xlu0
    %v2463 = vpop.trf.xlu0
    %v2464 = vpop.trf.xlu0
    %v2465 = vpop.trf.xlu0
    %v2466 = vpop.trf.xlu0
    %v2467 = vpop.trf.xlu0
    %v2468 = vpop.trf.xlu0
    %v2469 = vpop.trf.xlu0
    %v2470 = vpop.trf.xlu0
    %v2471 = vpop.trf.xlu0
    %v2472 = vpop.trf.xlu0
    %v2473 = vpop.trf.xlu0
    %v2474 = vpop.trf.xlu0
    %v2475 = vpop.trf.xlu0
    %v2476 = vpop.trf.xlu0
    %v2477 = vpop.trf.xlu0
    %2478 = vxpose.xlu0.b32.start [1/16] %v2379, 128
    %2479 = vxpose.xlu0.b32.cont [2/16] 0.0, 128
    %2480 = vxpose.xlu0.b32.cont [3/16] 0.0, 128
    %2481 = vxpose.xlu0.b32.cont [4/16] 0.0, 128
    %2482 = vxpose.xlu0.b32.cont [5/16] 0.0, 128
    %2483 = vxpose.xlu0.b32.cont [6/16] 0.0, 128
    %2484 = vxpose.xlu0.b32.cont [7/16] 0.0, 128
    %2485 = vxpose.xlu0.b32.cont [8/16] 0.0, 128
    %2486 = vxpose.xlu0.b32.cont [9/16] 0.0, 128
    %2487 = vxpose.xlu0.b32.cont [10/16] 0.0, 128
    %2488 = vxpose.xlu0.b32.cont [11/16] 0.0, 128
    %2489 = vxpose.xlu0.b32.cont [12/16] 0.0, 128
    %2490 = vxpose.xlu0.b32.cont [13/16] 0.0, 128
    %2491 = vxpose.xlu0.b32.cont [14/16] 0.0, 128
    %2492 = vxpose.xlu0.b32.cont [15/16] 0.0, 128
    %2493 = vxpose.xlu0.b32.end [16/16] 0.0, 128
    %v2494 = vpop.trf.xlu0
    %v2495 = vpop.trf.xlu0
    %v2496 = vpop.trf.xlu0
    %v2497 = vpop.trf.xlu0
    %v2498 = vpop.trf.xlu0
    %v2499 = vpop.trf.xlu0
    %v2500 = vpop.trf.xlu0
    %v2501 = vpop.trf.xlu0
    %v2502 = vpop.trf.xlu0
    %v2503 = vpop.trf.xlu0
    %v2504 = vpop.trf.xlu0
    %v2505 = vpop.trf.xlu0
    %v2506 = vpop.trf.xlu0
    %v2507 = vpop.trf.xlu0
    %v2508 = vpop.trf.xlu0
    %v2509 = vpop.trf.xlu0
    %v2510 = vcombine.low %v2398, %v2462
    %v2511 = vcombine.high %v2398, %v2462
    %v2513 = vunpack.c.l.s4 1983009808
    %v2514 = vunpack.c.0.s8 %v2513
    %v2515 = vlaneseq
    %v2516 = vshrl.u32 %v2515, 7
    %v2517 = vsub.s32 %v2514, %v2516
    %v2518 = vrot.slane %v2510, %v2517
    %v2520 = vunpack.c.l.s4 1983009808
    %v2521 = vunpack.c.0.s8 %v2520
    %v2522 = vlaneseq
    %v2523 = vshrl.u32 %v2522, 7
    %v2524 = vsub.s32 %v2521, %v2523
    %v2525 = vrot.slane %v2511, %v2524
    %v2526 = vcombine.low %v2430, %v2494
    %v2527 = vcombine.high %v2430, %v2494
    %v2529 = vunpack.c.l.s4 1983009808
    %v2530 = vunpack.c.0.s8 %v2529
    %v2531 = vlaneseq
    %v2532 = vshrl.u32 %v2531, 7
    %v2533 = vsub.s32 %v2530, %v2532
    %v2534 = vrot.slane %v2526, %v2533
    %v2536 = vunpack.c.l.s4 1983009808
    %v2537 = vunpack.c.0.s8 %v2536
    %v2538 = vlaneseq
    %v2539 = vshrl.u32 %v2538, 7
    %v2540 = vsub.s32 %v2537, %v2539
    %v2541 = vrot.slane %v2527, %v2540
    %v2542 = vcombine.low %v2518, %v2534
    %v2543 = vcombine.high %v2518, %v2534
    %v2545 = vunpack.c.l.s4 1934713408
    %v2546 = vunpack.c.0.s8 %v2545
    %v2547 = vlaneseq
    %v2548 = vshrl.u32 %v2547, 7
    %v2549 = vsub.s32 %v2546, %v2548
    %v2550 = vrot.slane %v2542, %v2549
    %v2552 = vunpack.c.l.s4 1934713408
    %v2553 = vunpack.c.0.s8 %v2552
    %v2554 = vlaneseq
    %v2555 = vshrl.u32 %v2554, 7
    %v2556 = vsub.s32 %v2553, %v2555
    %v2557 = vrot.slane %v2543, %v2556
    %v2558 = vcombine.low %v2525, %v2541
    %v2559 = vcombine.high %v2525, %v2541
    %v2561 = vunpack.c.l.s4 1934713408
    %v2562 = vunpack.c.0.s8 %v2561
    %v2563 = vlaneseq
    %v2564 = vshrl.u32 %v2563, 7
    %v2565 = vsub.s32 %v2562, %v2564
    %v2566 = vrot.slane %v2558, %v2565
    %v2568 = vunpack.c.l.s4 1934713408
    %v2569 = vunpack.c.0.s8 %v2568
    %v2570 = vlaneseq
    %v2571 = vshrl.u32 %v2570, 7
    %v2572 = vsub.s32 %v2569, %v2571
    %v2573 = vrot.slane %v2559, %v2572
    %v2574 = vcombine.high %v2550, 0.0
    %v2575 = vcombine.high %v2557, 0.0
    %v2576 = vcombine.high %v2566, 0.0
    %v2577 = vcombine.high %v2573, 0.0
    %v2578 = vcombine.low %v2550, %v2557
    %v2580 = vunpack.c.l.s4 1983009808
    %v2581 = vunpack.c.0.s8 %v2580
    %v2582 = vlaneseq
    %v2583 = vshrl.u32 %v2582, 7
    %v2584 = vsub.s32 %v2581, %v2583
    %v2585 = vrot.slane %v2578, %v2584
    %v2586 = vcombine.low %v2574, %v2575
    %v2588 = vunpack.c.l.s4 1983009808
    %v2589 = vunpack.c.0.s8 %v2588
    %v2590 = vlaneseq
    %v2591 = vshrl.u32 %v2590, 7
    %v2592 = vsub.s32 %v2589, %v2591
    %v2593 = vrot.slane %v2586, %v2592
    %v2594 = vcombine.low %v2566, %v2573
    %v2596 = vunpack.c.l.s4 1983009808
    %v2597 = vunpack.c.0.s8 %v2596
    %v2598 = vlaneseq
    %v2599 = vshrl.u32 %v2598, 7
    %v2600 = vsub.s32 %v2597, %v2599
    %v2601 = vrot.slane %v2594, %v2600
    %v2602 = vcombine.low %v2576, %v2577
    %v2604 = vunpack.c.l.s4 1983009808
    %v2605 = vunpack.c.0.s8 %v2604
    %v2606 = vlaneseq
    %v2607 = vshrl.u32 %v2606, 7
    %v2608 = vsub.s32 %v2605, %v2607
    %v2609 = vrot.slane %v2602, %v2608
    %v2610 = vcombine.low %v2585, %v2593
    %v2611 = vcombine.high %v2585, %v2593
    %v2613 = vunpack.c.l.s4 1934713408
    %v2614 = vunpack.c.0.s8 %v2613
    %v2615 = vlaneseq
    %v2616 = vshrl.u32 %v2615, 7
    %v2617 = vsub.s32 %v2614, %v2616
    %v2618 = vrot.slane %v2610, %v2617
    %v2620 = vunpack.c.l.s4 1934713408
    %v2621 = vunpack.c.0.s8 %v2620
    %v2622 = vlaneseq
    %v2623 = vshrl.u32 %v2622, 7
    %v2624 = vsub.s32 %v2621, %v2623
    %v2625 = vrot.slane %v2611, %v2624
    %v2626 = vcombine.low %v2601, %v2609
    %v2627 = vcombine.high %v2601, %v2609
    %v2629 = vunpack.c.l.s4 1934713408
    %v2630 = vunpack.c.0.s8 %v2629
    %v2631 = vlaneseq
    %v2632 = vshrl.u32 %v2631, 7
    %v2633 = vsub.s32 %v2630, %v2632
    %v2634 = vrot.slane %v2626, %v2633
    %v2636 = vunpack.c.l.s4 1934713408
    %v2637 = vunpack.c.0.s8 %v2636
    %v2638 = vlaneseq
    %v2639 = vshrl.u32 %v2638, 7
    %v2640 = vsub.s32 %v2637, %v2639
    %v2641 = vrot.slane %v2627, %v2640
    %v2642 = vcombine.low %v2618, %v2634
    %v2643 = vcombine.high %v2618, %v2634
    %v2644 = vcombine.low %v2625, %v2641
    %v2645 = vcombine.high %v2625, %v2641
    %2647 = vrot.lane.b32.xlu0 %v2643, 8
    %v2648 = vpop.permute.xlu0 %2647
    %2651 = vrot.lane.b32.xlu0 %v2644, 16
    %v2652 = vpop.permute.xlu0 %2651
    %2655 = vrot.lane.b32.xlu0 %v2645, 24
    %v2656 = vpop.permute.xlu0 %2655
    %v2658 = vsel %vm401, %v2642, %v2648
    %v2659 = vsel %vm1455, %v2658, %v2652
    %v2660 = vsel %vm1457, %v2659, %v2656
    %v2661 = vlaneseq
    %v2662 = vshrl.u32 %v2661, 7
    %v2663 = vsub.s32 0, %v2662
    %v2664 = vrot.slane %v155, %v2663
    %v2666 = vsel %vm168, %v1458, 0
    %v2669 = vsel %vm168, %v2660, 0
    %2671 = vmatprep.subr.mxu0 0.0
    %2672 = vmatpush1.msra.mxu0 0.0
    %2673 = vmatprep.subr.mxu0 0.0
    %2674 = vmatpush1.msra.mxu0 0.0
    %2675 = vmatprep.subr.mxu0 0.0
    %2676 = vmatpush1.msra.mxu0 0.0
    %2677 = vmatprep.subr.mxu0 0.0
    %2678 = vmatpush1.msra.mxu0 0.0
    %2679 = vmatprep.subr.mxu0 0.0
    %2680 = vmatpush1.msra.mxu0 0.0
    %2681 = vmatprep.subr.mxu0 0.0
    %2682 = vmatpush1.msra.mxu0 0.0
    %2683 = vmatprep.subr.mxu0 0.0
    %2684 = vmatpush1.msra.mxu0 0.0
    %2685 = vmatprep.subr.mxu0 0.0
    %2686 = vmatpush1.msra.mxu0 0.0
    %2687 = vmatprep.subr.mxu0 0.0
    %2688 = vmatpush1.msra.mxu0 0.0
    %2689 = vmatprep.subr.mxu0 0.0
    %2690 = vmatpush1.msra.mxu0 0.0
    %2691 = vmatprep.subr.mxu0 0.0
    %2692 = vmatpush1.msra.mxu0 0.0
    %2693 = vmatprep.subr.mxu0 0.0
    %2694 = vmatpush1.msra.mxu0 0.0
    %2695 = vmatprep.subr.mxu0 0.0
    %2696 = vmatpush1.msra.mxu0 %v253
    %2697 = vmatprep.subr.mxu0 0.0
    %2698 = vmatpush1.msra.mxu0 %v252
    %2699 = vmatprep.subr.mxu0 0.0
    %2700 = vmatpush1.msra.mxu0 %v251
    %2701 = vmatprep.subr.mxu0 0.0
    %2702 = vmatpush1.msra.mxu0 %v250
    %2703 = vmatprep.subr.mxu0 0.0
    %2704 = vmatpush2.msra.mxu0 0.0
    %2705 = vmatprep.subr.mxu0 0.0
    %2706 = vmatpush2.msra.mxu0 0.0
    %2707 = vmatprep.subr.mxu0 0.0
    %2708 = vmatpush2.msra.mxu0 0.0
    %2709 = vmatprep.subr.mxu0 0.0
    %2710 = vmatpush2.msra.mxu0 0.0
    %2711 = vmatprep.subr.mxu0 0.0
    %2712 = vmatpush2.msra.mxu0 0.0
    %2713 = vmatprep.subr.mxu0 0.0
    %2714 = vmatpush2.msra.mxu0 0.0
    %2715 = vmatprep.subr.mxu0 0.0
    %2716 = vmatpush2.msra.mxu0 0.0
    %2717 = vmatprep.subr.mxu0 0.0
    %2718 = vmatpush2.msra.mxu0 0.0
    %2719 = vmatprep.subr.mxu0 0.0
    %2720 = vmatpush2.msra.mxu0 0.0
    %2721 = vmatprep.subr.mxu0 0.0
    %2722 = vmatpush2.msra.mxu0 0.0
    %2723 = vmatprep.subr.mxu0 0.0
    %2724 = vmatpush2.msra.mxu0 0.0
    %2725 = vmatprep.subr.mxu0 0.0
    %2726 = vmatpush2.msra.mxu0 0.0
    %2727 = vmatprep.subr.mxu0 0.0
    %2728 = vmatpush2.msra.mxu0 0.0
    %2729 = vmatprep.subr.mxu0 0.0
    %2730 = vmatpush2.msra.mxu0 0.0
    %2731 = vmatprep.subr.mxu0 0.0
    %2732 = vmatpush2.msra.mxu0 0.0
    %2733 = vmatprep.subr.mxu0 0.0
    %2734 = vmatpush2.msra.mxu0 0.0
    %2735 = vmatprep.mubr.f32.mxu0 0.0
    %2736 = vmatmul.mubr.f32.gmra.mxu0 %v2666
    %v2737 = vpop.f32.mrf.mxu0
    %v2738 = vadd.f32 %v2664, %v2737
    %v2739 = vpop.f32.mrf.mxu0
    %2740 = vmatprep.mubr.f32.mxu0 0.0
    %2741 = vmatmul.mubr.f32.gmra.mxu0 %v2669
    %v2742 = vpop.f32.mrf.mxu0
    %v2743 = vadd.f32 %v2664, %v2742
    %v2744 = vpop.f32.mrf.mxu0
    %2745 = vdwg.mxu0
    %v2746 = vadd.f32 %v151, %v2738
    %v2747 = vadd.f32 %v152, %v2743
    %v2748 = vsel %vm168, %v2746, 0.0
    %2749 = vadd.xlane.f32.xlu0 %v2748
    %v2750 = vpop.xlane.xlu0 %2749
    %v2751 = vsel %vm168, %v2747, 0.0
    %2752 = vadd.xlane.f32.xlu0 %v2751
    %v2753 = vpop.xlane.xlu0 %2752
    %v2754 = vrcp.pop 32.0
    %v2755 = vmul.f32 %v2750, %v2754
    %v2756 = vmul.f32 %v2753, %v2754
    %v2757 = vsub.f32 %v2746, %v2755
    %v2758 = vsub.f32 %v2747, %v2756
    %v2759 = vmul.f32 %v2757, %v2757
    %v2760 = vmul.f32 %v2758, %v2758
    %v2761 = vsel %vm168, %v2759, 0.0
    %2762 = vadd.xlane.f32.xlu0 %v2761
    %v2763 = vpop.xlane.xlu0 %2762
    %v2764 = vsel %vm168, %v2760, 0.0
    %2765 = vadd.xlane.f32.xlu0 %v2764
    %v2766 = vpop.xlane.xlu0 %2765
    %v2767 = vmul.f32 %v2763, %v2754
    %v2768 = vmul.f32 %v2766, %v2754
    %v2769 = vadd.f32 %v2767, 1e-05
    %v2770 = vadd.f32 %v2768, 1e-05
    %v2771 = vrsqrt.pop %v2769
    %v2772 = vrsqrt.pop %v2770
    %v2773 = vmul.f32 %v2757, %v2771
    %v2774 = vmul.f32 %v2758, %v2772
    %v2775 = vlaneseq
    %v2776 = vshrl.u32 %v2775, 7
    %v2777 = vsub.s32 3, %v2776
    %v2778 = vrot.slane %v155, %v2777
    %v2779 = vmul.f32 %v2773, %v2778
    %v2780 = vmul.f32 %v2774, %v2778
    %v2781 = vlaneseq
    %v2782 = vshrl.u32 %v2781, 7
    %v2783 = vsub.s32 4, %v2782
    %v2784 = vrot.slane %v155, %v2783
    %v2785 = vadd.f32 %v2779, %v2784
    %v2786 = vadd.f32 %v2780, %v2784
    %v2787 = vld [vmem:[%s5] sm:$0xff]
    %v2788 = vld [vmem:[%s5 + $0x8] sm:$0xff]
    %v2789 = vld [vmem:[%s5 + $0x10] sm:$0xff]
    %v2790 = vld [vmem:[%s5 + $0x18] sm:$0xff]
    %v2791 = vld [vmem:[#allocation8] sm:$0x1]
    %v2793 = vlaneseq
    %v2794 = vshrl.u32 %v2793, 7
    %v2795 = vsub.s32 0, %v2794
    %v2796 = vrot.slane %v2791, %v2795
    %v2799 = vsel %vm168, %v2785, 0
    %v2802 = vsel %vm168, %v2786, 0
    %2804 = vmatprep.subr.mxu0 0.0
    %2805 = vmatpush1.msra.mxu0 0.0
    %2806 = vmatprep.subr.mxu0 0.0
    %2807 = vmatpush1.msra.mxu0 0.0
    %2808 = vmatprep.subr.mxu0 0.0
    %2809 = vmatpush1.msra.mxu0 0.0
    %2810 = vmatprep.subr.mxu0 0.0
    %2811 = vmatpush1.msra.mxu0 0.0
    %2812 = vmatprep.subr.mxu0 0.0
    %2813 = vmatpush1.msra.mxu0 0.0
    %2814 = vmatprep.subr.mxu0 0.0
    %2815 = vmatpush1.msra.mxu0 0.0
    %2816 = vmatprep.subr.mxu0 0.0
    %2817 = vmatpush1.msra.mxu0 0.0
    %2818 = vmatprep.subr.mxu0 0.0
    %2819 = vmatpush1.msra.mxu0 0.0
    %2820 = vmatprep.subr.mxu0 0.0
    %2821 = vmatpush1.msra.mxu0 0.0
    %2822 = vmatprep.subr.mxu0 0.0
    %2823 = vmatpush1.msra.mxu0 0.0
    %2824 = vmatprep.subr.mxu0 0.0
    %2825 = vmatpush1.msra.mxu0 0.0
    %2826 = vmatprep.subr.mxu0 0.0
    %2827 = vmatpush1.msra.mxu0 0.0
    %2828 = vmatprep.subr.mxu0 0.0
    %2829 = vmatpush1.msra.mxu0 %v2790
    %2830 = vmatprep.subr.mxu0 0.0
    %2831 = vmatpush1.msra.mxu0 %v2789
    %2832 = vmatprep.subr.mxu0 0.0
    %2833 = vmatpush1.msra.mxu0 %v2788
    %2834 = vmatprep.subr.mxu0 0.0
    %2835 = vmatpush1.msra.mxu0 %v2787
    %2836 = vmatprep.subr.mxu0 0.0
    %2837 = vmatpush2.msra.mxu0 0.0
    %2838 = vmatprep.subr.mxu0 0.0
    %2839 = vmatpush2.msra.mxu0 0.0
    %2840 = vmatprep.subr.mxu0 0.0
    %2841 = vmatpush2.msra.mxu0 0.0
    %2842 = vmatprep.subr.mxu0 0.0
    %2843 = vmatpush2.msra.mxu0 0.0
    %2844 = vmatprep.subr.mxu0 0.0
    %2845 = vmatpush2.msra.mxu0 0.0
    %2846 = vmatprep.subr.mxu0 0.0
    %2847 = vmatpush2.msra.mxu0 0.0
    %2848 = vmatprep.subr.mxu0 0.0
    %2849 = vmatpush2.msra.mxu0 0.0
    %2850 = vmatprep.subr.mxu0 0.0
    %2851 = vmatpush2.msra.mxu0 0.0
    %2852 = vmatprep.subr.mxu0 0.0
    %2853 = vmatpush2.msra.mxu0 0.0
    %2854 = vmatprep.subr.mxu0 0.0
    %2855 = vmatpush2.msra.mxu0 0.0
    %2856 = vmatprep.subr.mxu0 0.0
    %2857 = vmatpush2.msra.mxu0 0.0
    %2858 = vmatprep.subr.mxu0 0.0
    %2859 = vmatpush2.msra.mxu0 0.0
    %2860 = vmatprep.subr.mxu0 0.0
    %2861 = vmatpush2.msra.mxu0 0.0
    %2862 = vmatprep.subr.mxu0 0.0
    %2863 = vmatpush2.msra.mxu0 0.0
    %2864 = vmatprep.subr.mxu0 0.0
    %2865 = vmatpush2.msra.mxu0 0.0
    %2866 = vmatprep.subr.mxu0 0.0
    %2867 = vmatpush2.msra.mxu0 0.0
    %2868 = vmatprep.mubr.f32.mxu0 0.0
    %2869 = vmatmul.mubr.f32.gmra.mxu0 %v2799
    %v2870 = vpop.f32.mrf.mxu0
    %v2871 = vadd.f32 %v2796, %v2870
    %v2872 = vpop.f32.mrf.mxu0
    %2873 = vmatprep.mubr.f32.mxu0 0.0
    %2874 = vmatmul.mubr.f32.gmra.mxu0 %v2802
    %v2875 = vpop.f32.mrf.mxu0
    %v2876 = vadd.f32 %v2796, %v2875
    %v2877 = vpop.f32.mrf.mxu0
    %2878 = vdwg.mxu0
    %v2879 = vld [vmem:[#allocation10] sm:$0xff]
    %v2880 = vld [vmem:[#allocation10 + $0x8] sm:$0xff]
    %v2881 = vld [vmem:[#allocation10 + $0x10] sm:$0xff]
    %v2882 = vld [vmem:[#allocation10 + $0x18] sm:$0xff]
    %v2883 = vld [vmem:[#allocation11] sm:$0x1]
    %v2885 = vlaneseq
    %v2886 = vshrl.u32 %v2885, 7
    %v2887 = vsub.s32 0, %v2886
    %v2888 = vrot.slane %v2883, %v2887
    %v2891 = vsel %vm168, %v153, 0
    %v2894 = vsel %vm168, %v154, 0
    %2896 = vmatprep.subr.mxu0 0.0
    %2897 = vmatpush1.msra.mxu0 0.0
    %2898 = vmatprep.subr.mxu0 0.0
    %2899 = vmatpush1.msra.mxu0 0.0
    %2900 = vmatprep.subr.mxu0 0.0
    %2901 = vmatpush1.msra.mxu0 0.0
    %2902 = vmatprep.subr.mxu0 0.0
    %2903 = vmatpush1.msra.mxu0 0.0
    %2904 = vmatprep.subr.mxu0 0.0
    %2905 = vmatpush1.msra.mxu0 0.0
    %2906 = vmatprep.subr.mxu0 0.0
    %2907 = vmatpush1.msra.mxu0 0.0
    %2908 = vmatprep.subr.mxu0 0.0
    %2909 = vmatpush1.msra.mxu0 0.0
    %2910 = vmatprep.subr.mxu0 0.0
    %2911 = vmatpush1.msra.mxu0 0.0
    %2912 = vmatprep.subr.mxu0 0.0
    %2913 = vmatpush1.msra.mxu0 0.0
    %2914 = vmatprep.subr.mxu0 0.0
    %2915 = vmatpush1.msra.mxu0 0.0
    %2916 = vmatprep.subr.mxu0 0.0
    %2917 = vmatpush1.msra.mxu0 0.0
    %2918 = vmatprep.subr.mxu0 0.0
    %2919 = vmatpush1.msra.mxu0 0.0
    %2920 = vmatprep.subr.mxu0 0.0
    %2921 = vmatpush1.msra.mxu0 %v2882
    %2922 = vmatprep.subr.mxu0 0.0
    %2923 = vmatpush1.msra.mxu0 %v2881
    %2924 = vmatprep.subr.mxu0 0.0
    %2925 = vmatpush1.msra.mxu0 %v2880
    %2926 = vmatprep.subr.mxu0 0.0
    %2927 = vmatpush1.msra.mxu0 %v2879
    %2928 = vmatprep.subr.mxu0 0.0
    %2929 = vmatpush2.msra.mxu0 0.0
    %2930 = vmatprep.subr.mxu0 0.0
    %2931 = vmatpush2.msra.mxu0 0.0
    %2932 = vmatprep.subr.mxu0 0.0
    %2933 = vmatpush2.msra.mxu0 0.0
    %2934 = vmatprep.subr.mxu0 0.0
    %2935 = vmatpush2.msra.mxu0 0.0
    %2936 = vmatprep.subr.mxu0 0.0
    %2937 = vmatpush2.msra.mxu0 0.0
    %2938 = vmatprep.subr.mxu0 0.0
    %2939 = vmatpush2.msra.mxu0 0.0
    %2940 = vmatprep.subr.mxu0 0.0
    %2941 = vmatpush2.msra.mxu0 0.0
    %2942 = vmatprep.subr.mxu0 0.0
    %2943 = vmatpush2.msra.mxu0 0.0
    %2944 = vmatprep.subr.mxu0 0.0
    %2945 = vmatpush2.msra.mxu0 0.0
    %2946 = vmatprep.subr.mxu0 0.0
    %2947 = vmatpush2.msra.mxu0 0.0
    %2948 = vmatprep.subr.mxu0 0.0
    %2949 = vmatpush2.msra.mxu0 0.0
    %2950 = vmatprep.subr.mxu0 0.0
    %2951 = vmatpush2.msra.mxu0 0.0
    %2952 = vmatprep.subr.mxu0 0.0
    %2953 = vmatpush2.msra.mxu0 0.0
    %2954 = vmatprep.subr.mxu0 0.0
    %2955 = vmatpush2.msra.mxu0 0.0
    %2956 = vmatprep.subr.mxu0 0.0
    %2957 = vmatpush2.msra.mxu0 0.0
    %2958 = vmatprep.subr.mxu0 0.0
    %2959 = vmatpush2.msra.mxu0 0.0
    %2960 = vmatprep.mubr.f32.mxu0 0.0
    %2961 = vmatmul.mubr.f32.gmra.mxu0 %v2891
    %v2962 = vpop.f32.mrf.mxu0
    %v2963 = vadd.f32 %v2888, %v2962
    %v2964 = vpop.f32.mrf.mxu0
    %2965 = vmatprep.mubr.f32.mxu0 0.0
    %2966 = vmatmul.mubr.f32.gmra.mxu0 %v2894
    %v2967 = vpop.f32.mrf.mxu0
    %v2968 = vadd.f32 %v2888, %v2967
    %v2969 = vpop.f32.mrf.mxu0
    %2970 = vdwg.mxu0
    %v2971 = vld [vmem:[#allocation13] sm:$0xff]
    %v2972 = vld [vmem:[#allocation13 + $0x8] sm:$0xff]
    %v2973 = vld [vmem:[#allocation13 + $0x10] sm:$0xff]
    %v2974 = vld [vmem:[#allocation13 + $0x18] sm:$0xff]
    %2976 = vrot.lane.b32.xlu0 %v2871, 120
    %v2977 = vpop.permute.xlu0 %2976
    %2978 = vrot.lane.b32.xlu0 %v2871, 112
    %v2979 = vpop.permute.xlu0 %2978
    %2980 = vrot.lane.b32.xlu0 %v2871, 104
    %v2981 = vpop.permute.xlu0 %2980
    %2983 = vrot.lane.b32.xlu0 %v2963, 120
    %v2984 = vpop.permute.xlu0 %2983
    %2986 = vrot.lane.b32.xlu0 %v2963, 112
    %v2987 = vpop.permute.xlu0 %2986
    %2989 = vrot.lane.b32.xlu0 %v2963, 104
    %v2990 = vpop.permute.xlu0 %2989
    %2992 = vxpose.xlu0.b32.start [1/16] %v2963, 128
    %2993 = vxpose.xlu0.b32.cont [2/16] 0.0, 128
    %2994 = vxpose.xlu0.b32.cont [3/16] 0.0, 128
    %2995 = vxpose.xlu0.b32.cont [4/16] 0.0, 128
    %2996 = vxpose.xlu0.b32.cont [5/16] 0.0, 128
    %2997 = vxpose.xlu0.b32.cont [6/16] 0.0, 128
    %2998 = vxpose.xlu0.b32.cont [7/16] 0.0, 128
    %2999 = vxpose.xlu0.b32.cont [8/16] 0.0, 128
    %3000 = vxpose.xlu0.b32.cont [9/16] 0.0, 128
    %3001 = vxpose.xlu0.b32.cont [10/16] 0.0, 128
    %3002 = vxpose.xlu0.b32.cont [11/16] 0.0, 128
    %3003 = vxpose.xlu0.b32.cont [12/16] 0.0, 128
    %3004 = vxpose.xlu0.b32.cont [13/16] 0.0, 128
    %3005 = vxpose.xlu0.b32.cont [14/16] 0.0, 128
    %3006 = vxpose.xlu0.b32.cont [15/16] 0.0, 128
    %3007 = vxpose.xlu0.b32.end [16/16] 0.0, 128
    %v3008 = vpop.trf.xlu0
    %v3009 = vpop.trf.xlu0
    %v3010 = vpop.trf.xlu0
    %v3011 = vpop.trf.xlu0
    %v3012 = vpop.trf.xlu0
    %v3013 = vpop.trf.xlu0
    %v3014 = vpop.trf.xlu0
    %v3015 = vpop.trf.xlu0
    %v3016 = vpop.trf.xlu0
    %v3017 = vpop.trf.xlu0
    %v3018 = vpop.trf.xlu0
    %v3019 = vpop.trf.xlu0
    %v3020 = vpop.trf.xlu0
    %v3021 = vpop.trf.xlu0
    %v3022 = vpop.trf.xlu0
    %v3023 = vpop.trf.xlu0
    %3024 = vxpose.xlu0.b32.start [1/16] %v2984, 128
    %3025 = vxpose.xlu0.b32.cont [2/16] 0.0, 128
    %3026 = vxpose.xlu0.b32.cont [3/16] 0.0, 128
    %3027 = vxpose.xlu0.b32.cont [4/16] 0.0, 128
    %3028 = vxpose.xlu0.b32.cont [5/16] 0.0, 128
    %3029 = vxpose.xlu0.b32.cont [6/16] 0.0, 128
    %3030 = vxpose.xlu0.b32.cont [7/16] 0.0, 128
    %3031 = vxpose.xlu0.b32.cont [8/16] 0.0, 128
    %3032 = vxpose.xlu0.b32.cont [9/16] 0.0, 128
    %3033 = vxpose.xlu0.b32.cont [10/16] 0.0, 128
    %3034 = vxpose.xlu0.b32.cont [11/16] 0.0, 128
    %3035 = vxpose.xlu0.b32.cont [12/16] 0.0, 128
    %3036 = vxpose.xlu0.b32.cont [13/16] 0.0, 128
    %3037 = vxpose.xlu0.b32.cont [14/16] 0.0, 128
    %3038 = vxpose.xlu0.b32.cont [15/16] 0.0, 128
    %3039 = vxpose.xlu0.b32.end [16/16] 0.0, 128
    %v3040 = vpop.trf.xlu0
    %v3041 = vpop.trf.xlu0
    %v3042 = vpop.trf.xlu0
    %v3043 = vpop.trf.xlu0
    %v3044 = vpop.trf.xlu0
    %v3045 = vpop.trf.xlu0
    %v3046 = vpop.trf.xlu0
    %v3047 = vpop.trf.xlu0
    %v3048 = vpop.trf.xlu0
    %v3049 = vpop.trf.xlu0
    %v3050 = vpop.trf.xlu0
    %v3051 = vpop.trf.xlu0
    %v3052 = vpop.trf.xlu0
    %v3053 = vpop.trf.xlu0
    %v3054 = vpop.trf.xlu0
    %v3055 = vpop.trf.xlu0
    %3056 = vxpose.xlu0.b32.start [1/16] %v2987, 128
    %3057 = vxpose.xlu0.b32.cont [2/16] 0.0, 128
    %3058 = vxpose.xlu0.b32.cont [3/16] 0.0, 128
    %3059 = vxpose.xlu0.b32.cont [4/16] 0.0, 128
    %3060 = vxpose.xlu0.b32.cont [5/16] 0.0, 128
    %3061 = vxpose.xlu0.b32.cont [6/16] 0.0, 128
    %3062 = vxpose.xlu0.b32.cont [7/16] 0.0, 128
    %3063 = vxpose.xlu0.b32.cont [8/16] 0.0, 128
    %3064 = vxpose.xlu0.b32.cont [9/16] 0.0, 128
    %3065 = vxpose.xlu0.b32.cont [10/16] 0.0, 128
    %3066 = vxpose.xlu0.b32.cont [11/16] 0.0, 128
    %3067 = vxpose.xlu0.b32.cont [12/16] 0.0, 128
    %3068 = vxpose.xlu0.b32.cont [13/16] 0.0, 128
    %3069 = vxpose.xlu0.b32.cont [14/16] 0.0, 128
    %3070 = vxpose.xlu0.b32.cont [15/16] 0.0, 128
    %3071 = vxpose.xlu0.b32.end [16/16] 0.0, 128
    %v3072 = vpop.trf.xlu0
    %v3073 = vpop.trf.xlu0
    %v3074 = vpop.trf.xlu0
    %v3075 = vpop.trf.xlu0
    %v3076 = vpop.trf.xlu0
    %v3077 = vpop.trf.xlu0
    %v3078 = vpop.trf.xlu0
    %v3079 = vpop.trf.xlu0
    %v3080 = vpop.trf.xlu0
    %v3081 = vpop.trf.xlu0
    %v3082 = vpop.trf.xlu0
    %v3083 = vpop.trf.xlu0
    %v3084 = vpop.trf.xlu0
    %v3085 = vpop.trf.xlu0
    %v3086 = vpop.trf.xlu0
    %v3087 = vpop.trf.xlu0
    %3088 = vxpose.xlu0.b32.start [1/16] %v2990, 128
    %3089 = vxpose.xlu0.b32.cont [2/16] 0.0, 128
    %3090 = vxpose.xlu0.b32.cont [3/16] 0.0, 128
    %3091 = vxpose.xlu0.b32.cont [4/16] 0.0, 128
    %3092 = vxpose.xlu0.b32.cont [5/16] 0.0, 128
    %3093 = vxpose.xlu0.b32.cont [6/16] 0.0, 128
    %3094 = vxpose.xlu0.b32.cont [7/16] 0.0, 128
    %3095 = vxpose.xlu0.b32.cont [8/16] 0.0, 128
    %3096 = vxpose.xlu0.b32.cont [9/16] 0.0, 128
    %3097 = vxpose.xlu0.b32.cont [10/16] 0.0, 128
    %3098 = vxpose.xlu0.b32.cont [11/16] 0.0, 128
    %3099 = vxpose.xlu0.b32.cont [12/16] 0.0, 128
    %3100 = vxpose.xlu0.b32.cont [13/16] 0.0, 128
    %3101 = vxpose.xlu0.b32.cont [14/16] 0.0, 128
    %3102 = vxpose.xlu0.b32.cont [15/16] 0.0, 128
    %3103 = vxpose.xlu0.b32.end [16/16] 0.0, 128
    %v3104 = vpop.trf.xlu0
    %v3105 = vpop.trf.xlu0
    %v3106 = vpop.trf.xlu0
    %v3107 = vpop.trf.xlu0
    %v3108 = vpop.trf.xlu0
    %v3109 = vpop.trf.xlu0
    %v3110 = vpop.trf.xlu0
    %v3111 = vpop.trf.xlu0
    %v3112 = vpop.trf.xlu0
    %v3113 = vpop.trf.xlu0
    %v3114 = vpop.trf.xlu0
    %v3115 = vpop.trf.xlu0
    %v3116 = vpop.trf.xlu0
    %v3117 = vpop.trf.xlu0
    %v3118 = vpop.trf.xlu0
    %v3119 = vpop.trf.xlu0
    %v3120 = vsel %vm401, %v2871, 0
    %3122 = vmatprep.subr.mxu0 0.0
    %3123 = vmatpush1.msra.mxu0 0.0
    %3124 = vmatprep.subr.mxu0 0.0
    %3125 = vmatpush1.msra.mxu0 0.0
    %3126 = vmatprep.subr.mxu0 0.0
    %3127 = vmatpush1.msra.mxu0 0.0
    %3128 = vmatprep.subr.mxu0 0.0
    %3129 = vmatpush1.msra.mxu0 0.0
    %3130 = vmatprep.subr.mxu0 0.0
    %3131 = vmatpush1.msra.mxu0 0.0
    %3132 = vmatprep.subr.mxu0 0.0
    %3133 = vmatpush1.msra.mxu0 0.0
    %3134 = vmatprep.subr.mxu0 0.0
    %3135 = vmatpush1.msra.mxu0 0.0
    %3136 = vmatprep.subr.mxu0 0.0
    %3137 = vmatpush1.msra.mxu0 0.0
    %3138 = vmatprep.subr.mxu0 0.0
    %3139 = vmatpush1.msra.mxu0 0.0
    %3140 = vmatprep.subr.mxu0 0.0
    %3141 = vmatpush1.msra.mxu0 0.0
    %3142 = vmatprep.subr.mxu0 0.0
    %3143 = vmatpush1.msra.mxu0 0.0
    %3144 = vmatprep.subr.mxu0 0.0
    %3145 = vmatpush1.msra.mxu0 0.0
    %3146 = vmatprep.subr.mxu0 0.0
    %3147 = vmatpush1.msra.mxu0 0.0
    %3148 = vmatprep.subr.mxu0 0.0
    %3149 = vmatpush1.msra.mxu0 0.0
    %3150 = vmatprep.subr.mxu0 0.0
    %3151 = vmatpush1.msra.mxu0 0.0
    %3152 = vmatprep.subr.mxu0 0.0
    %3153 = vmatpush1.msra.mxu0 %v3008
    %3154 = vmatprep.subr.mxu0 0.0
    %3155 = vmatpush2.msra.mxu0 0.0
    %3156 = vmatprep.subr.mxu0 0.0
    %3157 = vmatpush2.msra.mxu0 0.0
    %3158 = vmatprep.subr.mxu0 0.0
    %3159 = vmatpush2.msra.mxu0 0.0
    %3160 = vmatprep.subr.mxu0 0.0
    %3161 = vmatpush2.msra.mxu0 0.0
    %3162 = vmatprep.subr.mxu0 0.0
    %3163 = vmatpush2.msra.mxu0 0.0
    %3164 = vmatprep.subr.mxu0 0.0
    %3165 = vmatpush2.msra.mxu0 0.0
    %3166 = vmatprep.subr.mxu0 0.0
    %3167 = vmatpush2.msra.mxu0 0.0
    %3168 = vmatprep.subr.mxu0 0.0
    %3169 = vmatpush2.msra.mxu0 0.0
    %3170 = vmatprep.subr.mxu0 0.0
    %3171 = vmatpush2.msra.mxu0 0.0
    %3172 = vmatprep.subr.mxu0 0.0
    %3173 = vmatpush2.msra.mxu0 0.0
    %3174 = vmatprep.subr.mxu0 0.0
    %3175 = vmatpush2.msra.mxu0 0.0
    %3176 = vmatprep.subr.mxu0 0.0
    %3177 = vmatpush2.msra.mxu0 0.0
    %3178 = vmatprep.subr.mxu0 0.0
    %3179 = vmatpush2.msra.mxu0 0.0
    %3180 = vmatprep.subr.mxu0 0.0
    %3181 = vmatpush2.msra.mxu0 0.0
    %3182 = vmatprep.subr.mxu0 0.0
    %3183 = vmatpush2.msra.mxu0 0.0
    %3184 = vmatprep.subr.mxu0 0.0
    %3185 = vmatpush2.msra.mxu0 0.0
    %3186 = vmatprep.mubr.f32.mxu0 0.0
    %3187 = vmatmul.mubr.f32.gmra.mxu0 %v3120
    %v3188 = vpop.f32.mrf.mxu0
    %v3189 = vadd.f32 0.0, %v3188
    %v3190 = vpop.f32.mrf.mxu0
    %3191 = vdwg.mxu0
    %v3192 = vsel %vm401, %v2977, 0
    %3194 = vmatprep.subr.mxu0 0.0
    %3195 = vmatpush1.msra.mxu0 0.0
    %3196 = vmatprep.subr.mxu0 0.0
    %3197 = vmatpush1.msra.mxu0 0.0
    %3198 = vmatprep.subr.mxu0 0.0
    %3199 = vmatpush1.msra.mxu0 0.0
    %3200 = vmatprep.subr.mxu0 0.0
    %3201 = vmatpush1.msra.mxu0 0.0
    %3202 = vmatprep.subr.mxu0 0.0
    %3203 = vmatpush1.msra.mxu0 0.0
    %3204 = vmatprep.subr.mxu0 0.0
    %3205 = vmatpush1.msra.mxu0 0.0
    %3206 = vmatprep.subr.mxu0 0.0
    %3207 = vmatpush1.msra.mxu0 0.0
    %3208 = vmatprep.subr.mxu0 0.0
    %3209 = vmatpush1.msra.mxu0 0.0
    %3210 = vmatprep.subr.mxu0 0.0
    %3211 = vmatpush1.msra.mxu0 0.0
    %3212 = vmatprep.subr.mxu0 0.0
    %3213 = vmatpush1.msra.mxu0 0.0
    %3214 = vmatprep.subr.mxu0 0.0
    %3215 = vmatpush1.msra.mxu0 0.0
    %3216 = vmatprep.subr.mxu0 0.0
    %3217 = vmatpush1.msra.mxu0 0.0
    %3218 = vmatprep.subr.mxu0 0.0
    %3219 = vmatpush1.msra.mxu0 0.0
    %3220 = vmatprep.subr.mxu0 0.0
    %3221 = vmatpush1.msra.mxu0 0.0
    %3222 = vmatprep.subr.mxu0 0.0
    %3223 = vmatpush1.msra.mxu0 0.0
    %3224 = vmatprep.subr.mxu0 0.0
    %3225 = vmatpush1.msra.mxu0 %v3040
    %3226 = vmatprep.subr.mxu0 0.0
    %3227 = vmatpush2.msra.mxu0 0.0
    %3228 = vmatprep.subr.mxu0 0.0
    %3229 = vmatpush2.msra.mxu0 0.0
    %3230 = vmatprep.subr.mxu0 0.0
    %3231 = vmatpush2.msra.mxu0 0.0
    %3232 = vmatprep.subr.mxu0 0.0
    %3233 = vmatpush2.msra.mxu0 0.0
    %3234 = vmatprep.subr.mxu0 0.0
    %3235 = vmatpush2.msra.mxu0 0.0
    %3236 = vmatprep.subr.mxu0 0.0
    %3237 = vmatpush2.msra.mxu0 0.0
    %3238 = vmatprep.subr.mxu0 0.0
    %3239 = vmatpush2.msra.mxu0 0.0
    %3240 = vmatprep.subr.mxu0 0.0
    %3241 = vmatpush2.msra.mxu0 0.0
    %3242 = vmatprep.subr.mxu0 0.0
    %3243 = vmatpush2.msra.mxu0 0.0
    %3244 = vmatprep.subr.mxu0 0.0
    %3245 = vmatpush2.msra.mxu0 0.0
    %3246 = vmatprep.subr.mxu0 0.0
    %3247 = vmatpush2.msra.mxu0 0.0
    %3248 = vmatprep.subr.mxu0 0.0
    %3249 = vmatpush2.msra.mxu0 0.0
    %3250 = vmatprep.subr.mxu0 0.0
    %3251 = vmatpush2.msra.mxu0 0.0
    %3252 = vmatprep.subr.mxu0 0.0
    %3253 = vmatpush2.msra.mxu0 0.0
    %3254 = vmatprep.subr.mxu0 0.0
    %3255 = vmatpush2.msra.mxu0 0.0
    %3256 = vmatprep.subr.mxu0 0.0
    %3257 = vmatpush2.msra.mxu0 0.0
    %3258 = vmatprep.mubr.f32.mxu0 0.0
    %3259 = vmatmul.mubr.f32.gmra.mxu0 %v3192
    %v3260 = vpop.f32.mrf.mxu0
    %v3261 = vadd.f32 0.0, %v3260
    %v3262 = vpop.f32.mrf.mxu0
    %3263 = vdwg.mxu0
    %v3264 = vsel %vm401, %v2979, 0
    %3266 = vmatprep.subr.mxu0 0.0
    %3267 = vmatpush1.msra.mxu0 0.0
    %3268 = vmatprep.subr.mxu0 0.0
    %3269 = vmatpush1.msra.mxu0 0.0
    %3270 = vmatprep.subr.mxu0 0.0
    %3271 = vmatpush1.msra.mxu0 0.0
    %3272 = vmatprep.subr.mxu0 0.0
    %3273 = vmatpush1.msra.mxu0 0.0
    %3274 = vmatprep.subr.mxu0 0.0
    %3275 = vmatpush1.msra.mxu0 0.0
    %3276 = vmatprep.subr.mxu0 0.0
    %3277 = vmatpush1.msra.mxu0 0.0
    %3278 = vmatprep.subr.mxu0 0.0
    %3279 = vmatpush1.msra.mxu0 0.0
    %3280 = vmatprep.subr.mxu0 0.0
    %3281 = vmatpush1.msra.mxu0 0.0
    %3282 = vmatprep.subr.mxu0 0.0
    %3283 = vmatpush1.msra.mxu0 0.0
    %3284 = vmatprep.subr.mxu0 0.0
    %3285 = vmatpush1.msra.mxu0 0.0
    %3286 = vmatprep.subr.mxu0 0.0
    %3287 = vmatpush1.msra.mxu0 0.0
    %3288 = vmatprep.subr.mxu0 0.0
    %3289 = vmatpush1.msra.mxu0 0.0
    %3290 = vmatprep.subr.mxu0 0.0
    %3291 = vmatpush1.msra.mxu0 0.0
    %3292 = vmatprep.subr.mxu0 0.0
    %3293 = vmatpush1.msra.mxu0 0.0
    %3294 = vmatprep.subr.mxu0 0.0
    %3295 = vmatpush1.msra.mxu0 0.0
    %3296 = vmatprep.subr.mxu0 0.0
    %3297 = vmatpush1.msra.mxu0 %v3072
    %3298 = vmatprep.subr.mxu0 0.0
    %3299 = vmatpush2.msra.mxu0 0.0
    %3300 = vmatprep.subr.mxu0 0.0
    %3301 = vmatpush2.msra.mxu0 0.0
    %3302 = vmatprep.subr.mxu0 0.0
    %3303 = vmatpush2.msra.mxu0 0.0
    %3304 = vmatprep.subr.mxu0 0.0
    %3305 = vmatpush2.msra.mxu0 0.0
    %3306 = vmatprep.subr.mxu0 0.0
    %3307 = vmatpush2.msra.mxu0 0.0
    %3308 = vmatprep.subr.mxu0 0.0
    %3309 = vmatpush2.msra.mxu0 0.0
    %3310 = vmatprep.subr.mxu0 0.0
    %3311 = vmatpush2.msra.mxu0 0.0
    %3312 = vmatprep.subr.mxu0 0.0
    %3313 = vmatpush2.msra.mxu0 0.0
    %3314 = vmatprep.subr.mxu0 0.0
    %3315 = vmatpush2.msra.mxu0 0.0
    %3316 = vmatprep.subr.mxu0 0.0
    %3317 = vmatpush2.msra.mxu0 0.0
    %3318 = vmatprep.subr.mxu0 0.0
    %3319 = vmatpush2.msra.mxu0 0.0
    %3320 = vmatprep.subr.mxu0 0.0
    %3321 = vmatpush2.msra.mxu0 0.0
    %3322 = vmatprep.subr.mxu0 0.0
    %3323 = vmatpush2.msra.mxu0 0.0
    %3324 = vmatprep.subr.mxu0 0.0
    %3325 = vmatpush2.msra.mxu0 0.0
    %3326 = vmatprep.subr.mxu0 0.0
    %3327 = vmatpush2.msra.mxu0 0.0
    %3328 = vmatprep.subr.mxu0 0.0
    %3329 = vmatpush2.msra.mxu0 0.0
    %3330 = vmatprep.mubr.f32.mxu0 0.0
    %3331 = vmatmul.mubr.f32.gmra.mxu0 %v3264
    %v3332 = vpop.f32.mrf.mxu0
    %v3333 = vadd.f32 0.0, %v3332
    %v3334 = vpop.f32.mrf.mxu0
    %3335 = vdwg.mxu0
    %v3336 = vsel %vm401, %v2981, 0
    %3338 = vmatprep.subr.mxu0 0.0
    %3339 = vmatpush1.msra.mxu0 0.0
    %3340 = vmatprep.subr.mxu0 0.0
    %3341 = vmatpush1.msra.mxu0 0.0
    %3342 = vmatprep.subr.mxu0 0.0
    %3343 = vmatpush1.msra.mxu0 0.0
    %3344 = vmatprep.subr.mxu0 0.0
    %3345 = vmatpush1.msra.mxu0 0.0
    %3346 = vmatprep.subr.mxu0 0.0
    %3347 = vmatpush1.msra.mxu0 0.0
    %3348 = vmatprep.subr.mxu0 0.0
    %3349 = vmatpush1.msra.mxu0 0.0
    %3350 = vmatprep.subr.mxu0 0.0
    %3351 = vmatpush1.msra.mxu0 0.0
    %3352 = vmatprep.subr.mxu0 0.0
    %3353 = vmatpush1.msra.mxu0 0.0
    %3354 = vmatprep.subr.mxu0 0.0
    %3355 = vmatpush1.msra.mxu0 0.0
    %3356 = vmatprep.subr.mxu0 0.0
    %3357 = vmatpush1.msra.mxu0 0.0
    %3358 = vmatprep.subr.mxu0 0.0
    %3359 = vmatpush1.msra.mxu0 0.0
    %3360 = vmatprep.subr.mxu0 0.0
    %3361 = vmatpush1.msra.mxu0 0.0
    %3362 = vmatprep.subr.mxu0 0.0
    %3363 = vmatpush1.msra.mxu0 0.0
    %3364 = vmatprep.subr.mxu0 0.0
    %3365 = vmatpush1.msra.mxu0 0.0
    %3366 = vmatprep.subr.mxu0 0.0
    %3367 = vmatpush1.msra.mxu0 0.0
    %3368 = vmatprep.subr.mxu0 0.0
    %3369 = vmatpush1.msra.mxu0 %v3104
    %3370 = vmatprep.subr.mxu0 0.0
    %3371 = vmatpush2.msra.mxu0 0.0
    %3372 = vmatprep.subr.mxu0 0.0
    %3373 = vmatpush2.msra.mxu0 0.0
    %3374 = vmatprep.subr.mxu0 0.0
    %3375 = vmatpush2.msra.mxu0 0.0
    %3376 = vmatprep.subr.mxu0 0.0
    %3377 = vmatpush2.msra.mxu0 0.0
    %3378 = vmatprep.subr.mxu0 0.0
    %3379 = vmatpush2.msra.mxu0 0.0
    %3380 = vmatprep.subr.mxu0 0.0
    %3381 = vmatpush2.msra.mxu0 0.0
    %3382 = vmatprep.subr.mxu0 0.0
    %3383 = vmatpush2.msra.mxu0 0.0
    %3384 = vmatprep.subr.mxu0 0.0
    %3385 = vmatpush2.msra.mxu0 0.0
    %3386 = vmatprep.subr.mxu0 0.0
    %3387 = vmatpush2.msra.mxu0 0.0
    %3388 = vmatprep.subr.mxu0 0.0
    %3389 = vmatpush2.msra.mxu0 0.0
    %3390 = vmatprep.subr.mxu0 0.0
    %3391 = vmatpush2.msra.mxu0 0.0
    %3392 = vmatprep.subr.mxu0 0.0
    %3393 = vmatpush2.msra.mxu0 0.0
    %3394 = vmatprep.subr.mxu0 0.0
    %3395 = vmatpush2.msra.mxu0 0.0
    %3396 = vmatprep.subr.mxu0 0.0
    %3397 = vmatpush2.msra.mxu0 0.0
    %3398 = vmatprep.subr.mxu0 0.0
    %3399 = vmatpush2.msra.mxu0 0.0
    %3400 = vmatprep.subr.mxu0 0.0
    %3401 = vmatpush2.msra.mxu0 0.0
    %3402 = vmatprep.mubr.f32.mxu0 0.0
    %3403 = vmatmul.mubr.f32.gmra.mxu0 %v3336
    %v3404 = vpop.f32.mrf.mxu0
    %v3405 = vadd.f32 0.0, %v3404
    %v3406 = vpop.f32.mrf.mxu0
    %3407 = vdwg.mxu0
    %v3408 = vsel %vm401, %v3189, -inf
    %3409 = vmax.xlane.f32.xlu0 %v3408
    %v3410 = vpop.xlane.xlu0 %3409
    %v3411 = vsel %vm401, %v3261, -inf
    %3412 = vmax.xlane.f32.xlu0 %v3411
    %v3413 = vpop.xlane.xlu0 %3412
    %v3414 = vsel %vm401, %v3333, -inf
    %3415 = vmax.xlane.f32.xlu0 %v3414
    %v3416 = vpop.xlane.xlu0 %3415
    %v3417 = vsel %vm401, %v3405, -inf
    %3418 = vmax.xlane.f32.xlu0 %v3417
    %v3419 = vpop.xlane.xlu0 %3418
    %v3420 = vsub.f32 %v3189, %v3410
    %v3421 = vsub.f32 %v3261, %v3413
    %v3422 = vsub.f32 %v3333, %v3416
    %v3423 = vsub.f32 %v3405, %v3419
    %v3424 = vmul.f32 %v3420, 1.442695
    %v3425 = vpow.pop %v3424
    %v3426 = vmul.f32 %v3421, 1.442695
    %v3427 = vpow.pop %v3426
    %v3428 = vmul.f32 %v3422, 1.442695
    %v3429 = vpow.pop %v3428
    %v3430 = vmul.f32 %v3423, 1.442695
    %v3431 = vpow.pop %v3430
    %v3432 = vsel %vm401, %v3425, 0.0
    %3433 = vadd.xlane.f32.xlu0 %v3432
    %v3434 = vpop.xlane.xlu0 %3433
    %v3435 = vsel %vm401, %v3427, 0.0
    %3436 = vadd.xlane.f32.xlu0 %v3435
    %v3437 = vpop.xlane.xlu0 %3436
    %v3438 = vsel %vm401, %v3429, 0.0
    %3439 = vadd.xlane.f32.xlu0 %v3438
    %v3440 = vpop.xlane.xlu0 %3439
    %v3441 = vsel %vm401, %v3431, 0.0
    %3442 = vadd.xlane.f32.xlu0 %v3441
    %v3443 = vpop.xlane.xlu0 %3442
    %v3444 = vrcp.pop %v3434
    %v3445 = vmul.f32 %v3425, %v3444
    %v3446 = vrcp.pop %v3437
    %v3447 = vmul.f32 %v3427, %v3446
    %v3448 = vrcp.pop %v3440
    %v3449 = vmul.f32 %v3429, %v3448
    %v3450 = vrcp.pop %v3443
    %v3451 = vmul.f32 %v3431, %v3450
    %3452 = vrot.lane.b32.xlu0 %v2963, 96
    %v3453 = vpop.permute.xlu0 %3452
    %3454 = vrot.lane.b32.xlu0 %v2984, 96
    %v3455 = vpop.permute.xlu0 %3454
    %3456 = vrot.lane.b32.xlu0 %v2987, 96
    %v3457 = vpop.permute.xlu0 %3456
    %3458 = vrot.lane.b32.xlu0 %v2990, 96
    %v3459 = vpop.permute.xlu0 %3458
    %3464 = vxpose.xlu0.b32.start [1/16] %v3453, 128
    %3465 = vxpose.xlu0.b32.cont [2/16] 0.0, 128
    %3466 = vxpose.xlu0.b32.cont [3/16] 0.0, 128
    %3467 = vxpose.xlu0.b32.cont [4/16] 0.0, 128
    %3468 = vxpose.xlu0.b32.cont [5/16] 0.0, 128
    %3469 = vxpose.xlu0.b32.cont [6/16] 0.0, 128
    %3470 = vxpose.xlu0.b32.cont [7/16] 0.0, 128
    %3471 = vxpose.xlu0.b32.cont [8/16] 0.0, 128
    %3472 = vxpose.xlu0.b32.cont [9/16] 0.0, 128
    %3473 = vxpose.xlu0.b32.cont [10/16] 0.0, 128
    %3474 = vxpose.xlu0.b32.cont [11/16] 0.0, 128
    %3475 = vxpose.xlu0.b32.cont [12/16] 0.0, 128
    %3476 = vxpose.xlu0.b32.cont [13/16] 0.0, 128
    %3477 = vxpose.xlu0.b32.cont [14/16] 0.0, 128
    %3478 = vxpose.xlu0.b32.cont [15/16] 0.0, 128
    %3479 = vxpose.xlu0.b32.end [16/16] 0.0, 128
    %v3480 = vpop.trf.xlu0
    %v3481 = vpop.trf.xlu0
    %v3482 = vpop.trf.xlu0
    %v3483 = vpop.trf.xlu0
    %v3484 = vpop.trf.xlu0
    %v3485 = vpop.trf.xlu0
    %v3486 = vpop.trf.xlu0
    %v3487 = vpop.trf.xlu0
    %v3488 = vpop.trf.xlu0
    %v3489 = vpop.trf.xlu0
    %v3490 = vpop.trf.xlu0
    %v3491 = vpop.trf.xlu0
    %v3492 = vpop.trf.xlu0
    %v3493 = vpop.trf.xlu0
    %v3494 = vpop.trf.xlu0
    %v3495 = vpop.trf.xlu0
    %3496 = vxpose.xlu0.b32.start [1/16] %v3455, 128
    %3497 = vxpose.xlu0.b32.cont [2/16] 0.0, 128
    %3498 = vxpose.xlu0.b32.cont [3/16] 0.0, 128
    %3499 = vxpose.xlu0.b32.cont [4/16] 0.0, 128
    %3500 = vxpose.xlu0.b32.cont [5/16] 0.0, 128
    %3501 = vxpose.xlu0.b32.cont [6/16] 0.0, 128
    %3502 = vxpose.xlu0.b32.cont [7/16] 0.0, 128
    %3503 = vxpose.xlu0.b32.cont [8/16] 0.0, 128
    %3504 = vxpose.xlu0.b32.cont [9/16] 0.0, 128
    %3505 = vxpose.xlu0.b32.cont [10/16] 0.0, 128
    %3506 = vxpose.xlu0.b32.cont [11/16] 0.0, 128
    %3507 = vxpose.xlu0.b32.cont [12/16] 0.0, 128
    %3508 = vxpose.xlu0.b32.cont [13/16] 0.0, 128
    %3509 = vxpose.xlu0.b32.cont [14/16] 0.0, 128
    %3510 = vxpose.xlu0.b32.cont [15/16] 0.0, 128
    %3511 = vxpose.xlu0.b32.end [16/16] 0.0, 128
    %v3512 = vpop.trf.xlu0
    %v3513 = vpop.trf.xlu0
    %v3514 = vpop.trf.xlu0
    %v3515 = vpop.trf.xlu0
    %v3516 = vpop.trf.xlu0
    %v3517 = vpop.trf.xlu0
    %v3518 = vpop.trf.xlu0
    %v3519 = vpop.trf.xlu0
    %v3520 = vpop.trf.xlu0
    %v3521 = vpop.trf.xlu0
    %v3522 = vpop.trf.xlu0
    %v3523 = vpop.trf.xlu0
    %v3524 = vpop.trf.xlu0
    %v3525 = vpop.trf.xlu0
    %v3526 = vpop.trf.xlu0
    %v3527 = vpop.trf.xlu0
    %3528 = vxpose.xlu0.b32.start [1/16] %v3457, 128
    %3529 = vxpose.xlu0.b32.cont [2/16] 0.0, 128
    %3530 = vxpose.xlu0.b32.cont [3/16] 0.0, 128
    %3531 = vxpose.xlu0.b32.cont [4/16] 0.0, 128
    %3532 = vxpose.xlu0.b32.cont [5/16] 0.0, 128
    %3533 = vxpose.xlu0.b32.cont [6/16] 0.0, 128
    %3534 = vxpose.xlu0.b32.cont [7/16] 0.0, 128
    %3535 = vxpose.xlu0.b32.cont [8/16] 0.0, 128
    %3536 = vxpose.xlu0.b32.cont [9/16] 0.0, 128
    %3537 = vxpose.xlu0.b32.cont [10/16] 0.0, 128
    %3538 = vxpose.xlu0.b32.cont [11/16] 0.0, 128
    %3539 = vxpose.xlu0.b32.cont [12/16] 0.0, 128
    %3540 = vxpose.xlu0.b32.cont [13/16] 0.0, 128
    %3541 = vxpose.xlu0.b32.cont [14/16] 0.0, 128
    %3542 = vxpose.xlu0.b32.cont [15/16] 0.0, 128
    %3543 = vxpose.xlu0.b32.end [16/16] 0.0, 128
    %v3544 = vpop.trf.xlu0
    %v3545 = vpop.trf.xlu0
    %v3546 = vpop.trf.xlu0
    %v3547 = vpop.trf.xlu0
    %v3548 = vpop.trf.xlu0
    %v3549 = vpop.trf.xlu0
    %v3550 = vpop.trf.xlu0
    %v3551 = vpop.trf.xlu0
    %v3552 = vpop.trf.xlu0
    %v3553 = vpop.trf.xlu0
    %v3554 = vpop.trf.xlu0
    %v3555 = vpop.trf.xlu0
    %v3556 = vpop.trf.xlu0
    %v3557 = vpop.trf.xlu0
    %v3558 = vpop.trf.xlu0
    %v3559 = vpop.trf.xlu0
    %3560 = vxpose.xlu0.b32.start [1/16] %v3459, 128
    %3561 = vxpose.xlu0.b32.cont [2/16] 0.0, 128
    %3562 = vxpose.xlu0.b32.cont [3/16] 0.0, 128
    %3563 = vxpose.xlu0.b32.cont [4/16] 0.0, 128
    %3564 = vxpose.xlu0.b32.cont [5/16] 0.0, 128
    %3565 = vxpose.xlu0.b32.cont [6/16] 0.0, 128
    %3566 = vxpose.xlu0.b32.cont [7/16] 0.0, 128
    %3567 = vxpose.xlu0.b32.cont [8/16] 0.0, 128
    %3568 = vxpose.xlu0.b32.cont [9/16] 0.0, 128
    %3569 = vxpose.xlu0.b32.cont [10/16] 0.0, 128
    %3570 = vxpose.xlu0.b32.cont [11/16] 0.0, 128
    %3571 = vxpose.xlu0.b32.cont [12/16] 0.0, 128
    %3572 = vxpose.xlu0.b32.cont [13/16] 0.0, 128
    %3573 = vxpose.xlu0.b32.cont [14/16] 0.0, 128
    %3574 = vxpose.xlu0.b32.cont [15/16] 0.0, 128
    %3575 = vxpose.xlu0.b32.end [16/16] 0.0, 128
    %v3576 = vpop.trf.xlu0
    %v3577 = vpop.trf.xlu0
    %v3578 = vpop.trf.xlu0
    %v3579 = vpop.trf.xlu0
    %v3580 = vpop.trf.xlu0
    %v3581 = vpop.trf.xlu0
    %v3582 = vpop.trf.xlu0
    %v3583 = vpop.trf.xlu0
    %v3584 = vpop.trf.xlu0
    %v3585 = vpop.trf.xlu0
    %v3586 = vpop.trf.xlu0
    %v3587 = vpop.trf.xlu0
    %v3588 = vpop.trf.xlu0
    %v3589 = vpop.trf.xlu0
    %v3590 = vpop.trf.xlu0
    %v3591 = vpop.trf.xlu0
    %v3593 = vsel %vm401, %v3480, 0
    %v3596 = vsel %vm401, %v3445, 0
    %3598 = vmatprep.subr.mxu0 0.0
    %3599 = vmatpush1.xpose.msra.mxu0 0.0
    %3600 = vmatprep.subr.mxu0 0.0
    %3601 = vmatpush1.xpose.msra.mxu0 0.0
    %3602 = vmatprep.subr.mxu0 0.0
    %3603 = vmatpush1.xpose.msra.mxu0 0.0
    %3604 = vmatprep.subr.mxu0 0.0
    %3605 = vmatpush1.xpose.msra.mxu0 0.0
    %3606 = vmatprep.subr.mxu0 0.0
    %3607 = vmatpush1.xpose.msra.mxu0 0.0
    %3608 = vmatprep.subr.mxu0 0.0
    %3609 = vmatpush1.xpose.msra.mxu0 0.0
    %3610 = vmatprep.subr.mxu0 0.0
    %3611 = vmatpush1.xpose.msra.mxu0 0.0
    %3612 = vmatprep.subr.mxu0 0.0
    %3613 = vmatpush1.xpose.msra.mxu0 0.0
    %3614 = vmatprep.subr.mxu0 0.0
    %3615 = vmatpush1.xpose.msra.mxu0 0.0
    %3616 = vmatprep.subr.mxu0 0.0
    %3617 = vmatpush1.xpose.msra.mxu0 0.0
    %3618 = vmatprep.subr.mxu0 0.0
    %3619 = vmatpush1.xpose.msra.mxu0 0.0
    %3620 = vmatprep.subr.mxu0 0.0
    %3621 = vmatpush1.xpose.msra.mxu0 0.0
    %3622 = vmatprep.subr.mxu0 0.0
    %3623 = vmatpush1.xpose.msra.mxu0 0.0
    %3624 = vmatprep.subr.mxu0 0.0
    %3625 = vmatpush1.xpose.msra.mxu0 0.0
    %3626 = vmatprep.subr.mxu0 0.0
    %3627 = vmatpush1.xpose.msra.mxu0 0.0
    %3628 = vmatprep.subr.mxu0 0.0
    %3629 = vmatpush1.xpose.msra.mxu0 %v3596
    %3630 = vmatprep.subr.mxu0 0.0
    %3631 = vmatpush2.xpose.msra.mxu0 0.0
    %3632 = vmatprep.subr.mxu0 0.0
    %3633 = vmatpush2.xpose.msra.mxu0 0.0
    %3634 = vmatprep.subr.mxu0 0.0
    %3635 = vmatpush2.xpose.msra.mxu0 0.0
    %3636 = vmatprep.subr.mxu0 0.0
    %3637 = vmatpush2.xpose.msra.mxu0 0.0
    %3638 = vmatprep.subr.mxu0 0.0
    %3639 = vmatpush2.xpose.msra.mxu0 0.0
    %3640 = vmatprep.subr.mxu0 0.0
    %3641 = vmatpush2.xpose.msra.mxu0 0.0
    %3642 = vmatprep.subr.mxu0 0.0
    %3643 = vmatpush2.xpose.msra.mxu0 0.0
    %3644 = vmatprep.subr.mxu0 0.0
    %3645 = vmatpush2.xpose.msra.mxu0 0.0
    %3646 = vmatprep.subr.mxu0 0.0
    %3647 = vmatpush2.xpose.msra.mxu0 0.0
    %3648 = vmatprep.subr.mxu0 0.0
    %3649 = vmatpush2.xpose.msra.mxu0 0.0
    %3650 = vmatprep.subr.mxu0 0.0
    %3651 = vmatpush2.xpose.msra.mxu0 0.0
    %3652 = vmatprep.subr.mxu0 0.0
    %3653 = vmatpush2.xpose.msra.mxu0 0.0
    %3654 = vmatprep.subr.mxu0 0.0
    %3655 = vmatpush2.xpose.msra.mxu0 0.0
    %3656 = vmatprep.subr.mxu0 0.0
    %3657 = vmatpush2.xpose.msra.mxu0 0.0
    %3658 = vmatprep.subr.mxu0 0.0
    %3659 = vmatpush2.xpose.msra.mxu0 0.0
    %3660 = vmatprep.subr.mxu0 0.0
    %3661 = vmatpush2.xpose.msra.mxu0 0.0
    %3662 = vmatprep.mubr.f32.mxu0 0.0
    %3663 = vmatmul.mubr.f32.gmra.mxu0 %v3593
    %v3664 = vpop.f32.mrf.mxu0
    %v3665 = vadd.f32 0.0, %v3664
    %v3666 = vpop.f32.mrf.mxu0
    %3667 = vdwg.mxu0
    %v3669 = vsel %vm401, %v3512, 0
    %v3672 = vsel %vm401, %v3447, 0
    %3674 = vmatprep.subr.mxu0 0.0
    %3675 = vmatpush1.xpose.msra.mxu0 0.0
    %3676 = vmatprep.subr.mxu0 0.0
    %3677 = vmatpush1.xpose.msra.mxu0 0.0
    %3678 = vmatprep.subr.mxu0 0.0
    %3679 = vmatpush1.xpose.msra.mxu0 0.0
    %3680 = vmatprep.subr.mxu0 0.0
    %3681 = vmatpush1.xpose.msra.mxu0 0.0
    %3682 = vmatprep.subr.mxu0 0.0
    %3683 = vmatpush1.xpose.msra.mxu0 0.0
    %3684 = vmatprep.subr.mxu0 0.0
    %3685 = vmatpush1.xpose.msra.mxu0 0.0
    %3686 = vmatprep.subr.mxu0 0.0
    %3687 = vmatpush1.xpose.msra.mxu0 0.0
    %3688 = vmatprep.subr.mxu0 0.0
    %3689 = vmatpush1.xpose.msra.mxu0 0.0
    %3690 = vmatprep.subr.mxu0 0.0
    %3691 = vmatpush1.xpose.msra.mxu0 0.0
    %3692 = vmatprep.subr.mxu0 0.0
    %3693 = vmatpush1.xpose.msra.mxu0 0.0
    %3694 = vmatprep.subr.mxu0 0.0
    %3695 = vmatpush1.xpose.msra.mxu0 0.0
    %3696 = vmatprep.subr.mxu0 0.0
    %3697 = vmatpush1.xpose.msra.mxu0 0.0
    %3698 = vmatprep.subr.mxu0 0.0
    %3699 = vmatpush1.xpose.msra.mxu0 0.0
    %3700 = vmatprep.subr.mxu0 0.0
    %3701 = vmatpush1.xpose.msra.mxu0 0.0
    %3702 = vmatprep.subr.mxu0 0.0
    %3703 = vmatpush1.xpose.msra.mxu0 0.0
    %3704 = vmatprep.subr.mxu0 0.0
    %3705 = vmatpush1.xpose.msra.mxu0 %v3672
    %3706 = vmatprep.subr.mxu0 0.0
    %3707 = vmatpush2.xpose.msra.mxu0 0.0
    %3708 = vmatprep.subr.mxu0 0.0
    %3709 = vmatpush2.xpose.msra.mxu0 0.0
    %3710 = vmatprep.subr.mxu0 0.0
    %3711 = vmatpush2.xpose.msra.mxu0 0.0
    %3712 = vmatprep.subr.mxu0 0.0
    %3713 = vmatpush2.xpose.msra.mxu0 0.0
    %3714 = vmatprep.subr.mxu0 0.0
    %3715 = vmatpush2.xpose.msra.mxu0 0.0
    %3716 = vmatprep.subr.mxu0 0.0
    %3717 = vmatpush2.xpose.msra.mxu0 0.0
    %3718 = vmatprep.subr.mxu0 0.0
    %3719 = vmatpush2.xpose.msra.mxu0 0.0
    %3720 = vmatprep.subr.mxu0 0.0
    %3721 = vmatpush2.xpose.msra.mxu0 0.0
    %3722 = vmatprep.subr.mxu0 0.0
    %3723 = vmatpush2.xpose.msra.mxu0 0.0
    %3724 = vmatprep.subr.mxu0 0.0
    %3725 = vmatpush2.xpose.msra.mxu0 0.0
    %3726 = vmatprep.subr.mxu0 0.0
    %3727 = vmatpush2.xpose.msra.mxu0 0.0
    %3728 = vmatprep.subr.mxu0 0.0
    %3729 = vmatpush2.xpose.msra.mxu0 0.0
    %3730 = vmatprep.subr.mxu0 0.0
    %3731 = vmatpush2.xpose.msra.mxu0 0.0
    %3732 = vmatprep.subr.mxu0 0.0
    %3733 = vmatpush2.xpose.msra.mxu0 0.0
    %3734 = vmatprep.subr.mxu0 0.0
    %3735 = vmatpush2.xpose.msra.mxu0 0.0
    %3736 = vmatprep.subr.mxu0 0.0
    %3737 = vmatpush2.xpose.msra.mxu0 0.0
    %3738 = vmatprep.mubr.f32.mxu0 0.0
    %3739 = vmatmul.mubr.f32.gmra.mxu0 %v3669
    %v3740 = vpop.f32.mrf.mxu0
    %v3741 = vadd.f32 0.0, %v3740
    %v3742 = vpop.f32.mrf.mxu0
    %3743 = vdwg.mxu0
    %v3745 = vsel %vm401, %v3544, 0
    %v3748 = vsel %vm401, %v3449, 0
    %3750 = vmatprep.subr.mxu0 0.0
    %3751 = vmatpush1.xpose.msra.mxu0 0.0
    %3752 = vmatprep.subr.mxu0 0.0
    %3753 = vmatpush1.xpose.msra.mxu0 0.0
    %3754 = vmatprep.subr.mxu0 0.0
    %3755 = vmatpush1.xpose.msra.mxu0 0.0
    %3756 = vmatprep.subr.mxu0 0.0
    %3757 = vmatpush1.xpose.msra.mxu0 0.0
    %3758 = vmatprep.subr.mxu0 0.0
    %3759 = vmatpush1.xpose.msra.mxu0 0.0
    %3760 = vmatprep.subr.mxu0 0.0
    %3761 = vmatpush1.xpose.msra.mxu0 0.0
    %3762 = vmatprep.subr.mxu0 0.0
    %3763 = vmatpush1.xpose.msra.mxu0 0.0
    %3764 = vmatprep.subr.mxu0 0.0
    %3765 = vmatpush1.xpose.msra.mxu0 0.0
    %3766 = vmatprep.subr.mxu0 0.0
    %3767 = vmatpush1.xpose.msra.mxu0 0.0
    %3768 = vmatprep.subr.mxu0 0.0
    %3769 = vmatpush1.xpose.msra.mxu0 0.0
    %3770 = vmatprep.subr.mxu0 0.0
    %3771 = vmatpush1.xpose.msra.mxu0 0.0
    %3772 = vmatprep.subr.mxu0 0.0
    %3773 = vmatpush1.xpose.msra.mxu0 0.0
    %3774 = vmatprep.subr.mxu0 0.0
    %3775 = vmatpush1.xpose.msra.mxu0 0.0
    %3776 = vmatprep.subr.mxu0 0.0
    %3777 = vmatpush1.xpose.msra.mxu0 0.0
    %3778 = vmatprep.subr.mxu0 0.0
    %3779 = vmatpush1.xpose.msra.mxu0 0.0
    %3780 = vmatprep.subr.mxu0 0.0
    %3781 = vmatpush1.xpose.msra.mxu0 %v3748
    %3782 = vmatprep.subr.mxu0 0.0
    %3783 = vmatpush2.xpose.msra.mxu0 0.0
    %3784 = vmatprep.subr.mxu0 0.0
    %3785 = vmatpush2.xpose.msra.mxu0 0.0
    %3786 = vmatprep.subr.mxu0 0.0
    %3787 = vmatpush2.xpose.msra.mxu0 0.0
    %3788 = vmatprep.subr.mxu0 0.0
    %3789 = vmatpush2.xpose.msra.mxu0 0.0
    %3790 = vmatprep.subr.mxu0 0.0
    %3791 = vmatpush2.xpose.msra.mxu0 0.0
    %3792 = vmatprep.subr.mxu0 0.0
    %3793 = vmatpush2.xpose.msra.mxu0 0.0
    %3794 = vmatprep.subr.mxu0 0.0
    %3795 = vmatpush2.xpose.msra.mxu0 0.0
    %3796 = vmatprep.subr.mxu0 0.0
    %3797 = vmatpush2.xpose.msra.mxu0 0.0
    %3798 = vmatprep.subr.mxu0 0.0
    %3799 = vmatpush2.xpose.msra.mxu0 0.0
    %3800 = vmatprep.subr.mxu0 0.0
    %3801 = vmatpush2.xpose.msra.mxu0 0.0
    %3802 = vmatprep.subr.mxu0 0.0
    %3803 = vmatpush2.xpose.msra.mxu0 0.0
    %3804 = vmatprep.subr.mxu0 0.0
    %3805 = vmatpush2.xpose.msra.mxu0 0.0
    %3806 = vmatprep.subr.mxu0 0.0
    %3807 = vmatpush2.xpose.msra.mxu0 0.0
    %3808 = vmatprep.subr.mxu0 0.0
    %3809 = vmatpush2.xpose.msra.mxu0 0.0
    %3810 = vmatprep.subr.mxu0 0.0
    %3811 = vmatpush2.xpose.msra.mxu0 0.0
    %3812 = vmatprep.subr.mxu0 0.0
    %3813 = vmatpush2.xpose.msra.mxu0 0.0
    %3814 = vmatprep.mubr.f32.mxu0 0.0
    %3815 = vmatmul.mubr.f32.gmra.mxu0 %v3745
    %v3816 = vpop.f32.mrf.mxu0
    %v3817 = vadd.f32 0.0, %v3816
    %v3818 = vpop.f32.mrf.mxu0
    %3819 = vdwg.mxu0
    %v3821 = vsel %vm401, %v3576, 0
    %v3824 = vsel %vm401, %v3451, 0
    %3826 = vmatprep.subr.mxu0 0.0
    %3827 = vmatpush1.xpose.msra.mxu0 0.0
    %3828 = vmatprep.subr.mxu0 0.0
    %3829 = vmatpush1.xpose.msra.mxu0 0.0
    %3830 = vmatprep.subr.mxu0 0.0
    %3831 = vmatpush1.xpose.msra.mxu0 0.0
    %3832 = vmatprep.subr.mxu0 0.0
    %3833 = vmatpush1.xpose.msra.mxu0 0.0
    %3834 = vmatprep.subr.mxu0 0.0
    %3835 = vmatpush1.xpose.msra.mxu0 0.0
    %3836 = vmatprep.subr.mxu0 0.0
    %3837 = vmatpush1.xpose.msra.mxu0 0.0
    %3838 = vmatprep.subr.mxu0 0.0
    %3839 = vmatpush1.xpose.msra.mxu0 0.0
    %3840 = vmatprep.subr.mxu0 0.0
    %3841 = vmatpush1.xpose.msra.mxu0 0.0
    %3842 = vmatprep.subr.mxu0 0.0
    %3843 = vmatpush1.xpose.msra.mxu0 0.0
    %3844 = vmatprep.subr.mxu0 0.0
    %3845 = vmatpush1.xpose.msra.mxu0 0.0
    %3846 = vmatprep.subr.mxu0 0.0
    %3847 = vmatpush1.xpose.msra.mxu0 0.0
    %3848 = vmatprep.subr.mxu0 0.0
    %3849 = vmatpush1.xpose.msra.mxu0 0.0
    %3850 = vmatprep.subr.mxu0 0.0
    %3851 = vmatpush1.xpose.msra.mxu0 0.0
    %3852 = vmatprep.subr.mxu0 0.0
    %3853 = vmatpush1.xpose.msra.mxu0 0.0
    %3854 = vmatprep.subr.mxu0 0.0
    %3855 = vmatpush1.xpose.msra.mxu0 0.0
    %3856 = vmatprep.subr.mxu0 0.0
    %3857 = vmatpush1.xpose.msra.mxu0 %v3824
    %3858 = vmatprep.subr.mxu0 0.0
    %3859 = vmatpush2.xpose.msra.mxu0 0.0
    %3860 = vmatprep.subr.mxu0 0.0
    %3861 = vmatpush2.xpose.msra.mxu0 0.0
    %3862 = vmatprep.subr.mxu0 0.0
    %3863 = vmatpush2.xpose.msra.mxu0 0.0
    %3864 = vmatprep.subr.mxu0 0.0
    %3865 = vmatpush2.xpose.msra.mxu0 0.0
    %3866 = vmatprep.subr.mxu0 0.0
    %3867 = vmatpush2.xpose.msra.mxu0 0.0
    %3868 = vmatprep.subr.mxu0 0.0
    %3869 = vmatpush2.xpose.msra.mxu0 0.0
    %3870 = vmatprep.subr.mxu0 0.0
    %3871 = vmatpush2.xpose.msra.mxu0 0.0
    %3872 = vmatprep.subr.mxu0 0.0
    %3873 = vmatpush2.xpose.msra.mxu0 0.0
    %3874 = vmatprep.subr.mxu0 0.0
    %3875 = vmatpush2.xpose.msra.mxu0 0.0
    %3876 = vmatprep.subr.mxu0 0.0
    %3877 = vmatpush2.xpose.msra.mxu0 0.0
    %3878 = vmatprep.subr.mxu0 0.0
    %3879 = vmatpush2.xpose.msra.mxu0 0.0
    %3880 = vmatprep.subr.mxu0 0.0
    %3881 = vmatpush2.xpose.msra.mxu0 0.0
    %3882 = vmatprep.subr.mxu0 0.0
    %3883 = vmatpush2.xpose.msra.mxu0 0.0
    %3884 = vmatprep.subr.mxu0 0.0
    %3885 = vmatpush2.xpose.msra.mxu0 0.0
    %3886 = vmatprep.subr.mxu0 0.0
    %3887 = vmatpush2.xpose.msra.mxu0 0.0
    %3888 = vmatprep.subr.mxu0 0.0
    %3889 = vmatpush2.xpose.msra.mxu0 0.0
    %3890 = vmatprep.mubr.f32.mxu0 0.0
    %3891 = vmatmul.mubr.f32.gmra.mxu0 %v3821
    %v3892 = vpop.f32.mrf.mxu0
    %v3893 = vadd.f32 0.0, %v3892
    %v3894 = vpop.f32.mrf.mxu0
    %3895 = vdwg.mxu0
    %3896 = vxpose.xlu0.b32.start [1/16] %v3665, 128
    %3897 = vxpose.xlu0.b32.cont [2/16] 0.0, 128
    %3898 = vxpose.xlu0.b32.cont [3/16] 0.0, 128
    %3899 = vxpose.xlu0.b32.cont [4/16] 0.0, 128
    %3900 = vxpose.xlu0.b32.cont [5/16] 0.0, 128
    %3901 = vxpose.xlu0.b32.cont [6/16] 0.0, 128
    %3902 = vxpose.xlu0.b32.cont [7/16] 0.0, 128
    %3903 = vxpose.xlu0.b32.cont [8/16] 0.0, 128
    %3904 = vxpose.xlu0.b32.cont [9/16] 0.0, 128
    %3905 = vxpose.xlu0.b32.cont [10/16] 0.0, 128
    %3906 = vxpose.xlu0.b32.cont [11/16] 0.0, 128
    %3907 = vxpose.xlu0.b32.cont [12/16] 0.0, 128
    %3908 = vxpose.xlu0.b32.cont [13/16] 0.0, 128
    %3909 = vxpose.xlu0.b32.cont [14/16] 0.0, 128
    %3910 = vxpose.xlu0.b32.cont [15/16] 0.0, 128
    %3911 = vxpose.xlu0.b32.end [16/16] 0.0, 128
    %v3912 = vpop.trf.xlu0
    %v3913 = vpop.trf.xlu0
    %v3914 = vpop.trf.xlu0
    %v3915 = vpop.trf.xlu0
    %v3916 = vpop.trf.xlu0
    %v3917 = vpop.trf.xlu0
    %v3918 = vpop.trf.xlu0
    %v3919 = vpop.trf.xlu0
    %v3920 = vpop.trf.xlu0
    %v3921 = vpop.trf.xlu0
    %v3922 = vpop.trf.xlu0
    %v3923 = vpop.trf.xlu0
    %v3924 = vpop.trf.xlu0
    %v3925 = vpop.trf.xlu0
    %v3926 = vpop.trf.xlu0
    %v3927 = vpop.trf.xlu0
    %3928 = vxpose.xlu0.b32.start [1/16] %v3741, 128
    %3929 = vxpose.xlu0.b32.cont [2/16] 0.0, 128
    %3930 = vxpose.xlu0.b32.cont [3/16] 0.0, 128
    %3931 = vxpose.xlu0.b32.cont [4/16] 0.0, 128
    %3932 = vxpose.xlu0.b32.cont [5/16] 0.0, 128
    %3933 = vxpose.xlu0.b32.cont [6/16] 0.0, 128
    %3934 = vxpose.xlu0.b32.cont [7/16] 0.0, 128
    %3935 = vxpose.xlu0.b32.cont [8/16] 0.0, 128
    %3936 = vxpose.xlu0.b32.cont [9/16] 0.0, 128
    %3937 = vxpose.xlu0.b32.cont [10/16] 0.0, 128
    %3938 = vxpose.xlu0.b32.cont [11/16] 0.0, 128
    %3939 = vxpose.xlu0.b32.cont [12/16] 0.0, 128
    %3940 = vxpose.xlu0.b32.cont [13/16] 0.0, 128
    %3941 = vxpose.xlu0.b32.cont [14/16] 0.0, 128
    %3942 = vxpose.xlu0.b32.cont [15/16] 0.0, 128
    %3943 = vxpose.xlu0.b32.end [16/16] 0.0, 128
    %v3944 = vpop.trf.xlu0
    %v3945 = vpop.trf.xlu0
    %v3946 = vpop.trf.xlu0
    %v3947 = vpop.trf.xlu0
    %v3948 = vpop.trf.xlu0
    %v3949 = vpop.trf.xlu0
    %v3950 = vpop.trf.xlu0
    %v3951 = vpop.trf.xlu0
    %v3952 = vpop.trf.xlu0
    %v3953 = vpop.trf.xlu0
    %v3954 = vpop.trf.xlu0
    %v3955 = vpop.trf.xlu0
    %v3956 = vpop.trf.xlu0
    %v3957 = vpop.trf.xlu0
    %v3958 = vpop.trf.xlu0
    %v3959 = vpop.trf.xlu0
    %3960 = vxpose.xlu0.b32.start [1/16] %v3817, 128
    %3961 = vxpose.xlu0.b32.cont [2/16] 0.0, 128
    %3962 = vxpose.xlu0.b32.cont [3/16] 0.0, 128
    %3963 = vxpose.xlu0.b32.cont [4/16] 0.0, 128
    %3964 = vxpose.xlu0.b32.cont [5/16] 0.0, 128
    %3965 = vxpose.xlu0.b32.cont [6/16] 0.0, 128
    %3966 = vxpose.xlu0.b32.cont [7/16] 0.0, 128
    %3967 = vxpose.xlu0.b32.cont [8/16] 0.0, 128
    %3968 = vxpose.xlu0.b32.cont [9/16] 0.0, 128
    %3969 = vxpose.xlu0.b32.cont [10/16] 0.0, 128
    %3970 = vxpose.xlu0.b32.cont [11/16] 0.0, 128
    %3971 = vxpose.xlu0.b32.cont [12/16] 0.0, 128
    %3972 = vxpose.xlu0.b32.cont [13/16] 0.0, 128
    %3973 = vxpose.xlu0.b32.cont [14/16] 0.0, 128
    %3974 = vxpose.xlu0.b32.cont [15/16] 0.0, 128
    %3975 = vxpose.xlu0.b32.end [16/16] 0.0, 128
    %v3976 = vpop.trf.xlu0
    %v3977 = vpop.trf.xlu0
    %v3978 = vpop.trf.xlu0
    %v3979 = vpop.trf.xlu0
    %v3980 = vpop.trf.xlu0
    %v3981 = vpop.trf.xlu0
    %v3982 = vpop.trf.xlu0
    %v3983 = vpop.trf.xlu0
    %v3984 = vpop.trf.xlu0
    %v3985 = vpop.trf.xlu0
    %v3986 = vpop.trf.xlu0
    %v3987 = vpop.trf.xlu0
    %v3988 = vpop.trf.xlu0
    %v3989 = vpop.trf.xlu0
    %v3990 = vpop.trf.xlu0
    %v3991 = vpop.trf.xlu0
    %3992 = vxpose.xlu0.b32.start [1/16] %v3893, 128
    %3993 = vxpose.xlu0.b32.cont [2/16] 0.0, 128
    %3994 = vxpose.xlu0.b32.cont [3/16] 0.0, 128
    %3995 = vxpose.xlu0.b32.cont [4/16] 0.0, 128
    %3996 = vxpose.xlu0.b32.cont [5/16] 0.0, 128
    %3997 = vxpose.xlu0.b32.cont [6/16] 0.0, 128
    %3998 = vxpose.xlu0.b32.cont [7/16] 0.0, 128
    %3999 = vxpose.xlu0.b32.cont [8/16] 0.0, 128
    %4000 = vxpose.xlu0.b32.cont [9/16] 0.0, 128
    %4001 = vxpose.xlu0.b32.cont [10/16] 0.0, 128
    %4002 = vxpose.xlu0.b32.cont [11/16] 0.0, 128
    %4003 = vxpose.xlu0.b32.cont [12/16] 0.0, 128
    %4004 = vxpose.xlu0.b32.cont [13/16] 0.0, 128
    %4005 = vxpose.xlu0.b32.cont [14/16] 0.0, 128
    %4006 = vxpose.xlu0.b32.cont [15/16] 0.0, 128
    %4007 = vxpose.xlu0.b32.end [16/16] 0.0, 128
    %v4008 = vpop.trf.xlu0
    %v4009 = vpop.trf.xlu0
    %v4010 = vpop.trf.xlu0
    %v4011 = vpop.trf.xlu0
    %v4012 = vpop.trf.xlu0
    %v4013 = vpop.trf.xlu0
    %v4014 = vpop.trf.xlu0
    %v4015 = vpop.trf.xlu0
    %v4016 = vpop.trf.xlu0
    %v4017 = vpop.trf.xlu0
    %v4018 = vpop.trf.xlu0
    %v4019 = vpop.trf.xlu0
    %v4020 = vpop.trf.xlu0
    %v4021 = vpop.trf.xlu0
    %v4022 = vpop.trf.xlu0
    %v4023 = vpop.trf.xlu0
    %v4024 = vcombine.low %v3912, %v3976
    %v4025 = vcombine.high %v3912, %v3976
    %v4027 = vunpack.c.l.s4 1983009808
    %v4028 = vunpack.c.0.s8 %v4027
    %v4029 = vlaneseq
    %v4030 = vshrl.u32 %v4029, 7
    %v4031 = vsub.s32 %v4028, %v4030
    %v4032 = vrot.slane %v4024, %v4031
    %v4034 = vunpack.c.l.s4 1983009808
    %v4035 = vunpack.c.0.s8 %v4034
    %v4036 = vlaneseq
    %v4037 = vshrl.u32 %v4036, 7
    %v4038 = vsub.s32 %v4035, %v4037
    %v4039 = vrot.slane %v4025, %v4038
    %v4040 = vcombine.low %v3944, %v4008
    %v4041 = vcombine.high %v3944, %v4008
    %v4043 = vunpack.c.l.s4 1983009808
    %v4044 = vunpack.c.0.s8 %v4043
    %v4045 = vlaneseq
    %v4046 = vshrl.u32 %v4045, 7
    %v4047 = vsub.s32 %v4044, %v4046
    %v4048 = vrot.slane %v4040, %v4047
    %v4050 = vunpack.c.l.s4 1983009808
    %v4051 = vunpack.c.0.s8 %v4050
    %v4052 = vlaneseq
    %v4053 = vshrl.u32 %v4052, 7
    %v4054 = vsub.s32 %v4051, %v4053
    %v4055 = vrot.slane %v4041, %v4054
    %v4056 = vcombine.low %v4032, %v4048
    %v4057 = vcombine.high %v4032, %v4048
    %v4059 = vunpack.c.l.s4 1934713408
    %v4060 = vunpack.c.0.s8 %v4059
    %v4061 = vlaneseq
    %v4062 = vshrl.u32 %v4061, 7
    %v4063 = vsub.s32 %v4060, %v4062
    %v4064 = vrot.slane %v4056, %v4063
    %v4066 = vunpack.c.l.s4 1934713408
    %v4067 = vunpack.c.0.s8 %v4066
    %v4068 = vlaneseq
    %v4069 = vshrl.u32 %v4068, 7
    %v4070 = vsub.s32 %v4067, %v4069
    %v4071 = vrot.slane %v4057, %v4070
    %v4072 = vcombine.low %v4039, %v4055
    %v4073 = vcombine.high %v4039, %v4055
    %v4075 = vunpack.c.l.s4 1934713408
    %v4076 = vunpack.c.0.s8 %v4075
    %v4077 = vlaneseq
    %v4078 = vshrl.u32 %v4077, 7
    %v4079 = vsub.s32 %v4076, %v4078
    %v4080 = vrot.slane %v4072, %v4079
    %v4082 = vunpack.c.l.s4 1934713408
    %v4083 = vunpack.c.0.s8 %v4082
    %v4084 = vlaneseq
    %v4085 = vshrl.u32 %v4084, 7
    %v4086 = vsub.s32 %v4083, %v4085
    %v4087 = vrot.slane %v4073, %v4086
    %v4088 = vcombine.high %v4064, 0.0
    %v4089 = vcombine.high %v4071, 0.0
    %v4090 = vcombine.high %v4080, 0.0
    %v4091 = vcombine.high %v4087, 0.0
    %v4092 = vcombine.low %v4064, %v4071
    %v4094 = vunpack.c.l.s4 1983009808
    %v4095 = vunpack.c.0.s8 %v4094
    %v4096 = vlaneseq
    %v4097 = vshrl.u32 %v4096, 7
    %v4098 = vsub.s32 %v4095, %v4097
    %v4099 = vrot.slane %v4092, %v4098
    %v4100 = vcombine.low %v4088, %v4089
    %v4102 = vunpack.c.l.s4 1983009808
    %v4103 = vunpack.c.0.s8 %v4102
    %v4104 = vlaneseq
    %v4105 = vshrl.u32 %v4104, 7
    %v4106 = vsub.s32 %v4103, %v4105
    %v4107 = vrot.slane %v4100, %v4106
    %v4108 = vcombine.low %v4080, %v4087
    %v4110 = vunpack.c.l.s4 1983009808
    %v4111 = vunpack.c.0.s8 %v4110
    %v4112 = vlaneseq
    %v4113 = vshrl.u32 %v4112, 7
    %v4114 = vsub.s32 %v4111, %v4113
    %v4115 = vrot.slane %v4108, %v4114
    %v4116 = vcombine.low %v4090, %v4091
    %v4118 = vunpack.c.l.s4 1983009808
    %v4119 = vunpack.c.0.s8 %v4118
    %v4120 = vlaneseq
    %v4121 = vshrl.u32 %v4120, 7
    %v4122 = vsub.s32 %v4119, %v4121
    %v4123 = vrot.slane %v4116, %v4122
    %v4124 = vcombine.low %v4099, %v4107
    %v4125 = vcombine.high %v4099, %v4107
    %v4127 = vunpack.c.l.s4 1934713408
    %v4128 = vunpack.c.0.s8 %v4127
    %v4129 = vlaneseq
    %v4130 = vshrl.u32 %v4129, 7
    %v4131 = vsub.s32 %v4128, %v4130
    %v4132 = vrot.slane %v4124, %v4131
    %v4134 = vunpack.c.l.s4 1934713408
    %v4135 = vunpack.c.0.s8 %v4134
    %v4136 = vlaneseq
    %v4137 = vshrl.u32 %v4136, 7
    %v4138 = vsub.s32 %v4135, %v4137
    %v4139 = vrot.slane %v4125, %v4138
    %v4140 = vcombine.low %v4115, %v4123
    %v4141 = vcombine.high %v4115, %v4123
    %v4143 = vunpack.c.l.s4 1934713408
    %v4144 = vunpack.c.0.s8 %v4143
    %v4145 = vlaneseq
    %v4146 = vshrl.u32 %v4145, 7
    %v4147 = vsub.s32 %v4144, %v4146
    %v4148 = vrot.slane %v4140, %v4147
    %v4150 = vunpack.c.l.s4 1934713408
    %v4151 = vunpack.c.0.s8 %v4150
    %v4152 = vlaneseq
    %v4153 = vshrl.u32 %v4152, 7
    %v4154 = vsub.s32 %v4151, %v4153
    %v4155 = vrot.slane %v4141, %v4154
    %v4156 = vcombine.low %v4132, %v4148
    %v4157 = vcombine.high %v4132, %v4148
    %v4158 = vcombine.low %v4139, %v4155
    %v4159 = vcombine.high %v4139, %v4155
    %4161 = vrot.lane.b32.xlu0 %v4157, 8
    %v4162 = vpop.permute.xlu0 %4161
    %4165 = vrot.lane.b32.xlu0 %v4158, 16
    %v4166 = vpop.permute.xlu0 %4165
    %4169 = vrot.lane.b32.xlu0 %v4159, 24
    %v4170 = vpop.permute.xlu0 %4169
    %v4172 = vsel %vm401, %v4156, %v4162
    %v4173 = vsel %vm1455, %v4172, %v4166
    %v4174 = vsel %vm1457, %v4173, %v4170
    %4176 = vrot.lane.b32.xlu0 %v2876, 120
    %v4177 = vpop.permute.xlu0 %4176
    %4178 = vrot.lane.b32.xlu0 %v2876, 112
    %v4179 = vpop.permute.xlu0 %4178
    %4180 = vrot.lane.b32.xlu0 %v2876, 104
    %v4181 = vpop.permute.xlu0 %4180
    %4183 = vrot.lane.b32.xlu0 %v2968, 120
    %v4184 = vpop.permute.xlu0 %4183
    %4186 = vrot.lane.b32.xlu0 %v2968, 112
    %v4187 = vpop.permute.xlu0 %4186
    %4189 = vrot.lane.b32.xlu0 %v2968, 104
    %v4190 = vpop.permute.xlu0 %4189
    %4192 = vxpose.xlu0.b32.start [1/16] %v2968, 128
    %4193 = vxpose.xlu0.b32.cont [2/16] 0.0, 128
    %4194 = vxpose.xlu0.b32.cont [3/16] 0.0, 128
    %4195 = vxpose.xlu0.b32.cont [4/16] 0.0, 128
    %4196 = vxpose.xlu0.b32.cont [5/16] 0.0, 128
    %4197 = vxpose.xlu0.b32.cont [6/16] 0.0, 128
    %4198 = vxpose.xlu0.b32.cont [7/16] 0.0, 128
    %4199 = vxpose.xlu0.b32.cont [8/16] 0.0, 128
    %4200 = vxpose.xlu0.b32.cont [9/16] 0.0, 128
    %4201 = vxpose.xlu0.b32.cont [10/16] 0.0, 128
    %4202 = vxpose.xlu0.b32.cont [11/16] 0.0, 128
    %4203 = vxpose.xlu0.b32.cont [12/16] 0.0, 128
    %4204 = vxpose.xlu0.b32.cont [13/16] 0.0, 128
    %4205 = vxpose.xlu0.b32.cont [14/16] 0.0, 128
    %4206 = vxpose.xlu0.b32.cont [15/16] 0.0, 128
    %4207 = vxpose.xlu0.b32.end [16/16] 0.0, 128
    %v4208 = vpop.trf.xlu0
    %v4209 = vpop.trf.xlu0
    %v4210 = vpop.trf.xlu0
    %v4211 = vpop.trf.xlu0
    %v4212 = vpop.trf.xlu0
    %v4213 = vpop.trf.xlu0
    %v4214 = vpop.trf.xlu0
    %v4215 = vpop.trf.xlu0
    %v4216 = vpop.trf.xlu0
    %v4217 = vpop.trf.xlu0
    %v4218 = vpop.trf.xlu0
    %v4219 = vpop.trf.xlu0
    %v4220 = vpop.trf.xlu0
    %v4221 = vpop.trf.xlu0
    %v4222 = vpop.trf.xlu0
    %v4223 = vpop.trf.xlu0
    %4224 = vxpose.xlu0.b32.start [1/16] %v4184, 128
    %4225 = vxpose.xlu0.b32.cont [2/16] 0.0, 128
    %4226 = vxpose.xlu0.b32.cont [3/16] 0.0, 128
    %4227 = vxpose.xlu0.b32.cont [4/16] 0.0, 128
    %4228 = vxpose.xlu0.b32.cont [5/16] 0.0, 128
    %4229 = vxpose.xlu0.b32.cont [6/16] 0.0, 128
    %4230 = vxpose.xlu0.b32.cont [7/16] 0.0, 128
    %4231 = vxpose.xlu0.b32.cont [8/16] 0.0, 128
    %4232 = vxpose.xlu0.b32.cont [9/16] 0.0, 128
    %4233 = vxpose.xlu0.b32.cont [10/16] 0.0, 128
    %4234 = vxpose.xlu0.b32.cont [11/16] 0.0, 128
    %4235 = vxpose.xlu0.b32.cont [12/16] 0.0, 128
    %4236 = vxpose.xlu0.b32.cont [13/16] 0.0, 128
    %4237 = vxpose.xlu0.b32.cont [14/16] 0.0, 128
    %4238 = vxpose.xlu0.b32.cont [15/16] 0.0, 128
    %4239 = vxpose.xlu0.b32.end [16/16] 0.0, 128
    %v4240 = vpop.trf.xlu0
    %v4241 = vpop.trf.xlu0
    %v4242 = vpop.trf.xlu0
    %v4243 = vpop.trf.xlu0
    %v4244 = vpop.trf.xlu0
    %v4245 = vpop.trf.xlu0
    %v4246 = vpop.trf.xlu0
    %v4247 = vpop.trf.xlu0
    %v4248 = vpop.trf.xlu0
    %v4249 = vpop.trf.xlu0
    %v4250 = vpop.trf.xlu0
    %v4251 = vpop.trf.xlu0
    %v4252 = vpop.trf.xlu0
    %v4253 = vpop.trf.xlu0
    %v4254 = vpop.trf.xlu0
    %v4255 = vpop.trf.xlu0
    %4256 = vxpose.xlu0.b32.start [1/16] %v4187, 128
    %4257 = vxpose.xlu0.b32.cont [2/16] 0.0, 128
    %4258 = vxpose.xlu0.b32.cont [3/16] 0.0, 128
    %4259 = vxpose.xlu0.b32.cont [4/16] 0.0, 128
    %4260 = vxpose.xlu0.b32.cont [5/16] 0.0, 128
    %4261 = vxpose.xlu0.b32.cont [6/16] 0.0, 128
    %4262 = vxpose.xlu0.b32.cont [7/16] 0.0, 128
    %4263 = vxpose.xlu0.b32.cont [8/16] 0.0, 128
    %4264 = vxpose.xlu0.b32.cont [9/16] 0.0, 128
    %4265 = vxpose.xlu0.b32.cont [10/16] 0.0, 128
    %4266 = vxpose.xlu0.b32.cont [11/16] 0.0, 128
    %4267 = vxpose.xlu0.b32.cont [12/16] 0.0, 128
    %4268 = vxpose.xlu0.b32.cont [13/16] 0.0, 128
    %4269 = vxpose.xlu0.b32.cont [14/16] 0.0, 128
    %4270 = vxpose.xlu0.b32.cont [15/16] 0.0, 128
    %4271 = vxpose.xlu0.b32.end [16/16] 0.0, 128
    %v4272 = vpop.trf.xlu0
    %v4273 = vpop.trf.xlu0
    %v4274 = vpop.trf.xlu0
    %v4275 = vpop.trf.xlu0
    %v4276 = vpop.trf.xlu0
    %v4277 = vpop.trf.xlu0
    %v4278 = vpop.trf.xlu0
    %v4279 = vpop.trf.xlu0
    %v4280 = vpop.trf.xlu0
    %v4281 = vpop.trf.xlu0
    %v4282 = vpop.trf.xlu0
    %v4283 = vpop.trf.xlu0
    %v4284 = vpop.trf.xlu0
    %v4285 = vpop.trf.xlu0
    %v4286 = vpop.trf.xlu0
    %v4287 = vpop.trf.xlu0
    %4288 = vxpose.xlu0.b32.start [1/16] %v4190, 128
    %4289 = vxpose.xlu0.b32.cont [2/16] 0.0, 128
    %4290 = vxpose.xlu0.b32.cont [3/16] 0.0, 128
    %4291 = vxpose.xlu0.b32.cont [4/16] 0.0, 128
    %4292 = vxpose.xlu0.b32.cont [5/16] 0.0, 128
    %4293 = vxpose.xlu0.b32.cont [6/16] 0.0, 128
    %4294 = vxpose.xlu0.b32.cont [7/16] 0.0, 128
    %4295 = vxpose.xlu0.b32.cont [8/16] 0.0, 128
    %4296 = vxpose.xlu0.b32.cont [9/16] 0.0, 128
    %4297 = vxpose.xlu0.b32.cont [10/16] 0.0, 128
    %4298 = vxpose.xlu0.b32.cont [11/16] 0.0, 128
    %4299 = vxpose.xlu0.b32.cont [12/16] 0.0, 128
    %4300 = vxpose.xlu0.b32.cont [13/16] 0.0, 128
    %4301 = vxpose.xlu0.b32.cont [14/16] 0.0, 128
    %4302 = vxpose.xlu0.b32.cont [15/16] 0.0, 128
    %4303 = vxpose.xlu0.b32.end [16/16] 0.0, 128
    %v4304 = vpop.trf.xlu0
    %v4305 = vpop.trf.xlu0
    %v4306 = vpop.trf.xlu0
    %v4307 = vpop.trf.xlu0
    %v4308 = vpop.trf.xlu0
    %v4309 = vpop.trf.xlu0
    %v4310 = vpop.trf.xlu0
    %v4311 = vpop.trf.xlu0
    %v4312 = vpop.trf.xlu0
    %v4313 = vpop.trf.xlu0
    %v4314 = vpop.trf.xlu0
    %v4315 = vpop.trf.xlu0
    %v4316 = vpop.trf.xlu0
    %v4317 = vpop.trf.xlu0
    %v4318 = vpop.trf.xlu0
    %v4319 = vpop.trf.xlu0
    %v4320 = vsel %vm401, %v2876, 0
    %4322 = vmatprep.subr.mxu0 0.0
    %4323 = vmatpush1.msra.mxu0 0.0
    %4324 = vmatprep.subr.mxu0 0.0
    %4325 = vmatpush1.msra.mxu0 0.0
    %4326 = vmatprep.subr.mxu0 0.0
    %4327 = vmatpush1.msra.mxu0 0.0
    %4328 = vmatprep.subr.mxu0 0.0
    %4329 = vmatpush1.msra.mxu0 0.0
    %4330 = vmatprep.subr.mxu0 0.0
    %4331 = vmatpush1.msra.mxu0 0.0
    %4332 = vmatprep.subr.mxu0 0.0
    %4333 = vmatpush1.msra.mxu0 0.0
    %4334 = vmatprep.subr.mxu0 0.0
    %4335 = vmatpush1.msra.mxu0 0.0
    %4336 = vmatprep.subr.mxu0 0.0
    %4337 = vmatpush1.msra.mxu0 0.0
    %4338 = vmatprep.subr.mxu0 0.0
    %4339 = vmatpush1.msra.mxu0 0.0
    %4340 = vmatprep.subr.mxu0 0.0
    %4341 = vmatpush1.msra.mxu0 0.0
    %4342 = vmatprep.subr.mxu0 0.0
    %4343 = vmatpush1.msra.mxu0 0.0
    %4344 = vmatprep.subr.mxu0 0.0
    %4345 = vmatpush1.msra.mxu0 0.0
    %4346 = vmatprep.subr.mxu0 0.0
    %4347 = vmatpush1.msra.mxu0 0.0
    %4348 = vmatprep.subr.mxu0 0.0
    %4349 = vmatpush1.msra.mxu0 0.0
    %4350 = vmatprep.subr.mxu0 0.0
    %4351 = vmatpush1.msra.mxu0 0.0
    %4352 = vmatprep.subr.mxu0 0.0
    %4353 = vmatpush1.msra.mxu0 %v4208
    %4354 = vmatprep.subr.mxu0 0.0
    %4355 = vmatpush2.msra.mxu0 0.0
    %4356 = vmatprep.subr.mxu0 0.0
    %4357 = vmatpush2.msra.mxu0 0.0
    %4358 = vmatprep.subr.mxu0 0.0
    %4359 = vmatpush2.msra.mxu0 0.0
    %4360 = vmatprep.subr.mxu0 0.0
    %4361 = vmatpush2.msra.mxu0 0.0
    %4362 = vmatprep.subr.mxu0 0.0
    %4363 = vmatpush2.msra.mxu0 0.0
    %4364 = vmatprep.subr.mxu0 0.0
    %4365 = vmatpush2.msra.mxu0 0.0
    %4366 = vmatprep.subr.mxu0 0.0
    %4367 = vmatpush2.msra.mxu0 0.0
    %4368 = vmatprep.subr.mxu0 0.0
    %4369 = vmatpush2.msra.mxu0 0.0
    %4370 = vmatprep.subr.mxu0 0.0
    %4371 = vmatpush2.msra.mxu0 0.0
    %4372 = vmatprep.subr.mxu0 0.0
    %4373 = vmatpush2.msra.mxu0 0.0
    %4374 = vmatprep.subr.mxu0 0.0
    %4375 = vmatpush2.msra.mxu0 0.0
    %4376 = vmatprep.subr.mxu0 0.0
    %4377 = vmatpush2.msra.mxu0 0.0
    %4378 = vmatprep.subr.mxu0 0.0
    %4379 = vmatpush2.msra.mxu0 0.0
    %4380 = vmatprep.subr.mxu0 0.0
    %4381 = vmatpush2.msra.mxu0 0.0
    %4382 = vmatprep.subr.mxu0 0.0
    %4383 = vmatpush2.msra.mxu0 0.0
    %4384 = vmatprep.subr.mxu0 0.0
    %4385 = vmatpush2.msra.mxu0 0.0
    %4386 = vmatprep.mubr.f32.mxu0 0.0
    %4387 = vmatmul.mubr.f32.gmra.mxu0 %v4320
    %v4388 = vpop.f32.mrf.mxu0
    %v4389 = vadd.f32 0.0, %v4388
    %v4390 = vpop.f32.mrf.mxu0
    %4391 = vdwg.mxu0
    %v4392 = vsel %vm401, %v4177, 0
    %4394 = vmatprep.subr.mxu0 0.0
    %4395 = vmatpush1.msra.mxu0 0.0
    %4396 = vmatprep.subr.mxu0 0.0
    %4397 = vmatpush1.msra.mxu0 0.0
    %4398 = vmatprep.subr.mxu0 0.0
    %4399 = vmatpush1.msra.mxu0 0.0
    %4400 = vmatprep.subr.mxu0 0.0
    %4401 = vmatpush1.msra.mxu0 0.0
    %4402 = vmatprep.subr.mxu0 0.0
    %4403 = vmatpush1.msra.mxu0 0.0
    %4404 = vmatprep.subr.mxu0 0.0
    %4405 = vmatpush1.msra.mxu0 0.0
    %4406 = vmatprep.subr.mxu0 0.0
    %4407 = vmatpush1.msra.mxu0 0.0
    %4408 = vmatprep.subr.mxu0 0.0
    %4409 = vmatpush1.msra.mxu0 0.0
    %4410 = vmatprep.subr.mxu0 0.0
    %4411 = vmatpush1.msra.mxu0 0.0
    %4412 = vmatprep.subr.mxu0 0.0
    %4413 = vmatpush1.msra.mxu0 0.0
    %4414 = vmatprep.subr.mxu0 0.0
    %4415 = vmatpush1.msra.mxu0 0.0
    %4416 = vmatprep.subr.mxu0 0.0
    %4417 = vmatpush1.msra.mxu0 0.0
    %4418 = vmatprep.subr.mxu0 0.0
    %4419 = vmatpush1.msra.mxu0 0.0
    %4420 = vmatprep.subr.mxu0 0.0
    %4421 = vmatpush1.msra.mxu0 0.0
    %4422 = vmatprep.subr.mxu0 0.0
    %4423 = vmatpush1.msra.mxu0 0.0
    %4424 = vmatprep.subr.mxu0 0.0
    %4425 = vmatpush1.msra.mxu0 %v4240
    %4426 = vmatprep.subr.mxu0 0.0
    %4427 = vmatpush2.msra.mxu0 0.0
    %4428 = vmatprep.subr.mxu0 0.0
    %4429 = vmatpush2.msra.mxu0 0.0
    %4430 = vmatprep.subr.mxu0 0.0
    %4431 = vmatpush2.msra.mxu0 0.0
    %4432 = vmatprep.subr.mxu0 0.0
    %4433 = vmatpush2.msra.mxu0 0.0
    %4434 = vmatprep.subr.mxu0 0.0
    %4435 = vmatpush2.msra.mxu0 0.0
    %4436 = vmatprep.subr.mxu0 0.0
    %4437 = vmatpush2.msra.mxu0 0.0
    %4438 = vmatprep.subr.mxu0 0.0
    %4439 = vmatpush2.msra.mxu0 0.0
    %4440 = vmatprep.subr.mxu0 0.0
    %4441 = vmatpush2.msra.mxu0 0.0
    %4442 = vmatprep.subr.mxu0 0.0
    %4443 = vmatpush2.msra.mxu0 0.0
    %4444 = vmatprep.subr.mxu0 0.0
    %4445 = vmatpush2.msra.mxu0 0.0
    %4446 = vmatprep.subr.mxu0 0.0
    %4447 = vmatpush2.msra.mxu0 0.0
    %4448 = vmatprep.subr.mxu0 0.0
    %4449 = vmatpush2.msra.mxu0 0.0
    %4450 = vmatprep.subr.mxu0 0.0
    %4451 = vmatpush2.msra.mxu0 0.0
    %4452 = vmatprep.subr.mxu0 0.0
    %4453 = vmatpush2.msra.mxu0 0.0
    %4454 = vmatprep.subr.mxu0 0.0
    %4455 = vmatpush2.msra.mxu0 0.0
    %4456 = vmatprep.subr.mxu0 0.0
    %4457 = vmatpush2.msra.mxu0 0.0
    %4458 = vmatprep.mubr.f32.mxu0 0.0
    %4459 = vmatmul.mubr.f32.gmra.mxu0 %v4392
    %v4460 = vpop.f32.mrf.mxu0
    %v4461 = vadd.f32 0.0, %v4460
    %v4462 = vpop.f32.mrf.mxu0
    %4463 = vdwg.mxu0
    %v4464 = vsel %vm401, %v4179, 0
    %4466 = vmatprep.subr.mxu0 0.0
    %4467 = vmatpush1.msra.mxu0 0.0
    %4468 = vmatprep.subr.mxu0 0.0
    %4469 = vmatpush1.msra.mxu0 0.0
    %4470 = vmatprep.subr.mxu0 0.0
    %4471 = vmatpush1.msra.mxu0 0.0
    %4472 = vmatprep.subr.mxu0 0.0
    %4473 = vmatpush1.msra.mxu0 0.0
    %4474 = vmatprep.subr.mxu0 0.0
    %4475 = vmatpush1.msra.mxu0 0.0
    %4476 = vmatprep.subr.mxu0 0.0
    %4477 = vmatpush1.msra.mxu0 0.0
    %4478 = vmatprep.subr.mxu0 0.0
    %4479 = vmatpush1.msra.mxu0 0.0
    %4480 = vmatprep.subr.mxu0 0.0
    %4481 = vmatpush1.msra.mxu0 0.0
    %4482 = vmatprep.subr.mxu0 0.0
    %4483 = vmatpush1.msra.mxu0 0.0
    %4484 = vmatprep.subr.mxu0 0.0
    %4485 = vmatpush1.msra.mxu0 0.0
    %4486 = vmatprep.subr.mxu0 0.0
    %4487 = vmatpush1.msra.mxu0 0.0
    %4488 = vmatprep.subr.mxu0 0.0
    %4489 = vmatpush1.msra.mxu0 0.0
    %4490 = vmatprep.subr.mxu0 0.0
    %4491 = vmatpush1.msra.mxu0 0.0
    %4492 = vmatprep.subr.mxu0 0.0
    %4493 = vmatpush1.msra.mxu0 0.0
    %4494 = vmatprep.subr.mxu0 0.0
    %4495 = vmatpush1.msra.mxu0 0.0
    %4496 = vmatprep.subr.mxu0 0.0
    %4497 = vmatpush1.msra.mxu0 %v4272
    %4498 = vmatprep.subr.mxu0 0.0
    %4499 = vmatpush2.msra.mxu0 0.0
    %4500 = vmatprep.subr.mxu0 0.0
    %4501 = vmatpush2.msra.mxu0 0.0
    %4502 = vmatprep.subr.mxu0 0.0
    %4503 = vmatpush2.msra.mxu0 0.0
    %4504 = vmatprep.subr.mxu0 0.0
    %4505 = vmatpush2.msra.mxu0 0.0
    %4506 = vmatprep.subr.mxu0 0.0
    %4507 = vmatpush2.msra.mxu0 0.0
    %4508 = vmatprep.subr.mxu0 0.0
    %4509 = vmatpush2.msra.mxu0 0.0
    %4510 = vmatprep.subr.mxu0 0.0
    %4511 = vmatpush2.msra.mxu0 0.0
    %4512 = vmatprep.subr.mxu0 0.0
    %4513 = vmatpush2.msra.mxu0 0.0
    %4514 = vmatprep.subr.mxu0 0.0
    %4515 = vmatpush2.msra.mxu0 0.0
    %4516 = vmatprep.subr.mxu0 0.0
    %4517 = vmatpush2.msra.mxu0 0.0
    %4518 = vmatprep.subr.mxu0 0.0
    %4519 = vmatpush2.msra.mxu0 0.0
    %4520 = vmatprep.subr.mxu0 0.0
    %4521 = vmatpush2.msra.mxu0 0.0
    %4522 = vmatprep.subr.mxu0 0.0
    %4523 = vmatpush2.msra.mxu0 0.0
    %4524 = vmatprep.subr.mxu0 0.0
    %4525 = vmatpush2.msra.mxu0 0.0
    %4526 = vmatprep.subr.mxu0 0.0
    %4527 = vmatpush2.msra.mxu0 0.0
    %4528 = vmatprep.subr.mxu0 0.0
    %4529 = vmatpush2.msra.mxu0 0.0
    %4530 = vmatprep.mubr.f32.mxu0 0.0
    %4531 = vmatmul.mubr.f32.gmra.mxu0 %v4464
    %v4532 = vpop.f32.mrf.mxu0
    %v4533 = vadd.f32 0.0, %v4532
    %v4534 = vpop.f32.mrf.mxu0
    %4535 = vdwg.mxu0
    %v4536 = vsel %vm401, %v4181, 0
    %4538 = vmatprep.subr.mxu0 0.0
    %4539 = vmatpush1.msra.mxu0 0.0
    %4540 = vmatprep.subr.mxu0 0.0
    %4541 = vmatpush1.msra.mxu0 0.0
    %4542 = vmatprep.subr.mxu0 0.0
    %4543 = vmatpush1.msra.mxu0 0.0
    %4544 = vmatprep.subr.mxu0 0.0
    %4545 = vmatpush1.msra.mxu0 0.0
    %4546 = vmatprep.subr.mxu0 0.0
    %4547 = vmatpush1.msra.mxu0 0.0
    %4548 = vmatprep.subr.mxu0 0.0
    %4549 = vmatpush1.msra.mxu0 0.0
    %4550 = vmatprep.subr.mxu0 0.0
    %4551 = vmatpush1.msra.mxu0 0.0
    %4552 = vmatprep.subr.mxu0 0.0
    %4553 = vmatpush1.msra.mxu0 0.0
    %4554 = vmatprep.subr.mxu0 0.0
    %4555 = vmatpush1.msra.mxu0 0.0
    %4556 = vmatprep.subr.mxu0 0.0
    %4557 = vmatpush1.msra.mxu0 0.0
    %4558 = vmatprep.subr.mxu0 0.0
    %4559 = vmatpush1.msra.mxu0 0.0
    %4560 = vmatprep.subr.mxu0 0.0
    %4561 = vmatpush1.msra.mxu0 0.0
    %4562 = vmatprep.subr.mxu0 0.0
    %4563 = vmatpush1.msra.mxu0 0.0
    %4564 = vmatprep.subr.mxu0 0.0
    %4565 = vmatpush1.msra.mxu0 0.0
    %4566 = vmatprep.subr.mxu0 0.0
    %4567 = vmatpush1.msra.mxu0 0.0
    %4568 = vmatprep.subr.mxu0 0.0
    %4569 = vmatpush1.msra.mxu0 %v4304
    %4570 = vmatprep.subr.mxu0 0.0
    %4571 = vmatpush2.msra.mxu0 0.0
    %4572 = vmatprep.subr.mxu0 0.0
    %4573 = vmatpush2.msra.mxu0 0.0
    %4574 = vmatprep.subr.mxu0 0.0
    %4575 = vmatpush2.msra.mxu0 0.0
    %4576 = vmatprep.subr.mxu0 0.0
    %4577 = vmatpush2.msra.mxu0 0.0
    %4578 = vmatprep.subr.mxu0 0.0
    %4579 = vmatpush2.msra.mxu0 0.0
    %4580 = vmatprep.subr.mxu0 0.0
    %4581 = vmatpush2.msra.mxu0 0.0
    %4582 = vmatprep.subr.mxu0 0.0
    %4583 = vmatpush2.msra.mxu0 0.0
    %4584 = vmatprep.subr.mxu0 0.0
    %4585 = vmatpush2.msra.mxu0 0.0
    %4586 = vmatprep.subr.mxu0 0.0
    %4587 = vmatpush2.msra.mxu0 0.0
    %4588 = vmatprep.subr.mxu0 0.0
    %4589 = vmatpush2.msra.mxu0 0.0
    %4590 = vmatprep.subr.mxu0 0.0
    %4591 = vmatpush2.msra.mxu0 0.0
    %4592 = vmatprep.subr.mxu0 0.0
    %4593 = vmatpush2.msra.mxu0 0.0
    %4594 = vmatprep.subr.mxu0 0.0
    %4595 = vmatpush2.msra.mxu0 0.0
    %4596 = vmatprep.subr.mxu0 0.0
    %4597 = vmatpush2.msra.mxu0 0.0
    %4598 = vmatprep.subr.mxu0 0.0
    %4599 = vmatpush2.msra.mxu0 0.0
    %4600 = vmatprep.subr.mxu0 0.0
    %4601 = vmatpush2.msra.mxu0 0.0
    %4602 = vmatprep.mubr.f32.mxu0 0.0
    %4603 = vmatmul.mubr.f32.gmra.mxu0 %v4536
    %v4604 = vpop.f32.mrf.mxu0
    %v4605 = vadd.f32 0.0, %v4604
    %v4606 = vpop.f32.mrf.mxu0
    %4607 = vdwg.mxu0
    %v4608 = vsel %vm401, %v4389, -inf
    %4609 = vmax.xlane.f32.xlu0 %v4608
    %v4610 = vpop.xlane.xlu0 %4609
    %v4611 = vsel %vm401, %v4461, -inf
    %4612 = vmax.xlane.f32.xlu0 %v4611
    %v4613 = vpop.xlane.xlu0 %4612
    %v4614 = vsel %vm401, %v4533, -inf
    %4615 = vmax.xlane.f32.xlu0 %v4614
    %v4616 = vpop.xlane.xlu0 %4615
    %v4617 = vsel %vm401, %v4605, -inf
    %4618 = vmax.xlane.f32.xlu0 %v4617
    %v4619 = vpop.xlane.xlu0 %4618
    %v4620 = vsub.f32 %v4389, %v4610
    %v4621 = vsub.f32 %v4461, %v4613
    %v4622 = vsub.f32 %v4533, %v4616
    %v4623 = vsub.f32 %v4605, %v4619
    %v4624 = vmul.f32 %v4620, 1.442695
    %v4625 = vpow.pop %v4624
    %v4626 = vmul.f32 %v4621, 1.442695
    %v4627 = vpow.pop %v4626
    %v4628 = vmul.f32 %v4622, 1.442695
    %v4629 = vpow.pop %v4628
    %v4630 = vmul.f32 %v4623, 1.442695
    %v4631 = vpow.pop %v4630
    %v4632 = vsel %vm401, %v4625, 0.0
    %4633 = vadd.xlane.f32.xlu0 %v4632
    %v4634 = vpop.xlane.xlu0 %4633
    %v4635 = vsel %vm401, %v4627, 0.0
    %4636 = vadd.xlane.f32.xlu0 %v4635
    %v4637 = vpop.xlane.xlu0 %4636
    %v4638 = vsel %vm401, %v4629, 0.0
    %4639 = vadd.xlane.f32.xlu0 %v4638
    %v4640 = vpop.xlane.xlu0 %4639
    %v4641 = vsel %vm401, %v4631, 0.0
    %4642 = vadd.xlane.f32.xlu0 %v4641
    %v4643 = vpop.xlane.xlu0 %4642
    %v4644 = vrcp.pop %v4634
    %v4645 = vmul.f32 %v4625, %v4644
    %v4646 = vrcp.pop %v4637
    %v4647 = vmul.f32 %v4627, %v4646
    %v4648 = vrcp.pop %v4640
    %v4649 = vmul.f32 %v4629, %v4648
    %v4650 = vrcp.pop %v4643
    %v4651 = vmul.f32 %v4631, %v4650
    %4652 = vrot.lane.b32.xlu0 %v2968, 96
    %v4653 = vpop.permute.xlu0 %4652
    %4654 = vrot.lane.b32.xlu0 %v4184, 96
    %v4655 = vpop.permute.xlu0 %4654
    %4656 = vrot.lane.b32.xlu0 %v4187, 96
    %v4657 = vpop.permute.xlu0 %4656
    %4658 = vrot.lane.b32.xlu0 %v4190, 96
    %v4659 = vpop.permute.xlu0 %4658
    %4664 = vxpose.xlu0.b32.start [1/16] %v4653, 128
    %4665 = vxpose.xlu0.b32.cont [2/16] 0.0, 128
    %4666 = vxpose.xlu0.b32.cont [3/16] 0.0, 128
    %4667 = vxpose.xlu0.b32.cont [4/16] 0.0, 128
    %4668 = vxpose.xlu0.b32.cont [5/16] 0.0, 128
    %4669 = vxpose.xlu0.b32.cont [6/16] 0.0, 128
    %4670 = vxpose.xlu0.b32.cont [7/16] 0.0, 128
    %4671 = vxpose.xlu0.b32.cont [8/16] 0.0, 128
    %4672 = vxpose.xlu0.b32.cont [9/16] 0.0, 128
    %4673 = vxpose.xlu0.b32.cont [10/16] 0.0, 128
    %4674 = vxpose.xlu0.b32.cont [11/16] 0.0, 128
    %4675 = vxpose.xlu0.b32.cont [12/16] 0.0, 128
    %4676 = vxpose.xlu0.b32.cont [13/16] 0.0, 128
    %4677 = vxpose.xlu0.b32.cont [14/16] 0.0, 128
    %4678 = vxpose.xlu0.b32.cont [15/16] 0.0, 128
    %4679 = vxpose.xlu0.b32.end [16/16] 0.0, 128
    %v4680 = vpop.trf.xlu0
    %v4681 = vpop.trf.xlu0
    %v4682 = vpop.trf.xlu0
    %v4683 = vpop.trf.xlu0
    %v4684 = vpop.trf.xlu0
    %v4685 = vpop.trf.xlu0
    %v4686 = vpop.trf.xlu0
    %v4687 = vpop.trf.xlu0
    %v4688 = vpop.trf.xlu0
    %v4689 = vpop.trf.xlu0
    %v4690 = vpop.trf.xlu0
    %v4691 = vpop.trf.xlu0
    %v4692 = vpop.trf.xlu0
    %v4693 = vpop.trf.xlu0
    %v4694 = vpop.trf.xlu0
    %v4695 = vpop.trf.xlu0
    %4696 = vxpose.xlu0.b32.start [1/16] %v4655, 128
    %4697 = vxpose.xlu0.b32.cont [2/16] 0.0, 128
    %4698 = vxpose.xlu0.b32.cont [3/16] 0.0, 128
    %4699 = vxpose.xlu0.b32.cont [4/16] 0.0, 128
    %4700 = vxpose.xlu0.b32.cont [5/16] 0.0, 128
    %4701 = vxpose.xlu0.b32.cont [6/16] 0.0, 128
    %4702 = vxpose.xlu0.b32.cont [7/16] 0.0, 128
    %4703 = vxpose.xlu0.b32.cont [8/16] 0.0, 128
    %4704 = vxpose.xlu0.b32.cont [9/16] 0.0, 128
    %4705 = vxpose.xlu0.b32.cont [10/16] 0.0, 128
    %4706 = vxpose.xlu0.b32.cont [11/16] 0.0, 128
    %4707 = vxpose.xlu0.b32.cont [12/16] 0.0, 128
    %4708 = vxpose.xlu0.b32.cont [13/16] 0.0, 128
    %4709 = vxpose.xlu0.b32.cont [14/16] 0.0, 128
    %4710 = vxpose.xlu0.b32.cont [15/16] 0.0, 128
    %4711 = vxpose.xlu0.b32.end [16/16] 0.0, 128
    %v4712 = vpop.trf.xlu0
    %v4713 = vpop.trf.xlu0
    %v4714 = vpop.trf.xlu0
    %v4715 = vpop.trf.xlu0
    %v4716 = vpop.trf.xlu0
    %v4717 = vpop.trf.xlu0
    %v4718 = vpop.trf.xlu0
    %v4719 = vpop.trf.xlu0
    %v4720 = vpop.trf.xlu0
    %v4721 = vpop.trf.xlu0
    %v4722 = vpop.trf.xlu0
    %v4723 = vpop.trf.xlu0
    %v4724 = vpop.trf.xlu0
    %v4725 = vpop.trf.xlu0
    %v4726 = vpop.trf.xlu0
    %v4727 = vpop.trf.xlu0
    %4728 = vxpose.xlu0.b32.start [1/16] %v4657, 128
    %4729 = vxpose.xlu0.b32.cont [2/16] 0.0, 128
    %4730 = vxpose.xlu0.b32.cont [3/16] 0.0, 128
    %4731 = vxpose.xlu0.b32.cont [4/16] 0.0, 128
    %4732 = vxpose.xlu0.b32.cont [5/16] 0.0, 128
    %4733 = vxpose.xlu0.b32.cont [6/16] 0.0, 128
    %4734 = vxpose.xlu0.b32.cont [7/16] 0.0, 128
    %4735 = vxpose.xlu0.b32.cont [8/16] 0.0, 128
    %4736 = vxpose.xlu0.b32.cont [9/16] 0.0, 128
    %4737 = vxpose.xlu0.b32.cont [10/16] 0.0, 128
    %4738 = vxpose.xlu0.b32.cont [11/16] 0.0, 128
    %4739 = vxpose.xlu0.b32.cont [12/16] 0.0, 128
    %4740 = vxpose.xlu0.b32.cont [13/16] 0.0, 128
    %4741 = vxpose.xlu0.b32.cont [14/16] 0.0, 128
    %4742 = vxpose.xlu0.b32.cont [15/16] 0.0, 128
    %4743 = vxpose.xlu0.b32.end [16/16] 0.0, 128
    %v4744 = vpop.trf.xlu0
    %v4745 = vpop.trf.xlu0
    %v4746 = vpop.trf.xlu0
    %v4747 = vpop.trf.xlu0
    %v4748 = vpop.trf.xlu0
    %v4749 = vpop.trf.xlu0
    %v4750 = vpop.trf.xlu0
    %v4751 = vpop.trf.xlu0
    %v4752 = vpop.trf.xlu0
    %v4753 = vpop.trf.xlu0
    %v4754 = vpop.trf.xlu0
    %v4755 = vpop.trf.xlu0
    %v4756 = vpop.trf.xlu0
    %v4757 = vpop.trf.xlu0
    %v4758 = vpop.trf.xlu0
    %v4759 = vpop.trf.xlu0
    %4760 = vxpose.xlu0.b32.start [1/16] %v4659, 128
    %4761 = vxpose.xlu0.b32.cont [2/16] 0.0, 128
    %4762 = vxpose.xlu0.b32.cont [3/16] 0.0, 128
    %4763 = vxpose.xlu0.b32.cont [4/16] 0.0, 128
    %4764 = vxpose.xlu0.b32.cont [5/16] 0.0, 128
    %4765 = vxpose.xlu0.b32.cont [6/16] 0.0, 128
    %4766 = vxpose.xlu0.b32.cont [7/16] 0.0, 128
    %4767 = vxpose.xlu0.b32.cont [8/16] 0.0, 128
    %4768 = vxpose.xlu0.b32.cont [9/16] 0.0, 128
    %4769 = vxpose.xlu0.b32.cont [10/16] 0.0, 128
    %4770 = vxpose.xlu0.b32.cont [11/16] 0.0, 128
    %4771 = vxpose.xlu0.b32.cont [12/16] 0.0, 128
    %4772 = vxpose.xlu0.b32.cont [13/16] 0.0, 128
    %4773 = vxpose.xlu0.b32.cont [14/16] 0.0, 128
    %4774 = vxpose.xlu0.b32.cont [15/16] 0.0, 128
    %4775 = vxpose.xlu0.b32.end [16/16] 0.0, 128
    %v4776 = vpop.trf.xlu0
    %v4777 = vpop.trf.xlu0
    %v4778 = vpop.trf.xlu0
    %v4779 = vpop.trf.xlu0
    %v4780 = vpop.trf.xlu0
    %v4781 = vpop.trf.xlu0
    %v4782 = vpop.trf.xlu0
    %v4783 = vpop.trf.xlu0
    %v4784 = vpop.trf.xlu0
    %v4785 = vpop.trf.xlu0
    %v4786 = vpop.trf.xlu0
    %v4787 = vpop.trf.xlu0
    %v4788 = vpop.trf.xlu0
    %v4789 = vpop.trf.xlu0
    %v4790 = vpop.trf.xlu0
    %v4791 = vpop.trf.xlu0
    %v4793 = vsel %vm401, %v4680, 0
    %v4796 = vsel %vm401, %v4645, 0
    %4798 = vmatprep.subr.mxu0 0.0
    %4799 = vmatpush1.xpose.msra.mxu0 0.0
    %4800 = vmatprep.subr.mxu0 0.0
    %4801 = vmatpush1.xpose.msra.mxu0 0.0
    %4802 = vmatprep.subr.mxu0 0.0
    %4803 = vmatpush1.xpose.msra.mxu0 0.0
    %4804 = vmatprep.subr.mxu0 0.0
    %4805 = vmatpush1.xpose.msra.mxu0 0.0
    %4806 = vmatprep.subr.mxu0 0.0
    %4807 = vmatpush1.xpose.msra.mxu0 0.0
    %4808 = vmatprep.subr.mxu0 0.0
    %4809 = vmatpush1.xpose.msra.mxu0 0.0
    %4810 = vmatprep.subr.mxu0 0.0
    %4811 = vmatpush1.xpose.msra.mxu0 0.0
    %4812 = vmatprep.subr.mxu0 0.0
    %4813 = vmatpush1.xpose.msra.mxu0 0.0
    %4814 = vmatprep.subr.mxu0 0.0
    %4815 = vmatpush1.xpose.msra.mxu0 0.0
    %4816 = vmatprep.subr.mxu0 0.0
    %4817 = vmatpush1.xpose.msra.mxu0 0.0
    %4818 = vmatprep.subr.mxu0 0.0
    %4819 = vmatpush1.xpose.msra.mxu0 0.0
    %4820 = vmatprep.subr.mxu0 0.0
    %4821 = vmatpush1.xpose.msra.mxu0 0.0
    %4822 = vmatprep.subr.mxu0 0.0
    %4823 = vmatpush1.xpose.msra.mxu0 0.0
    %4824 = vmatprep.subr.mxu0 0.0
    %4825 = vmatpush1.xpose.msra.mxu0 0.0
    %4826 = vmatprep.subr.mxu0 0.0
    %4827 = vmatpush1.xpose.msra.mxu0 0.0
    %4828 = vmatprep.subr.mxu0 0.0
    %4829 = vmatpush1.xpose.msra.mxu0 %v4796
    %4830 = vmatprep.subr.mxu0 0.0
    %4831 = vmatpush2.xpose.msra.mxu0 0.0
    %4832 = vmatprep.subr.mxu0 0.0
    %4833 = vmatpush2.xpose.msra.mxu0 0.0
    %4834 = vmatprep.subr.mxu0 0.0
    %4835 = vmatpush2.xpose.msra.mxu0 0.0
    %4836 = vmatprep.subr.mxu0 0.0
    %4837 = vmatpush2.xpose.msra.mxu0 0.0
    %4838 = vmatprep.subr.mxu0 0.0
    %4839 = vmatpush2.xpose.msra.mxu0 0.0
    %4840 = vmatprep.subr.mxu0 0.0
    %4841 = vmatpush2.xpose.msra.mxu0 0.0
    %4842 = vmatprep.subr.mxu0 0.0
    %4843 = vmatpush2.xpose.msra.mxu0 0.0
    %4844 = vmatprep.subr.mxu0 0.0
    %4845 = vmatpush2.xpose.msra.mxu0 0.0
    %4846 = vmatprep.subr.mxu0 0.0
    %4847 = vmatpush2.xpose.msra.mxu0 0.0
    %4848 = vmatprep.subr.mxu0 0.0
    %4849 = vmatpush2.xpose.msra.mxu0 0.0
    %4850 = vmatprep.subr.mxu0 0.0
    %4851 = vmatpush2.xpose.msra.mxu0 0.0
    %4852 = vmatprep.subr.mxu0 0.0
    %4853 = vmatpush2.xpose.msra.mxu0 0.0
    %4854 = vmatprep.subr.mxu0 0.0
    %4855 = vmatpush2.xpose.msra.mxu0 0.0
    %4856 = vmatprep.subr.mxu0 0.0
    %4857 = vmatpush2.xpose.msra.mxu0 0.0
    %4858 = vmatprep.subr.mxu0 0.0
    %4859 = vmatpush2.xpose.msra.mxu0 0.0
    %4860 = vmatprep.subr.mxu0 0.0
    %4861 = vmatpush2.xpose.msra.mxu0 0.0
    %4862 = vmatprep.mubr.f32.mxu0 0.0
    %4863 = vmatmul.mubr.f32.gmra.mxu0 %v4793
    %v4864 = vpop.f32.mrf.mxu0
    %v4865 = vadd.f32 0.0, %v4864
    %v4866 = vpop.f32.mrf.mxu0
    %4867 = vdwg.mxu0
    %v4869 = vsel %vm401, %v4712, 0
    %v4872 = vsel %vm401, %v4647, 0
    %4874 = vmatprep.subr.mxu0 0.0
    %4875 = vmatpush1.xpose.msra.mxu0 0.0
    %4876 = vmatprep.subr.mxu0 0.0
    %4877 = vmatpush1.xpose.msra.mxu0 0.0
    %4878 = vmatprep.subr.mxu0 0.0
    %4879 = vmatpush1.xpose.msra.mxu0 0.0
    %4880 = vmatprep.subr.mxu0 0.0
    %4881 = vmatpush1.xpose.msra.mxu0 0.0
    %4882 = vmatprep.subr.mxu0 0.0
    %4883 = vmatpush1.xpose.msra.mxu0 0.0
    %4884 = vmatprep.subr.mxu0 0.0
    %4885 = vmatpush1.xpose.msra.mxu0 0.0
    %4886 = vmatprep.subr.mxu0 0.0
    %4887 = vmatpush1.xpose.msra.mxu0 0.0
    %4888 = vmatprep.subr.mxu0 0.0
    %4889 = vmatpush1.xpose.msra.mxu0 0.0
    %4890 = vmatprep.subr.mxu0 0.0
    %4891 = vmatpush1.xpose.msra.mxu0 0.0
    %4892 = vmatprep.subr.mxu0 0.0
    %4893 = vmatpush1.xpose.msra.mxu0 0.0
    %4894 = vmatprep.subr.mxu0 0.0
    %4895 = vmatpush1.xpose.msra.mxu0 0.0
    %4896 = vmatprep.subr.mxu0 0.0
    %4897 = vmatpush1.xpose.msra.mxu0 0.0
    %4898 = vmatprep.subr.mxu0 0.0
    %4899 = vmatpush1.xpose.msra.mxu0 0.0
    %4900 = vmatprep.subr.mxu0 0.0
    %4901 = vmatpush1.xpose.msra.mxu0 0.0
    %4902 = vmatprep.subr.mxu0 0.0
    %4903 = vmatpush1.xpose.msra.mxu0 0.0
    %4904 = vmatprep.subr.mxu0 0.0
    %4905 = vmatpush1.xpose.msra.mxu0 %v4872
    %4906 = vmatprep.subr.mxu0 0.0
    %4907 = vmatpush2.xpose.msra.mxu0 0.0
    %4908 = vmatprep.subr.mxu0 0.0
    %4909 = vmatpush2.xpose.msra.mxu0 0.0
    %4910 = vmatprep.subr.mxu0 0.0
    %4911 = vmatpush2.xpose.msra.mxu0 0.0
    %4912 = vmatprep.subr.mxu0 0.0
    %4913 = vmatpush2.xpose.msra.mxu0 0.0
    %4914 = vmatprep.subr.mxu0 0.0
    %4915 = vmatpush2.xpose.msra.mxu0 0.0
    %4916 = vmatprep.subr.mxu0 0.0
    %4917 = vmatpush2.xpose.msra.mxu0 0.0
    %4918 = vmatprep.subr.mxu0 0.0
    %4919 = vmatpush2.xpose.msra.mxu0 0.0
    %4920 = vmatprep.subr.mxu0 0.0
    %4921 = vmatpush2.xpose.msra.mxu0 0.0
    %4922 = vmatprep.subr.mxu0 0.0
    %4923 = vmatpush2.xpose.msra.mxu0 0.0
    %4924 = vmatprep.subr.mxu0 0.0
    %4925 = vmatpush2.xpose.msra.mxu0 0.0
    %4926 = vmatprep.subr.mxu0 0.0
    %4927 = vmatpush2.xpose.msra.mxu0 0.0
    %4928 = vmatprep.subr.mxu0 0.0
    %4929 = vmatpush2.xpose.msra.mxu0 0.0
    %4930 = vmatprep.subr.mxu0 0.0
    %4931 = vmatpush2.xpose.msra.mxu0 0.0
    %4932 = vmatprep.subr.mxu0 0.0
    %4933 = vmatpush2.xpose.msra.mxu0 0.0
    %4934 = vmatprep.subr.mxu0 0.0
    %4935 = vmatpush2.xpose.msra.mxu0 0.0
    %4936 = vmatprep.subr.mxu0 0.0
    %4937 = vmatpush2.xpose.msra.mxu0 0.0
    %4938 = vmatprep.mubr.f32.mxu0 0.0
    %4939 = vmatmul.mubr.f32.gmra.mxu0 %v4869
    %v4940 = vpop.f32.mrf.mxu0
    %v4941 = vadd.f32 0.0, %v4940
    %v4942 = vpop.f32.mrf.mxu0
    %4943 = vdwg.mxu0
    %v4945 = vsel %vm401, %v4744, 0
    %v4948 = vsel %vm401, %v4649, 0
    %4950 = vmatprep.subr.mxu0 0.0
    %4951 = vmatpush1.xpose.msra.mxu0 0.0
    %4952 = vmatprep.subr.mxu0 0.0
    %4953 = vmatpush1.xpose.msra.mxu0 0.0
    %4954 = vmatprep.subr.mxu0 0.0
    %4955 = vmatpush1.xpose.msra.mxu0 0.0
    %4956 = vmatprep.subr.mxu0 0.0
    %4957 = vmatpush1.xpose.msra.mxu0 0.0
    %4958 = vmatprep.subr.mxu0 0.0
    %4959 = vmatpush1.xpose.msra.mxu0 0.0
    %4960 = vmatprep.subr.mxu0 0.0
    %4961 = vmatpush1.xpose.msra.mxu0 0.0
    %4962 = vmatprep.subr.mxu0 0.0
    %4963 = vmatpush1.xpose.msra.mxu0 0.0
    %4964 = vmatprep.subr.mxu0 0.0
    %4965 = vmatpush1.xpose.msra.mxu0 0.0
    %4966 = vmatprep.subr.mxu0 0.0
    %4967 = vmatpush1.xpose.msra.mxu0 0.0
    %4968 = vmatprep.subr.mxu0 0.0
    %4969 = vmatpush1.xpose.msra.mxu0 0.0
    %4970 = vmatprep.subr.mxu0 0.0
    %4971 = vmatpush1.xpose.msra.mxu0 0.0
    %4972 = vmatprep.subr.mxu0 0.0
    %4973 = vmatpush1.xpose.msra.mxu0 0.0
    %4974 = vmatprep.subr.mxu0 0.0
    %4975 = vmatpush1.xpose.msra.mxu0 0.0
    %4976 = vmatprep.subr.mxu0 0.0
    %4977 = vmatpush1.xpose.msra.mxu0 0.0
    %4978 = vmatprep.subr.mxu0 0.0
    %4979 = vmatpush1.xpose.msra.mxu0 0.0
    %4980 = vmatprep.subr.mxu0 0.0
    %4981 = vmatpush1.xpose.msra.mxu0 %v4948
    %4982 = vmatprep.subr.mxu0 0.0
    %4983 = vmatpush2.xpose.msra.mxu0 0.0
    %4984 = vmatprep.subr.mxu0 0.0
    %4985 = vmatpush2.xpose.msra.mxu0 0.0
    %4986 = vmatprep.subr.mxu0 0.0
    %4987 = vmatpush2.xpose.msra.mxu0 0.0
    %4988 = vmatprep.subr.mxu0 0.0
    %4989 = vmatpush2.xpose.msra.mxu0 0.0
    %4990 = vmatprep.subr.mxu0 0.0
    %4991 = vmatpush2.xpose.msra.mxu0 0.0
    %4992 = vmatprep.subr.mxu0 0.0
    %4993 = vmatpush2.xpose.msra.mxu0 0.0
    %4994 = vmatprep.subr.mxu0 0.0
    %4995 = vmatpush2.xpose.msra.mxu0 0.0
    %4996 = vmatprep.subr.mxu0 0.0
    %4997 = vmatpush2.xpose.msra.mxu0 0.0
    %4998 = vmatprep.subr.mxu0 0.0
    %4999 = vmatpush2.xpose.msra.mxu0 0.0
    %5000 = vmatprep.subr.mxu0 0.0
    %5001 = vmatpush2.xpose.msra.mxu0 0.0
    %5002 = vmatprep.subr.mxu0 0.0
    %5003 = vmatpush2.xpose.msra.mxu0 0.0
    %5004 = vmatprep.subr.mxu0 0.0
    %5005 = vmatpush2.xpose.msra.mxu0 0.0
    %5006 = vmatprep.subr.mxu0 0.0
    %5007 = vmatpush2.xpose.msra.mxu0 0.0
    %5008 = vmatprep.subr.mxu0 0.0
    %5009 = vmatpush2.xpose.msra.mxu0 0.0
    %5010 = vmatprep.subr.mxu0 0.0
    %5011 = vmatpush2.xpose.msra.mxu0 0.0
    %5012 = vmatprep.subr.mxu0 0.0
    %5013 = vmatpush2.xpose.msra.mxu0 0.0
    %5014 = vmatprep.mubr.f32.mxu0 0.0
    %5015 = vmatmul.mubr.f32.gmra.mxu0 %v4945
    %v5016 = vpop.f32.mrf.mxu0
    %v5017 = vadd.f32 0.0, %v5016
    %v5018 = vpop.f32.mrf.mxu0
    %5019 = vdwg.mxu0
    %v5021 = vsel %vm401, %v4776, 0
    %v5024 = vsel %vm401, %v4651, 0
    %5026 = vmatprep.subr.mxu0 0.0
    %5027 = vmatpush1.xpose.msra.mxu0 0.0
    %5028 = vmatprep.subr.mxu0 0.0
    %5029 = vmatpush1.xpose.msra.mxu0 0.0
    %5030 = vmatprep.subr.mxu0 0.0
    %5031 = vmatpush1.xpose.msra.mxu0 0.0
    %5032 = vmatprep.subr.mxu0 0.0
    %5033 = vmatpush1.xpose.msra.mxu0 0.0
    %5034 = vmatprep.subr.mxu0 0.0
    %5035 = vmatpush1.xpose.msra.mxu0 0.0
    %5036 = vmatprep.subr.mxu0 0.0
    %5037 = vmatpush1.xpose.msra.mxu0 0.0
    %5038 = vmatprep.subr.mxu0 0.0
    %5039 = vmatpush1.xpose.msra.mxu0 0.0
    %5040 = vmatprep.subr.mxu0 0.0
    %5041 = vmatpush1.xpose.msra.mxu0 0.0
    %5042 = vmatprep.subr.mxu0 0.0
    %5043 = vmatpush1.xpose.msra.mxu0 0.0
    %5044 = vmatprep.subr.mxu0 0.0
    %5045 = vmatpush1.xpose.msra.mxu0 0.0
    %5046 = vmatprep.subr.mxu0 0.0
    %5047 = vmatpush1.xpose.msra.mxu0 0.0
    %5048 = vmatprep.subr.mxu0 0.0
    %5049 = vmatpush1.xpose.msra.mxu0 0.0
    %5050 = vmatprep.subr.mxu0 0.0
    %5051 = vmatpush1.xpose.msra.mxu0 0.0
    %5052 = vmatprep.subr.mxu0 0.0
    %5053 = vmatpush1.xpose.msra.mxu0 0.0
    %5054 = vmatprep.subr.mxu0 0.0
    %5055 = vmatpush1.xpose.msra.mxu0 0.0
    %5056 = vmatprep.subr.mxu0 0.0
    %5057 = vmatpush1.xpose.msra.mxu0 %v5024
    %5058 = vmatprep.subr.mxu0 0.0
    %5059 = vmatpush2.xpose.msra.mxu0 0.0
    %5060 = vmatprep.subr.mxu0 0.0
    %5061 = vmatpush2.xpose.msra.mxu0 0.0
    %5062 = vmatprep.subr.mxu0 0.0
    %5063 = vmatpush2.xpose.msra.mxu0 0.0
    %5064 = vmatprep.subr.mxu0 0.0
    %5065 = vmatpush2.xpose.msra.mxu0 0.0
    %5066 = vmatprep.subr.mxu0 0.0
    %5067 = vmatpush2.xpose.msra.mxu0 0.0
    %5068 = vmatprep.subr.mxu0 0.0
    %5069 = vmatpush2.xpose.msra.mxu0 0.0
    %5070 = vmatprep.subr.mxu0 0.0
    %5071 = vmatpush2.xpose.msra.mxu0 0.0
    %5072 = vmatprep.subr.mxu0 0.0
    %5073 = vmatpush2.xpose.msra.mxu0 0.0
    %5074 = vmatprep.subr.mxu0 0.0
    %5075 = vmatpush2.xpose.msra.mxu0 0.0
    %5076 = vmatprep.subr.mxu0 0.0
    %5077 = vmatpush2.xpose.msra.mxu0 0.0
    %5078 = vmatprep.subr.mxu0 0.0
    %5079 = vmatpush2.xpose.msra.mxu0 0.0
    %5080 = vmatprep.subr.mxu0 0.0
    %5081 = vmatpush2.xpose.msra.mxu0 0.0
    %5082 = vmatprep.subr.mxu0 0.0
    %5083 = vmatpush2.xpose.msra.mxu0 0.0
    %5084 = vmatprep.subr.mxu0 0.0
    %5085 = vmatpush2.xpose.msra.mxu0 0.0
    %5086 = vmatprep.subr.mxu0 0.0
    %5087 = vmatpush2.xpose.msra.mxu0 0.0
    %5088 = vmatprep.subr.mxu0 0.0
    %5089 = vmatpush2.xpose.msra.mxu0 0.0
    %5090 = vmatprep.mubr.f32.mxu0 0.0
    %5091 = vmatmul.mubr.f32.gmra.mxu0 %v5021
    %v5092 = vpop.f32.mrf.mxu0
    %v5093 = vadd.f32 0.0, %v5092
    %v5094 = vpop.f32.mrf.mxu0
    %5095 = vdwg.mxu0
    %5096 = vxpose.xlu0.b32.start [1/16] %v4865, 128
    %5097 = vxpose.xlu0.b32.cont [2/16] 0.0, 128
    %5098 = vxpose.xlu0.b32.cont [3/16] 0.0, 128
    %5099 = vxpose.xlu0.b32.cont [4/16] 0.0, 128
    %5100 = vxpose.xlu0.b32.cont [5/16] 0.0, 128
    %5101 = vxpose.xlu0.b32.cont [6/16] 0.0, 128
    %5102 = vxpose.xlu0.b32.cont [7/16] 0.0, 128
    %5103 = vxpose.xlu0.b32.cont [8/16] 0.0, 128
    %5104 = vxpose.xlu0.b32.cont [9/16] 0.0, 128
    %5105 = vxpose.xlu0.b32.cont [10/16] 0.0, 128
    %5106 = vxpose.xlu0.b32.cont [11/16] 0.0, 128
    %5107 = vxpose.xlu0.b32.cont [12/16] 0.0, 128
    %5108 = vxpose.xlu0.b32.cont [13/16] 0.0, 128
    %5109 = vxpose.xlu0.b32.cont [14/16] 0.0, 128
    %5110 = vxpose.xlu0.b32.cont [15/16] 0.0, 128
    %5111 = vxpose.xlu0.b32.end [16/16] 0.0, 128
    %v5112 = vpop.trf.xlu0
    %v5113 = vpop.trf.xlu0
    %v5114 = vpop.trf.xlu0
    %v5115 = vpop.trf.xlu0
    %v5116 = vpop.trf.xlu0
    %v5117 = vpop.trf.xlu0
    %v5118 = vpop.trf.xlu0
    %v5119 = vpop.trf.xlu0
    %v5120 = vpop.trf.xlu0
    %v5121 = vpop.trf.xlu0
    %v5122 = vpop.trf.xlu0
    %v5123 = vpop.trf.xlu0
    %v5124 = vpop.trf.xlu0
    %v5125 = vpop.trf.xlu0
    %v5126 = vpop.trf.xlu0
    %v5127 = vpop.trf.xlu0
    %5128 = vxpose.xlu0.b32.start [1/16] %v4941, 128
    %5129 = vxpose.xlu0.b32.cont [2/16] 0.0, 128
    %5130 = vxpose.xlu0.b32.cont [3/16] 0.0, 128
    %5131 = vxpose.xlu0.b32.cont [4/16] 0.0, 128
    %5132 = vxpose.xlu0.b32.cont [5/16] 0.0, 128
    %5133 = vxpose.xlu0.b32.cont [6/16] 0.0, 128
    %5134 = vxpose.xlu0.b32.cont [7/16] 0.0, 128
    %5135 = vxpose.xlu0.b32.cont [8/16] 0.0, 128
    %5136 = vxpose.xlu0.b32.cont [9/16] 0.0, 128
    %5137 = vxpose.xlu0.b32.cont [10/16] 0.0, 128
    %5138 = vxpose.xlu0.b32.cont [11/16] 0.0, 128
    %5139 = vxpose.xlu0.b32.cont [12/16] 0.0, 128
    %5140 = vxpose.xlu0.b32.cont [13/16] 0.0, 128
    %5141 = vxpose.xlu0.b32.cont [14/16] 0.0, 128
    %5142 = vxpose.xlu0.b32.cont [15/16] 0.0, 128
    %5143 = vxpose.xlu0.b32.end [16/16] 0.0, 128
    %v5144 = vpop.trf.xlu0
    %v5145 = vpop.trf.xlu0
    %v5146 = vpop.trf.xlu0
    %v5147 = vpop.trf.xlu0
    %v5148 = vpop.trf.xlu0
    %v5149 = vpop.trf.xlu0
    %v5150 = vpop.trf.xlu0
    %v5151 = vpop.trf.xlu0
    %v5152 = vpop.trf.xlu0
    %v5153 = vpop.trf.xlu0
    %v5154 = vpop.trf.xlu0
    %v5155 = vpop.trf.xlu0
    %v5156 = vpop.trf.xlu0
    %v5157 = vpop.trf.xlu0
    %v5158 = vpop.trf.xlu0
    %v5159 = vpop.trf.xlu0
    %5160 = vxpose.xlu0.b32.start [1/16] %v5017, 128
    %5161 = vxpose.xlu0.b32.cont [2/16] 0.0, 128
    %5162 = vxpose.xlu0.b32.cont [3/16] 0.0, 128
    %5163 = vxpose.xlu0.b32.cont [4/16] 0.0, 128
    %5164 = vxpose.xlu0.b32.cont [5/16] 0.0, 128
    %5165 = vxpose.xlu0.b32.cont [6/16] 0.0, 128
    %5166 = vxpose.xlu0.b32.cont [7/16] 0.0, 128
    %5167 = vxpose.xlu0.b32.cont [8/16] 0.0, 128
    %5168 = vxpose.xlu0.b32.cont [9/16] 0.0, 128
    %5169 = vxpose.xlu0.b32.cont [10/16] 0.0, 128
    %5170 = vxpose.xlu0.b32.cont [11/16] 0.0, 128
    %5171 = vxpose.xlu0.b32.cont [12/16] 0.0, 128
    %5172 = vxpose.xlu0.b32.cont [13/16] 0.0, 128
    %5173 = vxpose.xlu0.b32.cont [14/16] 0.0, 128
    %5174 = vxpose.xlu0.b32.cont [15/16] 0.0, 128
    %5175 = vxpose.xlu0.b32.end [16/16] 0.0, 128
    %v5176 = vpop.trf.xlu0
    %v5177 = vpop.trf.xlu0
    %v5178 = vpop.trf.xlu0
    %v5179 = vpop.trf.xlu0
    %v5180 = vpop.trf.xlu0
    %v5181 = vpop.trf.xlu0
    %v5182 = vpop.trf.xlu0
    %v5183 = vpop.trf.xlu0
    %v5184 = vpop.trf.xlu0
    %v5185 = vpop.trf.xlu0
    %v5186 = vpop.trf.xlu0
    %v5187 = vpop.trf.xlu0
    %v5188 = vpop.trf.xlu0
    %v5189 = vpop.trf.xlu0
    %v5190 = vpop.trf.xlu0
    %v5191 = vpop.trf.xlu0
    %5192 = vxpose.xlu0.b32.start [1/16] %v5093, 128
    %5193 = vxpose.xlu0.b32.cont [2/16] 0.0, 128
    %5194 = vxpose.xlu0.b32.cont [3/16] 0.0, 128
    %5195 = vxpose.xlu0.b32.cont [4/16] 0.0, 128
    %5196 = vxpose.xlu0.b32.cont [5/16] 0.0, 128
    %5197 = vxpose.xlu0.b32.cont [6/16] 0.0, 128
    %5198 = vxpose.xlu0.b32.cont [7/16] 0.0, 128
    %5199 = vxpose.xlu0.b32.cont [8/16] 0.0, 128
    %5200 = vxpose.xlu0.b32.cont [9/16] 0.0, 128
    %5201 = vxpose.xlu0.b32.cont [10/16] 0.0, 128
    %5202 = vxpose.xlu0.b32.cont [11/16] 0.0, 128
    %5203 = vxpose.xlu0.b32.cont [12/16] 0.0, 128
    %5204 = vxpose.xlu0.b32.cont [13/16] 0.0, 128
    %5205 = vxpose.xlu0.b32.cont [14/16] 0.0, 128
    %5206 = vxpose.xlu0.b32.cont [15/16] 0.0, 128
    %5207 = vxpose.xlu0.b32.end [16/16] 0.0, 128
    %v5208 = vpop.trf.xlu0
    %v5209 = vpop.trf.xlu0
    %v5210 = vpop.trf.xlu0
    %v5211 = vpop.trf.xlu0
    %v5212 = vpop.trf.xlu0
    %v5213 = vpop.trf.xlu0
    %v5214 = vpop.trf.xlu0
    %v5215 = vpop.trf.xlu0
    %v5216 = vpop.trf.xlu0
    %v5217 = vpop.trf.xlu0
    %v5218 = vpop.trf.xlu0
    %v5219 = vpop.trf.xlu0
    %v5220 = vpop.trf.xlu0
    %v5221 = vpop.trf.xlu0
    %v5222 = vpop.trf.xlu0
    %v5223 = vpop.trf.xlu0
    %v5224 = vcombine.low %v5112, %v5176
    %v5225 = vcombine.high %v5112, %v5176
    %v5227 = vunpack.c.l.s4 1983009808
    %v5228 = vunpack.c.0.s8 %v5227
    %v5229 = vlaneseq
    %v5230 = vshrl.u32 %v5229, 7
    %v5231 = vsub.s32 %v5228, %v5230
    %v5232 = vrot.slane %v5224, %v5231
    %v5234 = vunpack.c.l.s4 1983009808
    %v5235 = vunpack.c.0.s8 %v5234
    %v5236 = vlaneseq
    %v5237 = vshrl.u32 %v5236, 7
    %v5238 = vsub.s32 %v5235, %v5237
    %v5239 = vrot.slane %v5225, %v5238
    %v5240 = vcombine.low %v5144, %v5208
    %v5241 = vcombine.high %v5144, %v5208
    %v5243 = vunpack.c.l.s4 1983009808
    %v5244 = vunpack.c.0.s8 %v5243
    %v5245 = vlaneseq
    %v5246 = vshrl.u32 %v5245, 7
    %v5247 = vsub.s32 %v5244, %v5246
    %v5248 = vrot.slane %v5240, %v5247
    %v5250 = vunpack.c.l.s4 1983009808
    %v5251 = vunpack.c.0.s8 %v5250
    %v5252 = vlaneseq
    %v5253 = vshrl.u32 %v5252, 7
    %v5254 = vsub.s32 %v5251, %v5253
    %v5255 = vrot.slane %v5241, %v5254
    %v5256 = vcombine.low %v5232, %v5248
    %v5257 = vcombine.high %v5232, %v5248
    %v5259 = vunpack.c.l.s4 1934713408
    %v5260 = vunpack.c.0.s8 %v5259
    %v5261 = vlaneseq
    %v5262 = vshrl.u32 %v5261, 7
    %v5263 = vsub.s32 %v5260, %v5262
    %v5264 = vrot.slane %v5256, %v5263
    %v5266 = vunpack.c.l.s4 1934713408
    %v5267 = vunpack.c.0.s8 %v5266
    %v5268 = vlaneseq
    %v5269 = vshrl.u32 %v5268, 7
    %v5270 = vsub.s32 %v5267, %v5269
    %v5271 = vrot.slane %v5257, %v5270
    %v5272 = vcombine.low %v5239, %v5255
    %v5273 = vcombine.high %v5239, %v5255
    %v5275 = vunpack.c.l.s4 1934713408
    %v5276 = vunpack.c.0.s8 %v5275
    %v5277 = vlaneseq
    %v5278 = vshrl.u32 %v5277, 7
    %v5279 = vsub.s32 %v5276, %v5278
    %v5280 = vrot.slane %v5272, %v5279
    %v5282 = vunpack.c.l.s4 1934713408
    %v5283 = vunpack.c.0.s8 %v5282
    %v5284 = vlaneseq
    %v5285 = vshrl.u32 %v5284, 7
    %v5286 = vsub.s32 %v5283, %v5285
    %v5287 = vrot.slane %v5273, %v5286
    %v5288 = vcombine.high %v5264, 0.0
    %v5289 = vcombine.high %v5271, 0.0
    %v5290 = vcombine.high %v5280, 0.0
    %v5291 = vcombine.high %v5287, 0.0
    %v5292 = vcombine.low %v5264, %v5271
    %v5294 = vunpack.c.l.s4 1983009808
    %v5295 = vunpack.c.0.s8 %v5294
    %v5296 = vlaneseq
    %v5297 = vshrl.u32 %v5296, 7
    %v5298 = vsub.s32 %v5295, %v5297
    %v5299 = vrot.slane %v5292, %v5298
    %v5300 = vcombine.low %v5288, %v5289
    %v5302 = vunpack.c.l.s4 1983009808
    %v5303 = vunpack.c.0.s8 %v5302
    %v5304 = vlaneseq
    %v5305 = vshrl.u32 %v5304, 7
    %v5306 = vsub.s32 %v5303, %v5305
    %v5307 = vrot.slane %v5300, %v5306
    %v5308 = vcombine.low %v5280, %v5287
    %v5310 = vunpack.c.l.s4 1983009808
    %v5311 = vunpack.c.0.s8 %v5310
    %v5312 = vlaneseq
    %v5313 = vshrl.u32 %v5312, 7
    %v5314 = vsub.s32 %v5311, %v5313
    %v5315 = vrot.slane %v5308, %v5314
    %v5316 = vcombine.low %v5290, %v5291
    %v5318 = vunpack.c.l.s4 1983009808
    %v5319 = vunpack.c.0.s8 %v5318
    %v5320 = vlaneseq
    %v5321 = vshrl.u32 %v5320, 7
    %v5322 = vsub.s32 %v5319, %v5321
    %v5323 = vrot.slane %v5316, %v5322
    %v5324 = vcombine.low %v5299, %v5307
    %v5325 = vcombine.high %v5299, %v5307
    %v5327 = vunpack.c.l.s4 1934713408
    %v5328 = vunpack.c.0.s8 %v5327
    %v5329 = vlaneseq
    %v5330 = vshrl.u32 %v5329, 7
    %v5331 = vsub.s32 %v5328, %v5330
    %v5332 = vrot.slane %v5324, %v5331
    %v5334 = vunpack.c.l.s4 1934713408
    %v5335 = vunpack.c.0.s8 %v5334
    %v5336 = vlaneseq
    %v5337 = vshrl.u32 %v5336, 7
    %v5338 = vsub.s32 %v5335, %v5337
    %v5339 = vrot.slane %v5325, %v5338
    %v5340 = vcombine.low %v5315, %v5323
    %v5341 = vcombine.high %v5315, %v5323
    %v5343 = vunpack.c.l.s4 1934713408
    %v5344 = vunpack.c.0.s8 %v5343
    %v5345 = vlaneseq
    %v5346 = vshrl.u32 %v5345, 7
    %v5347 = vsub.s32 %v5344, %v5346
    %v5348 = vrot.slane %v5340, %v5347
    %v5350 = vunpack.c.l.s4 1934713408
    %v5351 = vunpack.c.0.s8 %v5350
    %v5352 = vlaneseq
    %v5353 = vshrl.u32 %v5352, 7
    %v5354 = vsub.s32 %v5351, %v5353
    %v5355 = vrot.slane %v5341, %v5354
    %v5356 = vcombine.low %v5332, %v5348
    %v5357 = vcombine.high %v5332, %v5348
    %v5358 = vcombine.low %v5339, %v5355
    %v5359 = vcombine.high %v5339, %v5355
    %5361 = vrot.lane.b32.xlu0 %v5357, 8
    %v5362 = vpop.permute.xlu0 %5361
    %5365 = vrot.lane.b32.xlu0 %v5358, 16
    %v5366 = vpop.permute.xlu0 %5365
    %5369 = vrot.lane.b32.xlu0 %v5359, 24
    %v5370 = vpop.permute.xlu0 %5369
    %v5372 = vsel %vm401, %v5356, %v5362
    %v5373 = vsel %vm1455, %v5372, %v5366
    %v5374 = vsel %vm1457, %v5373, %v5370
    %v5375 = vlaneseq
    %v5376 = vshrl.u32 %v5375, 7
    %v5377 = vsub.s32 1, %v5376
    %v5378 = vrot.slane %v155, %v5377
    %v5380 = vsel %vm168, %v4174, 0
    %v5383 = vsel %vm168, %v5374, 0
    %5385 = vmatprep.subr.mxu0 0.0
    %5386 = vmatpush1.msra.mxu0 0.0
    %5387 = vmatprep.subr.mxu0 0.0
    %5388 = vmatpush1.msra.mxu0 0.0
    %5389 = vmatprep.subr.mxu0 0.0
    %5390 = vmatpush1.msra.mxu0 0.0
    %5391 = vmatprep.subr.mxu0 0.0
    %5392 = vmatpush1.msra.mxu0 0.0
    %5393 = vmatprep.subr.mxu0 0.0
    %5394 = vmatpush1.msra.mxu0 0.0
    %5395 = vmatprep.subr.mxu0 0.0
    %5396 = vmatpush1.msra.mxu0 0.0
    %5397 = vmatprep.subr.mxu0 0.0
    %5398 = vmatpush1.msra.mxu0 0.0
    %5399 = vmatprep.subr.mxu0 0.0
    %5400 = vmatpush1.msra.mxu0 0.0
    %5401 = vmatprep.subr.mxu0 0.0
    %5402 = vmatpush1.msra.mxu0 0.0
    %5403 = vmatprep.subr.mxu0 0.0
    %5404 = vmatpush1.msra.mxu0 0.0
    %5405 = vmatprep.subr.mxu0 0.0
    %5406 = vmatpush1.msra.mxu0 0.0
    %5407 = vmatprep.subr.mxu0 0.0
    %5408 = vmatpush1.msra.mxu0 0.0
    %5409 = vmatprep.subr.mxu0 0.0
    %5410 = vmatpush1.msra.mxu0 %v2974
    %5411 = vmatprep.subr.mxu0 0.0
    %5412 = vmatpush1.msra.mxu0 %v2973
    %5413 = vmatprep.subr.mxu0 0.0
    %5414 = vmatpush1.msra.mxu0 %v2972
    %5415 = vmatprep.subr.mxu0 0.0
    %5416 = vmatpush1.msra.mxu0 %v2971
    %5417 = vmatprep.subr.mxu0 0.0
    %5418 = vmatpush2.msra.mxu0 0.0
    %5419 = vmatprep.subr.mxu0 0.0
    %5420 = vmatpush2.msra.mxu0 0.0
    %5421 = vmatprep.subr.mxu0 0.0
    %5422 = vmatpush2.msra.mxu0 0.0
    %5423 = vmatprep.subr.mxu0 0.0
    %5424 = vmatpush2.msra.mxu0 0.0
    %5425 = vmatprep.subr.mxu0 0.0
    %5426 = vmatpush2.msra.mxu0 0.0
    %5427 = vmatprep.subr.mxu0 0.0
    %5428 = vmatpush2.msra.mxu0 0.0
    %5429 = vmatprep.subr.mxu0 0.0
    %5430 = vmatpush2.msra.mxu0 0.0
    %5431 = vmatprep.subr.mxu0 0.0
    %5432 = vmatpush2.msra.mxu0 0.0
    %5433 = vmatprep.subr.mxu0 0.0
    %5434 = vmatpush2.msra.mxu0 0.0
    %5435 = vmatprep.subr.mxu0 0.0
    %5436 = vmatpush2.msra.mxu0 0.0
    %5437 = vmatprep.subr.mxu0 0.0
    %5438 = vmatpush2.msra.mxu0 0.0
    %5439 = vmatprep.subr.mxu0 0.0
    %5440 = vmatpush2.msra.mxu0 0.0
    %5441 = vmatprep.subr.mxu0 0.0
    %5442 = vmatpush2.msra.mxu0 0.0
    %5443 = vmatprep.subr.mxu0 0.0
    %5444 = vmatpush2.msra.mxu0 0.0
    %5445 = vmatprep.subr.mxu0 0.0
    %5446 = vmatpush2.msra.mxu0 0.0
    %5447 = vmatprep.subr.mxu0 0.0
    %5448 = vmatpush2.msra.mxu0 0.0
    %5449 = vmatprep.mubr.f32.mxu0 0.0
    %5450 = vmatmul.mubr.f32.gmra.mxu0 %v5380
    %v5451 = vpop.f32.mrf.mxu0
    %v5452 = vadd.f32 %v5378, %v5451
    %v5453 = vpop.f32.mrf.mxu0
    %5454 = vmatprep.mubr.f32.mxu0 0.0
    %5455 = vmatmul.mubr.f32.gmra.mxu0 %v5383
    %v5456 = vpop.f32.mrf.mxu0
    %v5457 = vadd.f32 %v5378, %v5456
    %v5458 = vpop.f32.mrf.mxu0
    %5459 = vdwg.mxu0
    %v5460 = vadd.f32 %v2785, %v5452
    %v5461 = vadd.f32 %v2786, %v5457
    %v5462 = vsel %vm168, %v5460, 0.0
    %5463 = vadd.xlane.f32.xlu0 %v5462
    %v5464 = vpop.xlane.xlu0 %5463
    %v5465 = vsel %vm168, %v5461, 0.0
    %5466 = vadd.xlane.f32.xlu0 %v5465
    %v5467 = vpop.xlane.xlu0 %5466
    %v5468 = vmul.f32 %v5464, %v2754
    %v5469 = vmul.f32 %v5467, %v2754
    %v5470 = vsub.f32 %v5460, %v5468
    %v5471 = vsub.f32 %v5461, %v5469
    %v5472 = vmul.f32 %v5470, %v5470
    %v5473 = vmul.f32 %v5471, %v5471
    %v5474 = vsel %vm168, %v5472, 0.0
    %5475 = vadd.xlane.f32.xlu0 %v5474
    %v5476 = vpop.xlane.xlu0 %5475
    %v5477 = vsel %vm168, %v5473, 0.0
    %5478 = vadd.xlane.f32.xlu0 %v5477
    %v5479 = vpop.xlane.xlu0 %5478
    %v5480 = vmul.f32 %v5476, %v2754
    %v5481 = vmul.f32 %v5479, %v2754
    %v5482 = vadd.f32 %v5480, 1e-05
    %v5483 = vadd.f32 %v5481, 1e-05
    %v5484 = vrsqrt.pop %v5482
    %v5485 = vrsqrt.pop %v5483
    %v5486 = vmul.f32 %v5470, %v5484
    %v5487 = vmul.f32 %v5471, %v5485
    %v5488 = vlaneseq
    %v5489 = vshrl.u32 %v5488, 7
    %v5490 = vsub.s32 5, %v5489
    %v5491 = vrot.slane %v155, %v5490
    %v5492 = vmul.f32 %v5486, %v5491
    %v5493 = vmul.f32 %v5487, %v5491
    %v5494 = vlaneseq
    %v5495 = vshrl.u32 %v5494, 7
    %v5496 = vsub.s32 6, %v5495
    %v5497 = vrot.slane %v155, %v5496
    %v5498 = vadd.f32 %v5492, %v5497
    %v5499 = vadd.f32 %v5493, %v5497
    %v5500 = vld [vmem:[#allocation14] sm:$0xff]
    %v5501 = vld [vmem:[#allocation14 + $0x8] sm:$0xff]
    %v5502 = vld [vmem:[#allocation14 + $0x10] sm:$0xff]
    %v5503 = vld [vmem:[#allocation14 + $0x18] sm:$0xff]
    %v5504 = vld [vmem:[%s11] sm:$0x1]
    %v5506 = vlaneseq
    %v5507 = vshrl.u32 %v5506, 7
    %v5508 = vsub.s32 0, %v5507
    %v5509 = vrot.slane %v5504, %v5508
    %v5512 = vsel %vm168, %v5498, 0
    %v5515 = vsel %vm168, %v5499, 0
    %5517 = vmatprep.subr.mxu0 0.0
    %5518 = vmatpush1.msra.mxu0 0.0
    %5519 = vmatprep.subr.mxu0 0.0
    %5520 = vmatpush1.msra.mxu0 0.0
    %5521 = vmatprep.subr.mxu0 0.0
    %5522 = vmatpush1.msra.mxu0 0.0
    %5523 = vmatprep.subr.mxu0 0.0
    %5524 = vmatpush1.msra.mxu0 0.0
    %5525 = vmatprep.subr.mxu0 0.0
    %5526 = vmatpush1.msra.mxu0 0.0
    %5527 = vmatprep.subr.mxu0 0.0
    %5528 = vmatpush1.msra.mxu0 0.0
    %5529 = vmatprep.subr.mxu0 0.0
    %5530 = vmatpush1.msra.mxu0 0.0
    %5531 = vmatprep.subr.mxu0 0.0
    %5532 = vmatpush1.msra.mxu0 0.0
    %5533 = vmatprep.subr.mxu0 0.0
    %5534 = vmatpush1.msra.mxu0 0.0
    %5535 = vmatprep.subr.mxu0 0.0
    %5536 = vmatpush1.msra.mxu0 0.0
    %5537 = vmatprep.subr.mxu0 0.0
    %5538 = vmatpush1.msra.mxu0 0.0
    %5539 = vmatprep.subr.mxu0 0.0
    %5540 = vmatpush1.msra.mxu0 0.0
    %5541 = vmatprep.subr.mxu0 0.0
    %5542 = vmatpush1.msra.mxu0 %v5503
    %5543 = vmatprep.subr.mxu0 0.0
    %5544 = vmatpush1.msra.mxu0 %v5502
    %5545 = vmatprep.subr.mxu0 0.0
    %5546 = vmatpush1.msra.mxu0 %v5501
    %5547 = vmatprep.subr.mxu0 0.0
    %5548 = vmatpush1.msra.mxu0 %v5500
    %5549 = vmatprep.subr.mxu0 0.0
    %5550 = vmatpush2.msra.mxu0 0.0
    %5551 = vmatprep.subr.mxu0 0.0
    %5552 = vmatpush2.msra.mxu0 0.0
    %5553 = vmatprep.subr.mxu0 0.0
    %5554 = vmatpush2.msra.mxu0 0.0
    %5555 = vmatprep.subr.mxu0 0.0
    %5556 = vmatpush2.msra.mxu0 0.0
    %5557 = vmatprep.subr.mxu0 0.0
    %5558 = vmatpush2.msra.mxu0 0.0
    %5559 = vmatprep.subr.mxu0 0.0
    %5560 = vmatpush2.msra.mxu0 0.0
    %5561 = vmatprep.subr.mxu0 0.0
    %5562 = vmatpush2.msra.mxu0 0.0
    %5563 = vmatprep.subr.mxu0 0.0
    %5564 = vmatpush2.msra.mxu0 0.0
    %5565 = vmatprep.subr.mxu0 0.0
    %5566 = vmatpush2.msra.mxu0 0.0
    %5567 = vmatprep.subr.mxu0 0.0
    %5568 = vmatpush2.msra.mxu0 0.0
    %5569 = vmatprep.subr.mxu0 0.0
    %5570 = vmatpush2.msra.mxu0 0.0
    %5571 = vmatprep.subr.mxu0 0.0
    %5572 = vmatpush2.msra.mxu0 0.0
    %5573 = vmatprep.subr.mxu0 0.0
    %5574 = vmatpush2.msra.mxu0 0.0
    %5575 = vmatprep.subr.mxu0 0.0
    %5576 = vmatpush2.msra.mxu0 0.0
    %5577 = vmatprep.subr.mxu0 0.0
    %5578 = vmatpush2.msra.mxu0 0.0
    %5579 = vmatprep.subr.mxu0 0.0
    %5580 = vmatpush2.msra.mxu0 0.0
    %5581 = vmatprep.mubr.f32.mxu0 0.0
    %5582 = vmatmul.mubr.f32.gmra.mxu0 %v5512
    %v5583 = vpop.f32.mrf.mxu0
    %v5584 = vadd.f32 %v5509, %v5583
    %v5585 = vpop.f32.mrf.mxu0
    %5586 = vmatprep.mubr.f32.mxu0 0.0
    %5587 = vmatmul.mubr.f32.gmra.mxu0 %v5515
    %v5588 = vpop.f32.mrf.mxu0
    %v5589 = vadd.f32 %v5509, %v5588
    %v5590 = vpop.f32.mrf.mxu0
    %5591 = vdwg.mxu0
    %v5592 = vmax.f32 %v5584, 0.0
    %v5593 = vmax.f32 %v5589, 0.0
    %v5594 = vld [vmem:[%s12] sm:$0xff]
    %v5595 = vld [vmem:[%s12 + $0x8] sm:$0xff]
    %v5596 = vld [vmem:[%s12 + $0x10] sm:$0xff]
    %v5597 = vld [vmem:[%s12 + $0x18] sm:$0xff]
    %v5598 = vld [vmem:[%s12 + $0x20] sm:$0xff]
    %v5599 = vld [vmem:[%s12 + $0x28] sm:$0xff]
    %v5600 = vld [vmem:[%s12 + $0x30] sm:$0xff]
    %v5601 = vld [vmem:[%s12 + $0x38] sm:$0xff]
    %v5602 = vlaneseq
    %v5603 = vshrl.u32 %v5602, 7
    %v5604 = vsub.s32 2, %v5603
    %v5605 = vrot.slane %v155, %v5604
    %vm5606 = vcmask 523264
    %v5608 = vsel %vm5606, %v5592, 0
    %v5611 = vsel %vm5606, %v5593, 0
    %5613 = vmatprep.subr.mxu0 0.0
    %5614 = vmatpush1.msra.mxu0 0.0
    %5615 = vmatprep.subr.mxu0 0.0
    %5616 = vmatpush1.msra.mxu0 0.0
    %5617 = vmatprep.subr.mxu0 0.0
    %5618 = vmatpush1.msra.mxu0 0.0
    %5619 = vmatprep.subr.mxu0 0.0
    %5620 = vmatpush1.msra.mxu0 0.0
    %5621 = vmatprep.subr.mxu0 0.0
    %5622 = vmatpush1.msra.mxu0 0.0
    %5623 = vmatprep.subr.mxu0 0.0
    %5624 = vmatpush1.msra.mxu0 0.0
    %5625 = vmatprep.subr.mxu0 0.0
    %5626 = vmatpush1.msra.mxu0 0.0
    %5627 = vmatprep.subr.mxu0 0.0
    %5628 = vmatpush1.msra.mxu0 0.0
    %5629 = vmatprep.subr.mxu0 0.0
    %5630 = vmatpush1.msra.mxu0 %v5601
    %5631 = vmatprep.subr.mxu0 0.0
    %5632 = vmatpush1.msra.mxu0 %v5600
    %5633 = vmatprep.subr.mxu0 0.0
    %5634 = vmatpush1.msra.mxu0 %v5599
    %5635 = vmatprep.subr.mxu0 0.0
    %5636 = vmatpush1.msra.mxu0 %v5598
    %5637 = vmatprep.subr.mxu0 0.0
    %5638 = vmatpush1.msra.mxu0 %v5597
    %5639 = vmatprep.subr.mxu0 0.0
    %5640 = vmatpush1.msra.mxu0 %v5596
    %5641 = vmatprep.subr.mxu0 0.0
    %5642 = vmatpush1.msra.mxu0 %v5595
    %5643 = vmatprep.subr.mxu0 0.0
    %5644 = vmatpush1.msra.mxu0 %v5594
    %5645 = vmatprep.subr.mxu0 0.0
    %5646 = vmatpush2.msra.mxu0 0.0
    %5647 = vmatprep.subr.mxu0 0.0
    %5648 = vmatpush2.msra.mxu0 0.0
    %5649 = vmatprep.subr.mxu0 0.0
    %5650 = vmatpush2.msra.mxu0 0.0
    %5651 = vmatprep.subr.mxu0 0.0
    %5652 = vmatpush2.msra.mxu0 0.0
    %5653 = vmatprep.subr.mxu0 0.0
    %5654 = vmatpush2.msra.mxu0 0.0
    %5655 = vmatprep.subr.mxu0 0.0
    %5656 = vmatpush2.msra.mxu0 0.0
    %5657 = vmatprep.subr.mxu0 0.0
    %5658 = vmatpush2.msra.mxu0 0.0
    %5659 = vmatprep.subr.mxu0 0.0
    %5660 = vmatpush2.msra.mxu0 0.0
    %5661 = vmatprep.subr.mxu0 0.0
    %5662 = vmatpush2.msra.mxu0 0.0
    %5663 = vmatprep.subr.mxu0 0.0
    %5664 = vmatpush2.msra.mxu0 0.0
    %5665 = vmatprep.subr.mxu0 0.0
    %5666 = vmatpush2.msra.mxu0 0.0
    %5667 = vmatprep.subr.mxu0 0.0
    %5668 = vmatpush2.msra.mxu0 0.0
    %5669 = vmatprep.subr.mxu0 0.0
    %5670 = vmatpush2.msra.mxu0 0.0
    %5671 = vmatprep.subr.mxu0 0.0
    %5672 = vmatpush2.msra.mxu0 0.0
    %5673 = vmatprep.subr.mxu0 0.0
    %5674 = vmatpush2.msra.mxu0 0.0
    %5675 = vmatprep.subr.mxu0 0.0
    %5676 = vmatpush2.msra.mxu0 0.0
    %5677 = vmatprep.mubr.f32.mxu0 0.0
    %5678 = vmatmul.mubr.f32.gmra.mxu0 %v5608
    %v5679 = vpop.f32.mrf.mxu0
    %v5680 = vadd.f32 %v5605, %v5679
    %v5681 = vpop.f32.mrf.mxu0
    %5682 = vmatprep.mubr.f32.mxu0 0.0
    %5683 = vmatmul.mubr.f32.gmra.mxu0 %v5611
    %v5684 = vpop.f32.mrf.mxu0
    %v5685 = vadd.f32 %v5605, %v5684
    %v5686 = vpop.f32.mrf.mxu0
    %5687 = vdwg.mxu0
    %v5688 = vadd.f32 %v5498, %v5680
    %v5689 = vadd.f32 %v5499, %v5685
    %v5690 = vsel %vm168, %v5688, 0.0
    %5691 = vadd.xlane.f32.xlu0 %v5690
    %v5692 = vpop.xlane.xlu0 %5691
    %v5693 = vsel %vm168, %v5689, 0.0
    %5694 = vadd.xlane.f32.xlu0 %v5693
    %v5695 = vpop.xlane.xlu0 %5694
    %v5696 = vmul.f32 %v5692, %v2754
    %v5697 = vmul.f32 %v5695, %v2754
    %v5698 = vsub.f32 %v5688, %v5696
    %v5699 = vsub.f32 %v5689, %v5697
    %v5700 = vmul.f32 %v5698, %v5698
    %v5701 = vmul.f32 %v5699, %v5699
    %v5702 = vsel %vm168, %v5700, 0.0
    %5703 = vadd.xlane.f32.xlu0 %v5702
    %v5704 = vpop.xlane.xlu0 %5703
    %v5705 = vsel %vm168, %v5701, 0.0
    %5706 = vadd.xlane.f32.xlu0 %v5705
    %v5707 = vpop.xlane.xlu0 %5706
    %v5708 = vmul.f32 %v5704, %v2754
    %v5709 = vmul.f32 %v5707, %v2754
    %v5710 = vadd.f32 %v5708, 1e-05
    %v5711 = vadd.f32 %v5709, 1e-05
    %v5712 = vrsqrt.pop %v5710
    %v5713 = vrsqrt.pop %v5711
    %v5714 = vmul.f32 %v5698, %v5712
    %v5715 = vmul.f32 %v5699, %v5713
    %v5716 = vlaneseq
    %v5717 = vshrl.u32 %v5716, 7
    %v5718 = vsub.s32 7, %v5717
    %v5719 = vrot.slane %v155, %v5718
    %v5720 = vmul.f32 %v5714, %v5719
    %v5721 = vmul.f32 %v5715, %v5719
    %v5722 = vlaneseq
    %v5723 = vshrl.u32 %v5722, 7
    %v5724 = vsub.s32 0, %v5723
    %v5725 = vrot.slane %v156, %v5724
    %v5726 = vadd.f32 %v5720, %v5725
    %v5727 = vadd.f32 %v5721, %v5725
    %5728 = vst.msk [vmem:[#allocation16] sm:$0xff] %vm168, %v5726
    %5729 = vst.msk [vmem:[#allocation16 + $0x8] sm:$0xff] %vm168, %v5727
    // Predicated region
    $region90: #{tpu_custom_call.1} parent=1 // pred_check
      _
    $region91: #{tpu_custom_call.1} parent=1 // pred_check_branch
      %5731 = sbr.rel (0) target = $region93
    $region92: #{tpu_custom_call.1} parent=1 // pred_region
      %s5733 = ssub.s32 256, 256
      %5734 = vsyncadd [#allocation4], %s5733
      %s5735 = sshll.u32 [#allocation16], 4
      %s5736 = int_to_ptr.vmem [resolvable:$true] %s5735
      %5741 = dma.vmem_to_hbm [thread:$0]  %s5736, 256, %s14, [#allocation4], 128, 128, 8
    $region93: #{tpu_custom_call.1} parent=1 // pred_fallthru
      _
    // Predicated region
    $region94: #{tpu_custom_call.1} parent=1 // pred_check
      _
    $region95: #{tpu_custom_call.1} parent=1 // pred_check_branch
      %5743 = sbr.rel (0) target = $region97
    $region96: #{tpu_custom_call.1} parent=1 // pred_region
      %5744 = dma.done [#allocation4], 256
    $region97: #{tpu_custom_call.1} parent=1 // pred_fallthru
      _
    %5745 = vsyncpa [#allocation3], 1
    %5746 = vsyncpa [#allocation6], 1
    %5747 = vsyncpa [#allocation9], 1
    %5748 = vsyncpa [#allocation12], 1
    %5749 = vsyncpa [#allocation15], 1
    %5750 = vsyncpa [#allocation4], 1

</llo_original>
